<compile_context>
chip_gen: v6e
topology: v6e:2x2x1
jax: 0.10.0
libtpu: 0.0.40
codegen_flags: <defaults>
</compile_context>

<pallas_src>
import math
from functools import partial

import jax
import jax.numpy as jnp
from jax.experimental import pallas as pl
from jax.experimental.pallas import tpu as pltpu


def _itransformer_kernel(n_head, compute_dtype,
                         # inputs
                         x_ref,
                         emb_w_ref, emb_b_ref,
                         wq_ref, bq_ref, wk_ref, bk_ref, wv_ref, bv_ref,
                         wo_ref, bo_ref,
                         ln1w_ref, ln1b_ref,
                         ff1w_ref, ff1b_ref, ff2w_ref, ff2b_ref,
                         ln2w_ref, ln2b_ref,
                         projw_ref, projb_ref,
                         # output
                         o_ref,
                         # scratch (persist across the layer grid axis)
                         enc_ref, mean_ref, std_ref):
    layer = pl.program_id(1)
    tb, N, L = x_ref.shape
    d_model = emb_w_ref.shape[1]
    hd = d_model // n_head
    T = tb * N                 # tokens per block (variates x samples)
    Z = tb * n_head            # batched attention "batch" axis
    eps = 1e-5
    cdt = compute_dtype

    # ---- first layer step: instance norm over time + inverted embedding ----
    @pl.when(layer == 0)
    def _embed():
        xt = x_ref[...]                                   # [TB, N, L] f32 (pre-transposed)
        mu = jnp.mean(xt, axis=-1, keepdims=True)         # [TB, N, 1]
        xc = xt - mu
        var = jnp.mean(xc * xc, axis=-1, keepdims=True)   # unbiased=False
        sd = jnp.sqrt(var + eps)
        mean_ref[...] = mu
        std_ref[...] = sd
        xn = (xc / sd).reshape(T, L)                      # [TB*N, L]
        enc_ref[...] = (jnp.dot(xn.astype(cdt), emb_w_ref[...],
                                preferred_element_type=jnp.float32)
                        + emb_b_ref[...])                 # [TB*N, d_model] f32

    def to_heads(a):           # [T, d_model] -> [Z, N, hd]
        a3 = jnp.transpose(a.reshape(tb, N, d_model), (0, 2, 1))   # [TB, d_model, N]
        return jnp.transpose(a3.reshape(Z, hd, N), (0, 2, 1))      # [Z, N, hd]

    def to_heads_t(a):         # [T, d_model] -> [Z, hd, N]   (single relayout)
        a3 = jnp.transpose(a.reshape(tb, N, d_model), (0, 2, 1))   # [TB, d_model, N]
        return a3.reshape(Z, hd, N)

    def from_heads(a):         # [Z, N, hd] -> [T, d_model]
        a3 = jnp.transpose(a, (0, 2, 1)).reshape(tb, d_model, N)
        return jnp.transpose(a3, (0, 2, 1)).reshape(T, d_model)

    def layer_norm(v, w, b):   # f32 row-wise LayerNorm
        mu = jnp.mean(v, axis=-1, keepdims=True)
        var = jnp.mean((v - mu) ** 2, axis=-1, keepdims=True)
        return (v - mu) * jax.lax.rsqrt(var + eps) * w + b

    # ---- one post-norm TransformerEncoder layer per grid step --------------
    enc = enc_ref[...]                                    # [T, d_model] f32
    enc_c = enc.astype(cdt)

    # 1/sqrt(hd) is pre-folded into wq/bq in the wrapper.
    q = jnp.dot(enc_c, wq_ref[0], preferred_element_type=jnp.float32) + bq_ref[0]
    k = jnp.dot(enc_c, wk_ref[0], preferred_element_type=jnp.float32) + bk_ref[0]
    v = jnp.dot(enc_c, wv_ref[0], preferred_element_type=jnp.float32) + bv_ref[0]

    qh = to_heads(q)                                      # [Z, N, hd] f32
    kh = to_heads(k)                                      # [Z, N, hd] f32
    vt = to_heads_t(v)                                    # [Z, hd, N] f32

    s = jnp.einsum('znd,zmd->znm', qh.astype(cdt), kh.astype(cdt),
                   preferred_element_type=jnp.float32)    # [Z, N, N] f32 (pre-scaled)
    s = s - jnp.max(s, axis=-1, keepdims=True)
    p = jnp.exp(s)                                        # f32
    denom = jnp.sum(p, axis=-1, keepdims=True)            # [Z, N, 1] f32
    ctx = jnp.einsum('znm,zdm->znd', p.astype(cdt), vt.astype(cdt),
                     preferred_element_type=jnp.float32)  # [Z, N, hd] f32
    # deferred softmax normalization: O(N*hd) instead of O(N^2)
    ctx = ctx * pl.reciprocal(denom, approx=True)

    attn = from_heads(ctx)                                # [T, d_model] f32
    attn = (jnp.dot(attn.astype(cdt), wo_ref[0],
                    preferred_element_type=jnp.float32) + bo_ref[0])
    enc = layer_norm(enc + attn, ln1w_ref[0], ln1b_ref[0])

    ff = (jnp.dot(enc.astype(cdt), ff1w_ref[0],
                  preferred_element_type=jnp.float32) + ff1b_ref[0])
    ff = jnp.maximum(ff.astype(cdt), 0.0)                 # ReLU + second matmul in bf16
    ff = (jnp.dot(ff, ff2w_ref[0],
                  preferred_element_type=jnp.float32) + ff2b_ref[0])
    enc = layer_norm(enc + ff, ln2w_ref[0], ln2b_ref[0])
    enc_ref[...] = enc

    # ---- last layer step: projector + de-normalization ---------------------
    @pl.when(layer == pl.num_programs(1) - 1)
    def _project():
        P = projw_ref.shape[1]                            # padded pred_len (mult of 128)
        dec = (jnp.dot(enc_ref[...].astype(cdt), projw_ref[...],
                       preferred_element_type=jnp.float32)
               + projb_ref[...]).reshape(tb, N, P)
        # lane-dense, unmasked store: output block is [TB, N, P] with P % 128 == 0
        o_ref[...] = dec * std_ref[...] + mean_ref[...]


def _vmem_limit_bytes():
    """Generation-aware VMEM request: capacity minus headroom for compiler scratch."""
    cap = 64 * 1024 * 1024
    try:
        info = pltpu.get_tpu_info()
        c = getattr(info, "vmem_capacity_bytes", None)
        if c:
            cap = int(c)
    except Exception:
        pass
    limit = cap - max(cap // 8, 8 * 1024 * 1024)   # 128MiB -> 112MiB, 64MiB -> 56MiB
    return int(max(32 * 1024 * 1024, min(limit, 112 * 1024 * 1024)))


def _pick_samples_per_block(B, N, n_head, d_model, d_ff, pred_pad, vmem_limit):
    """Largest TB dividing B with B//TB >= 2 (feed both v7x cores / amortize
    per-step overhead and weight re-streaming) whose rough live-activation
    footprint stays well under the VMEM limit (weights get the rest)."""
    best = 1
    for tb in range(1, B + 1):
        if B % tb != 0:
            continue
        if tb > 1 and B // tb < 2:
            break
        T = tb * N
        act = (T * d_model * 4 * 4           # enc + residual / LayerNorm temps (f32)
               + 3 * T * d_model * 6         # q, k, v (f32 + bf16 head copies)
               + tb * n_head * N * N * 6     # scores f32 + probs bf16
               + T * d_ff * 6                # FFN hidden (f32 + bf16)
               + 2 * tb * N * pred_pad * 4)  # output block (double-buffered)
        if act <= 0.35 * vmem_limit:
            best = tb
    return best


def _prepare_weights(params, compute_dtype, n_head, pred_pad):
    """Wrapper-side layout plumbing: transpose to [in,out], split qkv, fold the
    attention scale into wq/bq, pad the projector to pred_pad lanes, reshape
    per-layer vectors to [nlayers, 1, C], cast matmul weights to compute dtype."""
    (emb_w, emb_b, inw, inb, outw, outb, ln1w, ln1b, ln2w, ln2b,
     ff1w, ff1b, ff2w, ff2b, projw, projb) = params
    d_model = emb_w.shape[0]
    nlayers = inw.shape[0]
    cdt = compute_dtype
    f32 = jnp.float32
    scale = 1.0 / math.sqrt(d_model // n_head)

    def t(w):  # [..., out, in] -> [..., in, out]
        return jnp.swapaxes(w, -1, -2)

    def row(v):  # [nlayers, C] -> [nlayers, 1, C]
        return v.reshape(nlayers, 1, -1).astype(f32)

    wq = (t(inw[:, 0 * d_model:1 * d_model, :]) * scale).astype(cdt)
    wk = t(inw[:, 1 * d_model:2 * d_model, :]).astype(cdt)
    wv = t(inw[:, 2 * d_model:3 * d_model, :]).astype(cdt)
    bq = row(inb[:, 0 * d_model:1 * d_model]) * scale
    bk = row(inb[:, 1 * d_model:2 * d_model])
    bv = row(inb[:, 2 * d_model:3 * d_model])

    pred_len = projw.shape[0]
    projw_t = projw.T.astype(f32)                       # [d_model, pred_len]
    projb_r = projb.reshape(1, -1).astype(f32)
    if pred_pad != pred_len:                            # zero-pad to lane-dense width
        projw_t = jnp.pad(projw_t, ((0, 0), (0, pred_pad - pred_len)))
        projb_r = jnp.pad(projb_r, ((0, 0), (0, pred_pad - pred_len)))

    return (emb_w.T.astype(cdt), emb_b.reshape(1, -1).astype(f32),
            wq, bq, wk, bk, wv, bv,
            t(outw).astype(cdt), row(outb),
            row(ln1w), row(ln1b),
            t(ff1w).astype(cdt), row(ff1b),
            t(ff2w).astype(cdt), row(ff2b),
            row(ln2w), row(ln2b),
            projw_t.astype(cdt), projb_r)


def itransformer_forward(x, params, *, n_head, samples_per_block=None,
                         compute_dtype=jnp.bfloat16):
    B, L, N = x.shape
    emb_w, inw, ff1w, projw = params[0], params[2], params[10], params[14]
    d_model = emb_w.shape[0]
    nlayers = inw.shape[0]
    d_ff = ff1w.shape[1]
    pred_len = projw.shape[0]
    assert d_model % n_head == 0

    pred_pad = -(-pred_len // 128) * 128                 # next multiple of 128
    vmem_limit = _vmem_limit_bytes()
    if samples_per_block is None:
        samples_per_block = _pick_samples_per_block(
            B, N, n_head, d_model, d_ff, pred_pad, vmem_limit)
    tb = samples_per_block
    assert B % tb == 0

    weights = _prepare_weights(params, compute_dtype, n_head, pred_pad)
    x_t = jnp.transpose(x, (0, 2, 1))                    # [B, N, L]: time on lanes

    def fixed(shape):
        nd = len(shape)
        return pl.BlockSpec(shape, lambda b, l, _nd=nd: (0,) * _nd)

    def per_layer(tail):
        return pl.BlockSpec((1,) + tail,
                            lambda b, l, _nt=len(tail): (l,) + (0,) * _nt)

    in_specs = [
        pl.BlockSpec((tb, N, L), lambda b, l: (b, 0, 0)),          # x (pre-transposed)
        fixed((L, d_model)), fixed((1, d_model)),                  # emb w, b
        per_layer((d_model, d_model)), per_layer((1, d_model)),    # wq, bq (pre-scaled)
        per_layer((d_model, d_model)), per_layer((1, d_model)),    # wk, bk
        per_layer((d_model, d_model)), per_layer((1, d_model)),    # wv, bv
        per_layer((d_model, d_model)), per_layer((1, d_model)),    # wo, bo
        per_layer((1, d_model)), per_layer((1, d_model)),          # ln1 w, b
        per_layer((d_model, d_ff)), per_layer((1, d_ff)),          # ff1 w, b
        per_layer((d_ff, d_model)), per_layer((1, d_model)),       # ff2 w, b
        per_layer((1, d_model)), per_layer((1, d_model)),          # ln2 w, b
        fixed((d_model, pred_pad)), fixed((1, pred_pad)),          # proj w, b (padded)
    ]
    out_specs = pl.BlockSpec((tb, N, pred_pad), lambda b, l: (b, 0, 0))

    kernel = partial(_itransformer_kernel, n_head, compute_dtype)
    out = pl.pallas_call(
        kernel,
        out_shape=jax.ShapeDtypeStruct((B, N, pred_pad), jnp.float32),
        grid_spec=pltpu.PrefetchScalarGridSpec(
            num_scalar_prefetch=0,
            grid=(B // tb, nlayers),
            in_specs=in_specs,
            out_specs=out_specs,
            scratch_shapes=[
                pltpu.VMEM((tb * N, d_model), jnp.float32),  # enc carried over layers
                pltpu.VMEM((tb, N, 1), jnp.float32),         # means
                pltpu.VMEM((tb, N, 1), jnp.float32),         # stdev
            ],
        ),
        compiler_params=pltpu.CompilerParams(
            dimension_semantics=("parallel", "arbitrary"),
            vmem_limit_bytes=vmem_limit,
        ),
    )(x_t, *weights)
    # Kernel stores lane-dense [B, N, pred_pad]; slice + transpose to PyTorch layout.
    return jnp.transpose(out[:, :, :pred_len], (0, 2, 1))


def init_params(key, seq_len, pred_len, d_model, n_head, nlayers, d_ff):
    """Parameters in PyTorch layouts (Linear.weight = [out, in])."""
    ks = jax.random.split(key, 10)
    s = 0.02
    emb_w = jax.random.normal(ks[0], (d_model, seq_len), jnp.float32) * s
    emb_b = jax.random.normal(ks[1], (d_model,), jnp.float32) * s
    inw = jax.random.normal(ks[2], (nlayers, 3 * d_model, d_model), jnp.float32) * s
    inb = jax.random.normal(ks[3], (nlayers, 3 * d_model), jnp.float32) * s
    outw = jax.random.normal(ks[4], (nlayers, d_model, d_model), jnp.float32) * s
    outb = jax.random.normal(ks[5], (nlayers, d_model), jnp.float32) * s
    ln1w = jnp.ones((nlayers, d_model), jnp.float32)
    ln1b = jnp.zeros((nlayers, d_model), jnp.float32)
    ln2w = jnp.ones((nlayers, d_model), jnp.float32)
    ln2b = jnp.zeros((nlayers, d_model), jnp.float32)
    ff1w = jax.random.normal(ks[6], (nlayers, d_ff, d_model), jnp.float32) * s
    ff1b = jax.random.normal(ks[7], (nlayers, d_ff), jnp.float32) * s
    ff2w = jax.random.normal(ks[8], (nlayers, d_model, d_ff), jnp.float32) * s
    ff2b = jnp.zeros((nlayers, d_model), jnp.float32)
    projw = jax.random.normal(ks[9], (pred_len, d_model), jnp.float32) * s
    projb = jnp.zeros((pred_len,), jnp.float32)
    return (emb_w, emb_b, inw, inb, outw, outb, ln1w, ln1b, ln2w, ln2b,
            ff1w, ff1b, ff2w, ff2b, projw, projb)


if __name__ == "__main__":
    B, seq_len, n_vars = 4, 16, 8
    d_model, n_head, nlayers, d_ff, pred_len = 32, 4, 2, 64, 8

    key = jax.random.PRNGKey(0)
    kx, kp = jax.random.split(key)
    x_enc = jax.random.normal(kx, (B, seq_len, n_vars), jnp.float32)
    params = init_params(kp, seq_len, pred_len, d_model, n_head, nlayers, d_ff)

    out = itransformer_forward(x_enc, params, n_head=n_head)
    out = jax.block_until_ready(out)

    assert out.shape == (B, pred_len, n_vars)
    assert bool(jnp.all(jnp.isfinite(out)))
    print("KERNEL_OK")
</pallas_src>

<mosaic_0001>
module attributes {stable_mosaic.version = 11 : i64} {
  func.func @_itransformer_kernel(%arg0: i32, %arg1: i32, %arg2: memref<2x8x16xf32, #tpu.memory_space<vmem>>, %arg3: memref<16x32xbf16, #tpu.memory_space<vmem>>, %arg4: memref<1x32xf32, #tpu.memory_space<vmem>>, %arg5: memref<1x32x32xbf16, #tpu.memory_space<vmem>>, %arg6: memref<1x1x32xf32, #tpu.memory_space<vmem>>, %arg7: memref<1x32x32xbf16, #tpu.memory_space<vmem>>, %arg8: memref<1x1x32xf32, #tpu.memory_space<vmem>>, %arg9: memref<1x32x32xbf16, #tpu.memory_space<vmem>>, %arg10: memref<1x1x32xf32, #tpu.memory_space<vmem>>, %arg11: memref<1x32x32xbf16, #tpu.memory_space<vmem>>, %arg12: memref<1x1x32xf32, #tpu.memory_space<vmem>>, %arg13: memref<1x1x32xf32, #tpu.memory_space<vmem>>, %arg14: memref<1x1x32xf32, #tpu.memory_space<vmem>>, %arg15: memref<1x32x64xbf16, #tpu.memory_space<vmem>>, %arg16: memref<1x1x64xf32, #tpu.memory_space<vmem>>, %arg17: memref<1x64x32xbf16, #tpu.memory_space<vmem>>, %arg18: memref<1x1x32xf32, #tpu.memory_space<vmem>>, %arg19: memref<1x1x32xf32, #tpu.memory_space<vmem>>, %arg20: memref<1x1x32xf32, #tpu.memory_space<vmem>>, %arg21: memref<32x128xbf16, #tpu.memory_space<vmem>>, %arg22: memref<1x128xf32, #tpu.memory_space<vmem>>, %arg23: memref<2x8x128xf32, #tpu.memory_space<vmem>>, %arg24: memref<16x32xf32, #tpu.memory_space<vmem>>, %arg25: memref<2x8x1xf32, #tpu.memory_space<vmem>>, %arg26: memref<2x8x1xf32, #tpu.memory_space<vmem>>) attributes {dimension_semantics = [#tpu.dimension_semantics<parallel>, #tpu.dimension_semantics<arbitrary>], iteration_bounds = array<i64: 2, 2>, scalar_prefetch = 0 : i64, scratch_operands = 3 : i64, tpu.core_type = #tpu.core_type<tc>, window_params = [{transform_indices = @transform_0, window_bounds = array<i64: 2, 8, 16>}, {pipeline_mode = #tpu.pipeline_mode<synchronous>, transform_indices = @transform_1, window_bounds = array<i64: 16, 32>}, {pipeline_mode = #tpu.pipeline_mode<synchronous>, transform_indices = @transform_2, window_bounds = array<i64: 1, 32>}, {transform_indices = @transform_3, window_bounds = array<i64: 1, 32, 32>}, {transform_indices = @transform_4, window_bounds = array<i64: 1, 1, 32>}, {transform_indices = @transform_5, window_bounds = array<i64: 1, 32, 32>}, {transform_indices = @transform_6, window_bounds = array<i64: 1, 1, 32>}, {transform_indices = @transform_7, window_bounds = array<i64: 1, 32, 32>}, {transform_indices = @transform_8, window_bounds = array<i64: 1, 1, 32>}, {transform_indices = @transform_9, window_bounds = array<i64: 1, 32, 32>}, {transform_indices = @transform_10, window_bounds = array<i64: 1, 1, 32>}, {transform_indices = @transform_11, window_bounds = array<i64: 1, 1, 32>}, {transform_indices = @transform_12, window_bounds = array<i64: 1, 1, 32>}, {transform_indices = @transform_13, window_bounds = array<i64: 1, 32, 64>}, {transform_indices = @transform_14, window_bounds = array<i64: 1, 1, 64>}, {transform_indices = @transform_15, window_bounds = array<i64: 1, 64, 32>}, {transform_indices = @transform_16, window_bounds = array<i64: 1, 1, 32>}, {transform_indices = @transform_17, window_bounds = array<i64: 1, 1, 32>}, {transform_indices = @transform_18, window_bounds = array<i64: 1, 1, 32>}, {pipeline_mode = #tpu.pipeline_mode<synchronous>, transform_indices = @transform_19, window_bounds = array<i64: 32, 128>}, {pipeline_mode = #tpu.pipeline_mode<synchronous>, transform_indices = @transform_20, window_bounds = array<i64: 1, 128>}, {transform_indices = @transform_21, window_bounds = array<i64: 2, 8, 128>}]} {
    %c0_i32 = arith.constant 0 : i32
    %0 = arith.cmpi eq, %arg1, %c0_i32 : i32
    %1 = arith.extui %0 : i1 to i32
    %c0_i32_0 = arith.constant 0 : i32
    %2 = arith.cmpi ne, %1, %c0_i32_0 : i32
    scf.if %2 {
      %c0_73 = arith.constant 0 : index
      %c0_74 = arith.constant 0 : index
      %c0_75 = arith.constant 0 : index
      %141 = vector.load %arg2[%c0_73, %c0_74, %c0_75] : memref<2x8x16xf32, #tpu.memory_space<vmem>>, vector<2x8x16xf32>
      %cst_76 = arith.constant dense<0.000000e+00> : vector<2x8xf32>
      %142 = vector.multi_reduction <add>, %141, %cst_76 [2] : vector<2x8x16xf32> to vector<2x8xf32>
      %143 = vector.shape_cast %142 : vector<2x8xf32> to vector<2x8x1xf32>
      %cst_77 = arith.constant 1.600000e+01 : f32
      %144 = vector.broadcast %cst_77 : f32 to vector<2x8x1xf32>
      %145 = arith.divf %143, %144 : vector<2x8x1xf32>
      %146 = vector.broadcast %145 : vector<2x8x1xf32> to vector<2x8x16xf32>
      %147 = arith.subf %141, %146 : vector<2x8x16xf32>
      %148 = arith.mulf %147, %147 : vector<2x8x16xf32>
      %cst_78 = arith.constant dense<0.000000e+00> : vector<2x8xf32>
      %149 = vector.multi_reduction <add>, %148, %cst_78 [2] : vector<2x8x16xf32> to vector<2x8xf32>
      %150 = vector.shape_cast %149 : vector<2x8xf32> to vector<2x8x1xf32>
      %cst_79 = arith.constant 1.600000e+01 : f32
      %151 = vector.broadcast %cst_79 : f32 to vector<2x8x1xf32>
      %152 = arith.divf %150, %151 : vector<2x8x1xf32>
      %cst_80 = arith.constant 9.99999974E-6 : f32
      %153 = vector.broadcast %cst_80 : f32 to vector<2x8x1xf32>
      %154 = arith.addf %152, %153 : vector<2x8x1xf32>
      %155 = math.sqrt %154 : vector<2x8x1xf32>
      %c0_81 = arith.constant 0 : index
      %c0_82 = arith.constant 0 : index
      %c0_83 = arith.constant 0 : index
      %156 = vector.load %arg25[%c0_81, %c0_82, %c0_83] : memref<2x8x1xf32, #tpu.memory_space<vmem>>, vector<2x8x1xf32>
      tpu.vector_store %arg25[%c0_81, %c0_82, %c0_83], %145 {strides = array<i32>} : memref<2x8x1xf32, #tpu.memory_space<vmem>>, vector<2x8x1xf32>,
      %c0_84 = arith.constant 0 : index
      %c0_85 = arith.constant 0 : index
      %c0_86 = arith.constant 0 : index
      %157 = vector.load %arg26[%c0_84, %c0_85, %c0_86] : memref<2x8x1xf32, #tpu.memory_space<vmem>>, vector<2x8x1xf32>
      tpu.vector_store %arg26[%c0_84, %c0_85, %c0_86], %155 {strides = array<i32>} : memref<2x8x1xf32, #tpu.memory_space<vmem>>, vector<2x8x1xf32>,
      %158 = vector.broadcast %155 : vector<2x8x1xf32> to vector<2x8x16xf32>
      %159 = arith.divf %147, %158 : vector<2x8x16xf32>
      %160 = vector.shape_cast %159 : vector<2x8x16xf32> to vector<16x16xf32>
      %161 = arith.truncf %160 : vector<16x16xf32> to vector<16x16xbf16>
      %c0_87 = arith.constant 0 : index
      %c0_88 = arith.constant 0 : index
      %162 = vector.load %arg3[%c0_87, %c0_88] : memref<16x32xbf16, #tpu.memory_space<vmem>>, vector<16x32xbf16>
      %cst_89 = arith.constant dense<0.000000e+00> : vector<16x32xf32>
      %163 = tpu.matmul %161, %162, %cst_89 {dimension_numbers = #tpu.dot_dimension_numbers<[1], [0], [0], [1], [0, 0, 1, 1], [], []>} : vector<16x16xbf16>, vector<16x32xbf16>, vector<16x32xf32> -> vector<16x32xf32>
      %c0_90 = arith.constant 0 : index
      %c0_91 = arith.constant 0 : index
      %164 = vector.load %arg4[%c0_90, %c0_91] : memref<1x32xf32, #tpu.memory_space<vmem>>, vector<1x32xf32>
      %165 = vector.broadcast %164 : vector<1x32xf32> to vector<16x32xf32>
      %166 = arith.addf %163, %165 : vector<16x32xf32>
      %c0_92 = arith.constant 0 : index
      %c0_93 = arith.constant 0 : index
      %167 = vector.load %arg24[%c0_92, %c0_93] : memref<16x32xf32, #tpu.memory_space<vmem>>, vector<16x32xf32>
      tpu.vector_store %arg24[%c0_92, %c0_93], %166 {strides = array<i32>} : memref<16x32xf32, #tpu.memory_space<vmem>>, vector<16x32xf32>,
    } else {
    }
    %c0 = arith.constant 0 : index
    %c0_1 = arith.constant 0 : index
    %3 = vector.load %arg24[%c0, %c0_1] : memref<16x32xf32, #tpu.memory_space<vmem>>, vector<16x32xf32>
    %4 = arith.truncf %3 : vector<16x32xf32> to vector<16x32xbf16>
    %c0_2 = arith.constant 0 : index
    %c0_3 = arith.constant 0 : index
    %c0_4 = arith.constant 0 : index
    %5 = vector.load %arg5[%c0_2, %c0_3, %c0_4] : memref<1x32x32xbf16, #tpu.memory_space<vmem>>, vector<1x32x32xbf16>
    %6 = vector.shape_cast %5 : vector<1x32x32xbf16> to vector<32x32xbf16>
    %cst = arith.constant dense<0.000000e+00> : vector<16x32xf32>
    %7 = tpu.matmul %4, %6, %cst {dimension_numbers = #tpu.dot_dimension_numbers<[1], [0], [0], [1], [0, 0, 1, 1], [], []>} : vector<16x32xbf16>, vector<32x32xbf16>, vector<16x32xf32> -> vector<16x32xf32>
    %c0_5 = arith.constant 0 : index
    %c0_6 = arith.constant 0 : index
    %c0_7 = arith.constant 0 : index
    %8 = vector.load %arg6[%c0_5, %c0_6, %c0_7] : memref<1x1x32xf32, #tpu.memory_space<vmem>>, vector<1x1x32xf32>
    %9 = vector.shape_cast %8 : vector<1x1x32xf32> to vector<1x32xf32>
    %10 = vector.broadcast %9 : vector<1x32xf32> to vector<16x32xf32>
    %11 = arith.addf %7, %10 : vector<16x32xf32>
    %c0_8 = arith.constant 0 : index
    %c0_9 = arith.constant 0 : index
    %c0_10 = arith.constant 0 : index
    %12 = vector.load %arg7[%c0_8, %c0_9, %c0_10] : memref<1x32x32xbf16, #tpu.memory_space<vmem>>, vector<1x32x32xbf16>
    %13 = vector.shape_cast %12 : vector<1x32x32xbf16> to vector<32x32xbf16>
    %cst_11 = arith.constant dense<0.000000e+00> : vector<16x32xf32>
    %14 = tpu.matmul %4, %13, %cst_11 {dimension_numbers = #tpu.dot_dimension_numbers<[1], [0], [0], [1], [0, 0, 1, 1], [], []>} : vector<16x32xbf16>, vector<32x32xbf16>, vector<16x32xf32> -> vector<16x32xf32>
    %c0_12 = arith.constant 0 : index
    %c0_13 = arith.constant 0 : index
    %c0_14 = arith.constant 0 : index
    %15 = vector.load %arg8[%c0_12, %c0_13, %c0_14] : memref<1x1x32xf32, #tpu.memory_space<vmem>>, vector<1x1x32xf32>
    %16 = vector.shape_cast %15 : vector<1x1x32xf32> to vector<1x32xf32>
    %17 = vector.broadcast %16 : vector<1x32xf32> to vector<16x32xf32>
    %18 = arith.addf %14, %17 : vector<16x32xf32>
    %c0_15 = arith.constant 0 : index
    %c0_16 = arith.constant 0 : index
    %c0_17 = arith.constant 0 : index
    %19 = vector.load %arg9[%c0_15, %c0_16, %c0_17] : memref<1x32x32xbf16, #tpu.memory_space<vmem>>, vector<1x32x32xbf16>
    %20 = vector.shape_cast %19 : vector<1x32x32xbf16> to vector<32x32xbf16>
    %cst_18 = arith.constant dense<0.000000e+00> : vector<16x32xf32>
    %21 = tpu.matmul %4, %20, %cst_18 {dimension_numbers = #tpu.dot_dimension_numbers<[1], [0], [0], [1], [0, 0, 1, 1], [], []>} : vector<16x32xbf16>, vector<32x32xbf16>, vector<16x32xf32> -> vector<16x32xf32>
    %c0_19 = arith.constant 0 : index
    %c0_20 = arith.constant 0 : index
    %c0_21 = arith.constant 0 : index
    %22 = vector.load %arg10[%c0_19, %c0_20, %c0_21] : memref<1x1x32xf32, #tpu.memory_space<vmem>>, vector<1x1x32xf32>
    %23 = vector.shape_cast %22 : vector<1x1x32xf32> to vector<1x32xf32>
    %24 = vector.broadcast %23 : vector<1x32xf32> to vector<16x32xf32>
    %25 = arith.addf %21, %24 : vector<16x32xf32>
    %26 = vector.shape_cast %11 : vector<16x32xf32> to vector<2x8x32xf32>
    %27 = tpu.transpose %26, [0, 2, 1] : vector<2x8x32xf32> -> vector<2x32x8xf32>
    %28 = vector.shape_cast %27 : vector<2x32x8xf32> to vector<8x8x8xf32>
    %29 = tpu.transpose %28, [0, 2, 1] : vector<8x8x8xf32> -> vector<8x8x8xf32>
    %30 = vector.shape_cast %18 : vector<16x32xf32> to vector<2x8x32xf32>
    %31 = tpu.transpose %30, [0, 2, 1] : vector<2x8x32xf32> -> vector<2x32x8xf32>
    %32 = vector.shape_cast %31 : vector<2x32x8xf32> to vector<8x8x8xf32>
    %33 = tpu.transpose %32, [0, 2, 1] : vector<8x8x8xf32> -> vector<8x8x8xf32>
    %34 = vector.shape_cast %25 : vector<16x32xf32> to vector<2x8x32xf32>
    %35 = tpu.transpose %34, [0, 2, 1] : vector<2x8x32xf32> -> vector<2x32x8xf32>
    %36 = vector.shape_cast %35 : vector<2x32x8xf32> to vector<8x8x8xf32>
    %37 = arith.truncf %29 : vector<8x8x8xf32> to vector<8x8x8xbf16>
    %38 = arith.truncf %33 : vector<8x8x8xf32> to vector<8x8x8xbf16>
    "tpu.trace_start"() <{level = 10 : i32, message = "znd,zmd->znm"}> : () -> ()
    %cst_22 = arith.constant dense<0.000000e+00> : vector<8x8x8xf32>
    %39 = tpu.matmul %37, %38, %cst_22 {dimension_numbers = #tpu.dot_dimension_numbers<[2], [2], [1], [1], [0, 0, 0, 1, 1, 1], [0], [0]>} : vector<8x8x8xbf16>, vector<8x8x8xbf16>, vector<8x8x8xf32> -> vector<8x8x8xf32>
    "tpu.trace_stop"() : () -> ()
    %cst_23 = arith.constant dense<0xFF800000> : vector<8x8xf32>
    %40 = vector.multi_reduction <maximumf>, %39, %cst_23 [2] : vector<8x8x8xf32> to vector<8x8xf32>
    %41 = vector.shape_cast %40 : vector<8x8xf32> to vector<8x8x1xf32>
    %42 = vector.broadcast %41 : vector<8x8x1xf32> to vector<8x8x8xf32>
    %43 = arith.subf %39, %42 : vector<8x8x8xf32>
    %44 = math.exp %43 : vector<8x8x8xf32>
    %cst_24 = arith.constant dense<0.000000e+00> : vector<8x8xf32>
    %45 = vector.multi_reduction <add>, %44, %cst_24 [2] : vector<8x8x8xf32> to vector<8x8xf32>
    %46 = vector.shape_cast %45 : vector<8x8xf32> to vector<8x8x1xf32>
    %47 = arith.truncf %44 : vector<8x8x8xf32> to vector<8x8x8xbf16>
    %48 = arith.truncf %36 : vector<8x8x8xf32> to vector<8x8x8xbf16>
    "tpu.trace_start"() <{level = 10 : i32, message = "znm,zdm->znd"}> : () -> ()
    %cst_25 = arith.constant dense<0.000000e+00> : vector<8x8x8xf32>
    %49 = tpu.matmul %47, %48, %cst_25 {dimension_numbers = #tpu.dot_dimension_numbers<[2], [2], [1], [1], [0, 0, 0, 1, 1, 1], [0], [0]>} : vector<8x8x8xbf16>, vector<8x8x8xbf16>, vector<8x8x8xf32> -> vector<8x8x8xf32>
    "tpu.trace_stop"() : () -> ()
    %50 = tpu.reciprocal %46 {approx = true} : vector<8x8x1xf32> -> vector<8x8x1xf32>
    %51 = vector.broadcast %50 : vector<8x8x1xf32> to vector<8x8x8xf32>
    %52 = arith.mulf %49, %51 : vector<8x8x8xf32>
    %53 = tpu.transpose %52, [0, 2, 1] : vector<8x8x8xf32> -> vector<8x8x8xf32>
    %54 = vector.shape_cast %53 : vector<8x8x8xf32> to vector<2x32x8xf32>
    %55 = tpu.transpose %54, [0, 2, 1] : vector<2x32x8xf32> -> vector<2x8x32xf32>
    %56 = vector.shape_cast %55 : vector<2x8x32xf32> to vector<16x32xf32>
    %57 = arith.truncf %56 : vector<16x32xf32> to vector<16x32xbf16>
    %c0_26 = arith.constant 0 : index
    %c0_27 = arith.constant 0 : index
    %c0_28 = arith.constant 0 : index
    %58 = vector.load %arg11[%c0_26, %c0_27, %c0_28] : memref<1x32x32xbf16, #tpu.memory_space<vmem>>, vector<1x32x32xbf16>
    %59 = vector.shape_cast %58 : vector<1x32x32xbf16> to vector<32x32xbf16>
    %cst_29 = arith.constant dense<0.000000e+00> : vector<16x32xf32>
    %60 = tpu.matmul %57, %59, %cst_29 {dimension_numbers = #tpu.dot_dimension_numbers<[1], [0], [0], [1], [0, 0, 1, 1], [], []>} : vector<16x32xbf16>, vector<32x32xbf16>, vector<16x32xf32> -> vector<16x32xf32>
    %c0_30 = arith.constant 0 : index
    %c0_31 = arith.constant 0 : index
    %c0_32 = arith.constant 0 : index
    %61 = vector.load %arg12[%c0_30, %c0_31, %c0_32] : memref<1x1x32xf32, #tpu.memory_space<vmem>>, vector<1x1x32xf32>
    %62 = vector.shape_cast %61 : vector<1x1x32xf32> to vector<1x32xf32>
    %63 = vector.broadcast %62 : vector<1x32xf32> to vector<16x32xf32>
    %64 = arith.addf %60, %63 : vector<16x32xf32>
    %65 = arith.addf %3, %64 : vector<16x32xf32>
    %c0_33 = arith.constant 0 : index
    %c0_34 = arith.constant 0 : index
    %c0_35 = arith.constant 0 : index
    %66 = vector.load %arg13[%c0_33, %c0_34, %c0_35] : memref<1x1x32xf32, #tpu.memory_space<vmem>>, vector<1x1x32xf32>
    %67 = vector.shape_cast %66 : vector<1x1x32xf32> to vector<1x32xf32>
    %c0_36 = arith.constant 0 : index
    %c0_37 = arith.constant 0 : index
    %c0_38 = arith.constant 0 : index
    %68 = vector.load %arg14[%c0_36, %c0_37, %c0_38] : memref<1x1x32xf32, #tpu.memory_space<vmem>>, vector<1x1x32xf32>
    %69 = vector.shape_cast %68 : vector<1x1x32xf32> to vector<1x32xf32>
    %cst_39 = arith.constant dense<0.000000e+00> : vector<16xf32>
    %70 = vector.multi_reduction <add>, %65, %cst_39 [1] : vector<16x32xf32> to vector<16xf32>
    %71 = vector.shape_cast %70 : vector<16xf32> to vector<16x1xf32>
    %cst_40 = arith.constant 3.200000e+01 : f32
    %72 = vector.broadcast %cst_40 : f32 to vector<16x1xf32>
    %73 = arith.divf %71, %72 : vector<16x1xf32>
    %74 = vector.broadcast %73 : vector<16x1xf32> to vector<16x32xf32>
    %75 = arith.subf %65, %74 : vector<16x32xf32>
    %76 = arith.mulf %75, %75 : vector<16x32xf32>
    %cst_41 = arith.constant dense<0.000000e+00> : vector<16xf32>
    %77 = vector.multi_reduction <add>, %76, %cst_41 [1] : vector<16x32xf32> to vector<16xf32>
    %78 = vector.shape_cast %77 : vector<16xf32> to vector<16x1xf32>
    %cst_42 = arith.constant 3.200000e+01 : f32
    %79 = vector.broadcast %cst_42 : f32 to vector<16x1xf32>
    %80 = arith.divf %78, %79 : vector<16x1xf32>
    %81 = vector.broadcast %73 : vector<16x1xf32> to vector<16x32xf32>
    %82 = arith.subf %65, %81 : vector<16x32xf32>
    %cst_43 = arith.constant 9.99999974E-6 : f32
    %83 = vector.broadcast %cst_43 : f32 to vector<16x1xf32>
    %84 = arith.addf %80, %83 : vector<16x1xf32>
    %85 = math.rsqrt %84 : vector<16x1xf32>
    %86 = vector.broadcast %85 : vector<16x1xf32> to vector<16x32xf32>
    %87 = arith.mulf %82, %86 : vector<16x32xf32>
    %88 = vector.broadcast %67 : vector<1x32xf32> to vector<16x32xf32>
    %89 = arith.mulf %87, %88 : vector<16x32xf32>
    %90 = vector.broadcast %69 : vector<1x32xf32> to vector<16x32xf32>
    %91 = arith.addf %89, %90 : vector<16x32xf32>
    %92 = arith.truncf %91 : vector<16x32xf32> to vector<16x32xbf16>
    %c0_44 = arith.constant 0 : index
    %c0_45 = arith.constant 0 : index
    %c0_46 = arith.constant 0 : index
    %93 = vector.load %arg15[%c0_44, %c0_45, %c0_46] : memref<1x32x64xbf16, #tpu.memory_space<vmem>>, vector<1x32x64xbf16>
    %94 = vector.shape_cast %93 : vector<1x32x64xbf16> to vector<32x64xbf16>
    %cst_47 = arith.constant dense<0.000000e+00> : vector<16x64xf32>
    %95 = tpu.matmul %92, %94, %cst_47 {dimension_numbers = #tpu.dot_dimension_numbers<[1], [0], [0], [1], [0, 0, 1, 1], [], []>} : vector<16x32xbf16>, vector<32x64xbf16>, vector<16x64xf32> -> vector<16x64xf32>
    %c0_48 = arith.constant 0 : index
    %c0_49 = arith.constant 0 : index
    %c0_50 = arith.constant 0 : index
    %96 = vector.load %arg16[%c0_48, %c0_49, %c0_50] : memref<1x1x64xf32, #tpu.memory_space<vmem>>, vector<1x1x64xf32>
    %97 = vector.shape_cast %96 : vector<1x1x64xf32> to vector<1x64xf32>
    %98 = vector.broadcast %97 : vector<1x64xf32> to vector<16x64xf32>
    %99 = arith.addf %95, %98 : vector<16x64xf32>
    %100 = arith.truncf %99 : vector<16x64xf32> to vector<16x64xbf16>
    %cst_51 = arith.constant 0.000000e+00 : bf16
    %101 = vector.broadcast %cst_51 : bf16 to vector<16x64xbf16>
    %102 = arith.maximumf %100, %101 : vector<16x64xbf16>
    %c0_52 = arith.constant 0 : index
    %c0_53 = arith.constant 0 : index
    %c0_54 = arith.constant 0 : index
    %103 = vector.load %arg17[%c0_52, %c0_53, %c0_54] : memref<1x64x32xbf16, #tpu.memory_space<vmem>>, vector<1x64x32xbf16>
    %104 = vector.shape_cast %103 : vector<1x64x32xbf16> to vector<64x32xbf16>
    %cst_55 = arith.constant dense<0.000000e+00> : vector<16x32xf32>
    %105 = tpu.matmul %102, %104, %cst_55 {dimension_numbers = #tpu.dot_dimension_numbers<[1], [0], [0], [1], [0, 0, 1, 1], [], []>} : vector<16x64xbf16>, vector<64x32xbf16>, vector<16x32xf32> -> vector<16x32xf32>
    %c0_56 = arith.constant 0 : index
    %c0_57 = arith.constant 0 : index
    %c0_58 = arith.constant 0 : index
    %106 = vector.load %arg18[%c0_56, %c0_57, %c0_58] : memref<1x1x32xf32, #tpu.memory_space<vmem>>, vector<1x1x32xf32>
    %107 = vector.shape_cast %106 : vector<1x1x32xf32> to vector<1x32xf32>
    %108 = vector.broadcast %107 : vector<1x32xf32> to vector<16x32xf32>
    %109 = arith.addf %105, %108 : vector<16x32xf32>
    %110 = arith.addf %91, %109 : vector<16x32xf32>
    %c0_59 = arith.constant 0 : index
    %c0_60 = arith.constant 0 : index
    %c0_61 = arith.constant 0 : index
    %111 = vector.load %arg19[%c0_59, %c0_60, %c0_61] : memref<1x1x32xf32, #tpu.memory_space<vmem>>, vector<1x1x32xf32>
    %112 = vector.shape_cast %111 : vector<1x1x32xf32> to vector<1x32xf32>
    %c0_62 = arith.constant 0 : index
    %c0_63 = arith.constant 0 : index
    %c0_64 = arith.constant 0 : index
    %113 = vector.load %arg20[%c0_62, %c0_63, %c0_64] : memref<1x1x32xf32, #tpu.memory_space<vmem>>, vector<1x1x32xf32>
    %114 = vector.shape_cast %113 : vector<1x1x32xf32> to vector<1x32xf32>
    %cst_65 = arith.constant dense<0.000000e+00> : vector<16xf32>
    %115 = vector.multi_reduction <add>, %110, %cst_65 [1] : vector<16x32xf32> to vector<16xf32>
    %116 = vector.shape_cast %115 : vector<16xf32> to vector<16x1xf32>
    %cst_66 = arith.constant 3.200000e+01 : f32
    %117 = vector.broadcast %cst_66 : f32 to vector<16x1xf32>
    %118 = arith.divf %116, %117 : vector<16x1xf32>
    %119 = vector.broadcast %118 : vector<16x1xf32> to vector<16x32xf32>
    %120 = arith.subf %110, %119 : vector<16x32xf32>
    %121 = arith.mulf %120, %120 : vector<16x32xf32>
    %cst_67 = arith.constant dense<0.000000e+00> : vector<16xf32>
    %122 = vector.multi_reduction <add>, %121, %cst_67 [1] : vector<16x32xf32> to vector<16xf32>
    %123 = vector.shape_cast %122 : vector<16xf32> to vector<16x1xf32>
    %cst_68 = arith.constant 3.200000e+01 : f32
    %124 = vector.broadcast %cst_68 : f32 to vector<16x1xf32>
    %125 = arith.divf %123, %124 : vector<16x1xf32>
    %126 = vector.broadcast %118 : vector<16x1xf32> to vector<16x32xf32>
    %127 = arith.subf %110, %126 : vector<16x32xf32>
    %cst_69 = arith.constant 9.99999974E-6 : f32
    %128 = vector.broadcast %cst_69 : f32 to vector<16x1xf32>
    %129 = arith.addf %125, %128 : vector<16x1xf32>
    %130 = math.rsqrt %129 : vector<16x1xf32>
    %131 = vector.broadcast %130 : vector<16x1xf32> to vector<16x32xf32>
    %132 = arith.mulf %127, %131 : vector<16x32xf32>
    %133 = vector.broadcast %112 : vector<1x32xf32> to vector<16x32xf32>
    %134 = arith.mulf %132, %133 : vector<16x32xf32>
    %135 = vector.broadcast %114 : vector<1x32xf32> to vector<16x32xf32>
    %136 = arith.addf %134, %135 : vector<16x32xf32>
    %c0_70 = arith.constant 0 : index
    %c0_71 = arith.constant 0 : index
    %137 = vector.load %arg24[%c0_70, %c0_71] : memref<16x32xf32, #tpu.memory_space<vmem>>, vector<16x32xf32>
    tpu.vector_store %arg24[%c0_70, %c0_71], %136 {strides = array<i32>} : memref<16x32xf32, #tpu.memory_space<vmem>>, vector<16x32xf32>,
    %c1_i32 = arith.constant 1 : i32
    %138 = arith.cmpi eq, %arg1, %c1_i32 : i32
    %139 = arith.extui %138 : i1 to i32
    %c0_i32_72 = arith.constant 0 : i32
    %140 = arith.cmpi ne, %139, %c0_i32_72 : i32
    scf.if %140 {
      %c0_73 = arith.constant 0 : index
      %c0_74 = arith.constant 0 : index
      %141 = vector.load %arg24[%c0_73, %c0_74] : memref<16x32xf32, #tpu.memory_space<vmem>>, vector<16x32xf32>
      %142 = arith.truncf %141 : vector<16x32xf32> to vector<16x32xbf16>
      %c0_75 = arith.constant 0 : index
      %c0_76 = arith.constant 0 : index
      %143 = vector.load %arg21[%c0_75, %c0_76] : memref<32x128xbf16, #tpu.memory_space<vmem>>, vector<32x128xbf16>
      %cst_77 = arith.constant dense<0.000000e+00> : vector<16x128xf32>
      %144 = tpu.matmul %142, %143, %cst_77 {dimension_numbers = #tpu.dot_dimension_numbers<[1], [0], [0], [1], [0, 0, 1, 1], [], []>} : vector<16x32xbf16>, vector<32x128xbf16>, vector<16x128xf32> -> vector<16x128xf32>
      %c0_78 = arith.constant 0 : index
      %c0_79 = arith.constant 0 : index
      %145 = vector.load %arg22[%c0_78, %c0_79] : memref<1x128xf32, #tpu.memory_space<vmem>>, vector<1x128xf32>
      %146 = vector.broadcast %145 : vector<1x128xf32> to vector<16x128xf32>
      %147 = arith.addf %144, %146 : vector<16x128xf32>
      %148 = vector.shape_cast %147 : vector<16x128xf32> to vector<2x8x128xf32>
      %c0_80 = arith.constant 0 : index
      %c0_81 = arith.constant 0 : index
      %c0_82 = arith.constant 0 : index
      %149 = vector.load %arg26[%c0_80, %c0_81, %c0_82] : memref<2x8x1xf32, #tpu.memory_space<vmem>>, vector<2x8x1xf32>
      %150 = vector.broadcast %149 : vector<2x8x1xf32> to vector<2x8x128xf32>
      %151 = arith.mulf %148, %150 : vector<2x8x128xf32>
      %c0_83 = arith.constant 0 : index
      %c0_84 = arith.constant 0 : index
      %c0_85 = arith.constant 0 : index
      %152 = vector.load %arg25[%c0_83, %c0_84, %c0_85] : memref<2x8x1xf32, #tpu.memory_space<vmem>>, vector<2x8x1xf32>
      %153 = vector.broadcast %152 : vector<2x8x1xf32> to vector<2x8x128xf32>
      %154 = arith.addf %151, %153 : vector<2x8x128xf32>
      %c0_86 = arith.constant 0 : index
      %c0_87 = arith.constant 0 : index
      %c0_88 = arith.constant 0 : index
      %155 = vector.load %arg23[%c0_86, %c0_87, %c0_88] : memref<2x8x128xf32, #tpu.memory_space<vmem>>, vector<2x8x128xf32>
      tpu.vector_store %arg23[%c0_86, %c0_87, %c0_88], %154 {strides = array<i32>} : memref<2x8x128xf32, #tpu.memory_space<vmem>>, vector<2x8x128xf32>,
    } else {
    }
    return
  }
  func.func @transform_0(%arg0: i32, %arg1: i32) -> (i32, i32, i32) {
    %c0_i32 = arith.constant 0 : i32
    %c0_i32_0 = arith.constant 0 : i32
    %c0_i32_1 = arith.constant 0 : i32
    return %arg0, %c0_i32, %c0_i32_0 : i32, i32, i32
  }
  func.func @transform_1(%arg0: i32, %arg1: i32) -> (i32, i32) {
    %c0_i32 = arith.constant 0 : i32
    %c0_i32_0 = arith.constant 0 : i32
    %c0_i32_1 = arith.constant 0 : i32
    return %c0_i32, %c0_i32_0 : i32, i32
  }
  func.func @transform_2(%arg0: i32, %arg1: i32) -> (i32, i32) {
    %c0_i32 = arith.constant 0 : i32
    %c0_i32_0 = arith.constant 0 : i32
    %c0_i32_1 = arith.constant 0 : i32
    return %c0_i32, %c0_i32_0 : i32, i32
  }
  func.func @transform_3(%arg0: i32, %arg1: i32) -> (i32, i32, i32) {
    %c0_i32 = arith.constant 0 : i32
    %c0_i32_0 = arith.constant 0 : i32
    %c0_i32_1 = arith.constant 0 : i32
    return %arg1, %c0_i32, %c0_i32_0 : i32, i32, i32
  }
  func.func @transform_4(%arg0: i32, %arg1: i32) -> (i32, i32, i32) {
    %c0_i32 = arith.constant 0 : i32
    %c0_i32_0 = arith.constant 0 : i32
    %c0_i32_1 = arith.constant 0 : i32
    return %arg1, %c0_i32, %c0_i32_0 : i32, i32, i32
  }
  func.func @transform_5(%arg0: i32, %arg1: i32) -> (i32, i32, i32) {
    %c0_i32 = arith.constant 0 : i32
    %c0_i32_0 = arith.constant 0 : i32
    %c0_i32_1 = arith.constant 0 : i32
    return %arg1, %c0_i32, %c0_i32_0 : i32, i32, i32
  }
  func.func @transform_6(%arg0: i32, %arg1: i32) -> (i32, i32, i32) {
    %c0_i32 = arith.constant 0 : i32
    %c0_i32_0 = arith.constant 0 : i32
    %c0_i32_1 = arith.constant 0 : i32
    return %arg1, %c0_i32, %c0_i32_0 : i32, i32, i32
  }
  func.func @transform_7(%arg0: i32, %arg1: i32) -> (i32, i32, i32) {
    %c0_i32 = arith.constant 0 : i32
    %c0_i32_0 = arith.constant 0 : i32
    %c0_i32_1 = arith.constant 0 : i32
    return %arg1, %c0_i32, %c0_i32_0 : i32, i32, i32
  }
  func.func @transform_8(%arg0: i32, %arg1: i32) -> (i32, i32, i32) {
    %c0_i32 = arith.constant 0 : i32
    %c0_i32_0 = arith.constant 0 : i32
    %c0_i32_1 = arith.constant 0 : i32
    return %arg1, %c0_i32, %c0_i32_0 : i32, i32, i32
  }
  func.func @transform_9(%arg0: i32, %arg1: i32) -> (i32, i32, i32) {
    %c0_i32 = arith.constant 0 : i32
    %c0_i32_0 = arith.constant 0 : i32
    %c0_i32_1 = arith.constant 0 : i32
    return %arg1, %c0_i32, %c0_i32_0 : i32, i32, i32
  }
  func.func @transform_10(%arg0: i32, %arg1: i32) -> (i32, i32, i32) {
    %c0_i32 = arith.constant 0 : i32
    %c0_i32_0 = arith.constant 0 : i32
    %c0_i32_1 = arith.constant 0 : i32
    return %arg1, %c0_i32, %c0_i32_0 : i32, i32, i32
  }
  func.func @transform_11(%arg0: i32, %arg1: i32) -> (i32, i32, i32) {
    %c0_i32 = arith.constant 0 : i32
    %c0_i32_0 = arith.constant 0 : i32
    %c0_i32_1 = arith.constant 0 : i32
    return %arg1, %c0_i32, %c0_i32_0 : i32, i32, i32
  }
  func.func @transform_12(%arg0: i32, %arg1: i32) -> (i32, i32, i32) {
    %c0_i32 = arith.constant 0 : i32
    %c0_i32_0 = arith.constant 0 : i32
    %c0_i32_1 = arith.constant 0 : i32
    return %arg1, %c0_i32, %c0_i32_0 : i32, i32, i32
  }
  func.func @transform_13(%arg0: i32, %arg1: i32) -> (i32, i32, i32) {
    %c0_i32 = arith.constant 0 : i32
    %c0_i32_0 = arith.constant 0 : i32
    %c0_i32_1 = arith.constant 0 : i32
    return %arg1, %c0_i32, %c0_i32_0 : i32, i32, i32
  }
  func.func @transform_14(%arg0: i32, %arg1: i32) -> (i32, i32, i32) {
    %c0_i32 = arith.constant 0 : i32
    %c0_i32_0 = arith.constant 0 : i32
    %c0_i32_1 = arith.constant 0 : i32
    return %arg1, %c0_i32, %c0_i32_0 : i32, i32, i32
  }
  func.func @transform_15(%arg0: i32, %arg1: i32) -> (i32, i32, i32) {
    %c0_i32 = arith.constant 0 : i32
    %c0_i32_0 = arith.constant 0 : i32
    %c0_i32_1 = arith.constant 0 : i32
    return %arg1, %c0_i32, %c0_i32_0 : i32, i32, i32
  }
  func.func @transform_16(%arg0: i32, %arg1: i32) -> (i32, i32, i32) {
    %c0_i32 = arith.constant 0 : i32
    %c0_i32_0 = arith.constant 0 : i32
    %c0_i32_1 = arith.constant 0 : i32
    return %arg1, %c0_i32, %c0_i32_0 : i32, i32, i32
  }
  func.func @transform_17(%arg0: i32, %arg1: i32) -> (i32, i32, i32) {
    %c0_i32 = arith.constant 0 : i32
    %c0_i32_0 = arith.constant 0 : i32
    %c0_i32_1 = arith.constant 0 : i32
    return %arg1, %c0_i32, %c0_i32_0 : i32, i32, i32
  }
  func.func @transform_18(%arg0: i32, %arg1: i32) -> (i32, i32, i32) {
    %c0_i32 = arith.constant 0 : i32
    %c0_i32_0 = arith.constant 0 : i32
    %c0_i32_1 = arith.constant 0 : i32
    return %arg1, %c0_i32, %c0_i32_0 : i32, i32, i32
  }
  func.func @transform_19(%arg0: i32, %arg1: i32) -> (i32, i32) {
    %c0_i32 = arith.constant 0 : i32
    %c0_i32_0 = arith.constant 0 : i32
    %c0_i32_1 = arith.constant 0 : i32
    return %c0_i32, %c0_i32_0 : i32, i32
  }
  func.func @transform_20(%arg0: i32, %arg1: i32) -> (i32, i32) {
    %c0_i32 = arith.constant 0 : i32
    %c0_i32_0 = arith.constant 0 : i32
    %c0_i32_1 = arith.constant 0 : i32
    return %c0_i32, %c0_i32_0 : i32, i32
  }
  func.func @transform_21(%arg0: i32, %arg1: i32) -> (i32, i32, i32) {
    %c0_i32 = arith.constant 0 : i32
    %c0_i32_0 = arith.constant 0 : i32
    %c0_i32_1 = arith.constant 0 : i32
    return %arg0, %c0_i32, %c0_i32_0 : i32, i32, i32
  }
}

</mosaic_0001>

<llo_original>
// kernel: tpu_custom_call.1
$region0: #{tpu_custom_call.1}
  #allocation0 [shape = 'u32[]', space=smem, size = 0x4, offset = 0x4, fixed_abs, tag = 'smem constant byte address 0x4 - core index']
  #allocation1 [shape = 'u32[144,128]{1,0:T(1,128)}', space=vmem, size = 0x12000, scoped, tag = 'internal scratch']
  #allocation2 [shape = 'f32[16,32]{1,0:T(8,128)}', space=vmem, size = 0x2000, scoped, tag = 'scratch operand']
  #allocation3 [shape = 'f32[2,8,1]{2,1,0:T(8,128)}', space=vmem, size = 0x2000, scoped, tag = 'scratch operand']
  #allocation4 [shape = 'f32[2,8,1]{2,1,0:T(8,128)}', space=vmem, size = 0x2000, scoped, tag = 'scratch operand']
  %s0 = inlined_call_operand.vmem [shape: f32[4,8,16], index: 0, kind: input, shape index: {}]
  %s1 = inlined_call_operand.hbm [shape: bf16[16,32], index: 1, kind: input, shape index: {}]
  %s2 = inlined_call_operand.hbm [shape: f32[1,32], index: 2, kind: input, shape index: {}]
  %s3 = inlined_call_operand.vmem [shape: bf16[2,32,32], index: 3, kind: input, shape index: {}]
  %s4 = inlined_call_operand.hbm [shape: f32[2,1,32], index: 4, kind: input, shape index: {}]
  %s5 = inlined_call_operand.vmem [shape: bf16[2,32,32], index: 5, kind: input, shape index: {}]
  %s6 = inlined_call_operand.hbm [shape: f32[2,1,32], index: 6, kind: input, shape index: {}]
  %s7 = inlined_call_operand.hbm [shape: bf16[2,32,32], index: 7, kind: input, shape index: {}]
  %s8 = inlined_call_operand.hbm [shape: f32[2,1,32], index: 8, kind: input, shape index: {}]
  %s9 = inlined_call_operand.hbm [shape: bf16[2,32,32], index: 9, kind: input, shape index: {}]
  %s10 = inlined_call_operand.vmem [shape: f32[2,1,32], index: 10, kind: input, shape index: {}]
  %s11 = inlined_call_operand.vmem [shape: f32[2,1,32], index: 11, kind: input, shape index: {}]
  %s12 = inlined_call_operand.hbm [shape: f32[2,1,32], index: 12, kind: input, shape index: {}]
  %s13 = inlined_call_operand.hbm [shape: bf16[2,32,64], index: 13, kind: input, shape index: {}]
  %s14 = inlined_call_operand.vmem [shape: f32[2,1,64], index: 14, kind: input, shape index: {}]
  %s15 = inlined_call_operand.vmem [shape: bf16[2,64,32], index: 15, kind: input, shape index: {}]
  %s16 = inlined_call_operand.vmem [shape: f32[2,1,32], index: 16, kind: input, shape index: {}]
  %s17 = inlined_call_operand.vmem [shape: f32[2,1,32], index: 17, kind: input, shape index: {}]
  %s18 = inlined_call_operand.vmem [shape: f32[2,1,32], index: 18, kind: input, shape index: {}]
  %s19 = inlined_call_operand.vmem [shape: bf16[32,128], index: 19, kind: input, shape index: {}]
  %s20 = inlined_call_operand.vmem [shape: f32[1,128], index: 20, kind: input, shape index: {}]
  %s21 = inlined_call_operand.hbm [shape: f32[4,8,128], index: 21, kind: output, shape index: {}]
  %s22 = sld [smem:[#allocation0]]
  $region161: #{tpu_custom_call.1} parent=0
    _
  %s24 = ssub.s32 1, %s22
  %s25 = scalar_select 0, %s24, %s22
  $region1: #{tpu_custom_call.1} parent=0
    #allocation5 [shape = 'u8[4096]{0}', space=vmem, size = 0x1000, scoped, tag = 'input window, operand 1, single buffered']
    #allocation6 [shape = 's32[2]{0}', space=sflag, size = 0x8, scoped, tag = 'scoped memory for tpu_custom_call.1']
    #allocation7 [shape = 's32[2]{0}', space=sflag, size = 0x8, scoped, tag = 'scoped memory for tpu_custom_call.1']
    #allocation8 [shape = 'u8[512]{0}', space=vmem, size = 0x400, scoped, tag = 'input window, operand 2, single buffered']
    #allocation9 [shape = 's32[1]{0}', space=sflag, size = 0x4, scoped, tag = 'scoped memory for tpu_custom_call.1']
    #allocation10 [shape = 'u8[1024]{0}', space=vmem, size = 0x400, scoped, tag = 'input window, operand 4']
    #allocation11 [shape = 'u8[1024]{0}', space=vmem, size = 0x400, scoped, tag = 'input window, operand 6']
    #allocation12 [shape = 'u8[16384]{0}', space=vmem, size = 0x4000, scoped, tag = 'input window, operand 7']
    #allocation13 [shape = 'u8[1024]{0}', space=vmem, size = 0x400, scoped, tag = 'input window, operand 8']
    #allocation14 [shape = 'u8[16384]{0}', space=vmem, size = 0x4000, scoped, tag = 'input window, operand 9']
    #allocation15 [shape = 'u8[1024]{0}', space=vmem, size = 0x400, scoped, tag = 'input window, operand 12']
    #allocation16 [shape = 'u8[16384]{0}', space=vmem, size = 0x4000, scoped, tag = 'input window, operand 13']
    #allocation17 [shape = 'u8[16384]{0}', space=vmem, size = 0x4000, scoped, tag = 'output window, operand 0']
    %26 = vsyncpa [#allocation6], 0
    %27 = vsyncpa [#allocation9], 0
    %28 = vsyncpa [#allocation7], 0
    %s29 = scalar_lea.sflag [#allocation7], 1
    %30 = vsyncpa %s29, 0
    loop: start=0, step=1, limit=6
    $region2: #{tpu_custom_call.1} parent=1 // loop_pre_header
      _
    $region3: #{tpu_custom_call.1} parent=1 // loop_header
      %s32 = sphi 0, %s36
      %p33 = scmp.ge.s32.totalorder %s32, 6
      %s39 = sphi 0, %s51
      %s40 = sphi 0, %s47
      %s41 = sphi 0, %s39
      %s42 = sphi 0, %s40
      %s43 = sphi 0, %s41
      %s44 = sphi 0, %s42
      %s54 = sphi 0, %s56
      %s57 = sphi 0, %s54
      %s58 = sphi 0, %s57
      %s74 = sphi 0, %s58
      %s78 = sphi 0, %s78
      %s80 = sphi 0, %s78
      %s81 = sphi 0, %s80
      %s95 = sphi 0, %s81
      %s99 = sphi 0, %s99
      %s101 = sphi 0, %s99
      %s102 = sphi 0, %s101
      %s116 = sphi 0, %s102
      %s122 = sphi 0, %s124
      %s125 = sphi 0, %s122
      %s126 = sphi 0, %s125
      %s142 = sphi 0, %s126
      %s148 = sphi 0, %s150
      %s151 = sphi 0, %s148
      %s152 = sphi 0, %s151
      %s168 = sphi 0, %s152
      %s174 = sphi 0, %s176
      %s177 = sphi 0, %s174
      %s178 = sphi 0, %s177
      %s194 = sphi 0, %s178
      %s200 = sphi 0, %s202
      %s203 = sphi 0, %s200
      %s204 = sphi 0, %s203
      %s220 = sphi 0, %s204
      %s226 = sphi 0, %s228
      %s229 = sphi 0, %s226
      %s230 = sphi 0, %s229
      %s246 = sphi 0, %s230
      %s252 = sphi 0, %s254
      %s255 = sphi 0, %s252
      %s256 = sphi 0, %s255
      %s272 = sphi 0, %s256
      %s278 = sphi 0, %s280
      %s281 = sphi 0, %s278
      %s282 = sphi 0, %s281
      %s298 = sphi 0, %s282
      %s304 = sphi 0, %s306
      %s307 = sphi 0, %s304
      %s308 = sphi 0, %s307
      %s324 = sphi 0, %s308
      %s330 = sphi 0, %s332
      %s333 = sphi 0, %s330
      %s334 = sphi 0, %s333
      %s350 = sphi 0, %s334
      %s356 = sphi 0, %s358
      %s359 = sphi 0, %s356
      %s360 = sphi 0, %s359
      %s376 = sphi 0, %s360
      %s382 = sphi 0, %s384
      %s385 = sphi 0, %s382
      %s386 = sphi 0, %s385
      %s402 = sphi 0, %s386
      %s408 = sphi 0, %s410
      %s411 = sphi 0, %s408
      %s412 = sphi 0, %s411
      %s428 = sphi 0, %s412
      %s434 = sphi 0, %s436
      %s437 = sphi 0, %s434
      %s438 = sphi 0, %s437
      %s454 = sphi 0, %s438
      %s460 = sphi 0, %s462
      %s463 = sphi 0, %s460
      %s464 = sphi 0, %s463
      %s480 = sphi 0, %s464
      %s486 = sphi 0, %s488
      %s489 = sphi 0, %s486
      %s490 = sphi 0, %s489
      %s506 = sphi 0, %s490
      %s512 = sphi 0, %s514
      %s515 = sphi 0, %s512
      %s516 = sphi 0, %s515
      %s532 = sphi 0, %s516
      %s536 = sphi 0, %s536
      %s538 = sphi 0, %s536
      %s539 = sphi 0, %s538
      %s553 = sphi 0, %s539
      %s557 = sphi 0, %s557
      %s559 = sphi 0, %s557
      %s560 = sphi 0, %s559
      %s574 = sphi 0, %s560
      %s580 = sphi 0, %s582
      %s583 = sphi 0, %s580
      %s584 = sphi 0, %s583
      %s600 = sphi 0, %s584
    $region4: #{tpu_custom_call.1} parent=1 // loop_header_branch
      %35 = sbr.rel (%p33) target = $region8
    $region5: #{tpu_custom_call.1} parent=1 // loop_body
      %s37 = ssub.s32 %s32, 1
      %s38 = ssub.s32 %s32, 2
      %s45 = sadd.s32 1, %s40
      %p46 = scmp.ge.s32.totalorder %s45, 2
      %s47 = scalar_select %p46, 0, %s45
      %s48 = sadd.s32 1, %s39
      %s49 = scalar_select %p46, %s48, %s39
      %p50 = scmp.ge.s32.totalorder %s49, 2
      %s51 = scalar_select %p50, 0, %s49
      %s52 = ssub.s32 %s39, %s51
      %p53 = scmp.eq.s32.totalorder %s52, 0
      %s55 = sadd.s32 %s54, 1
      %s56 = scalar_select %p53, %s54, %s55
      %p59 = pneg %p53
      %p60 = scmp.eq.s32.totalorder %s32, 3
      %p61 = por %p59, %p60
      %p62 = scmp.ne.s32.totalorder %s54, %s57
      %p63 = scmp.eq.s32.totalorder %s32, 0
      %p64 = por %p62, %p63
      %p65 = scmp.ne.s32.totalorder %s54, %s57
      %p66 = scmp.eq.s32.totalorder %s37, 3
      %p67 = por %p65, %p66
      %p68 = scmp.ne.s32.totalorder %s57, %s58
      %p69 = scmp.eq.s32.totalorder %s37, 0
      %p70 = por %p68, %p69
      %p71 = scmp.ne.s32.totalorder %s57, %s58
      %p72 = scmp.eq.s32.totalorder %s38, 3
      %p73 = por %p71, %p72
      %p75 = scmp.ne.s32.totalorder %s58, %s74
      %p76 = scmp.eq.s32.totalorder %s38, 0
      %p77 = por %p75, %p76
      %s79 = sadd.s32 %s78, 1
      %p82 = scmp.eq.s32.totalorder %s32, 3
      %p83 = scmp.ne.s32.totalorder %s78, %s80
      %p84 = scmp.eq.s32.totalorder %s32, 0
      %p85 = por %p83, %p84
      %p86 = scmp.ne.s32.totalorder %s78, %s80
      %p87 = scmp.eq.s32.totalorder %s37, 3
      %p88 = por %p86, %p87
      %p89 = scmp.ne.s32.totalorder %s80, %s81
      %p90 = scmp.eq.s32.totalorder %s37, 0
      %p91 = por %p89, %p90
      %p92 = scmp.ne.s32.totalorder %s80, %s81
      %p93 = scmp.eq.s32.totalorder %s38, 3
      %p94 = por %p92, %p93
      %p96 = scmp.ne.s32.totalorder %s81, %s95
      %p97 = scmp.eq.s32.totalorder %s38, 0
      %p98 = por %p96, %p97
      %s100 = sadd.s32 %s99, 1
      %p103 = scmp.eq.s32.totalorder %s32, 3
      %p104 = scmp.ne.s32.totalorder %s99, %s101
      %p105 = scmp.eq.s32.totalorder %s32, 0
      %p106 = por %p104, %p105
      %p107 = scmp.ne.s32.totalorder %s99, %s101
      %p108 = scmp.eq.s32.totalorder %s37, 3
      %p109 = por %p107, %p108
      %p110 = scmp.ne.s32.totalorder %s101, %s102
      %p111 = scmp.eq.s32.totalorder %s37, 0
      %p112 = por %p110, %p111
      %p113 = scmp.ne.s32.totalorder %s101, %s102
      %p114 = scmp.eq.s32.totalorder %s38, 3
      %p115 = por %p113, %p114
      %p117 = scmp.ne.s32.totalorder %s102, %s116
      %p118 = scmp.eq.s32.totalorder %s38, 0
      %p119 = por %p117, %p118
      %s120 = ssub.s32 %s40, %s47
      %p121 = scmp.eq.s32.totalorder %s120, 0
      %s123 = sadd.s32 %s122, 1
      %s124 = scalar_select %p121, %s122, %s123
      %p127 = pneg %p121
      %p128 = scmp.eq.s32.totalorder %s32, 3
      %p129 = por %p127, %p128
      %p130 = scmp.ne.s32.totalorder %s122, %s125
      %p131 = scmp.eq.s32.totalorder %s32, 0
      %p132 = por %p130, %p131
      %p133 = scmp.ne.s32.totalorder %s122, %s125
      %p134 = scmp.eq.s32.totalorder %s37, 3
      %p135 = por %p133, %p134
      %p136 = scmp.ne.s32.totalorder %s125, %s126
      %p137 = scmp.eq.s32.totalorder %s37, 0
      %p138 = por %p136, %p137
      %p139 = scmp.ne.s32.totalorder %s125, %s126
      %p140 = scmp.eq.s32.totalorder %s38, 3
      %p141 = por %p139, %p140
      %p143 = scmp.ne.s32.totalorder %s126, %s142
      %p144 = scmp.eq.s32.totalorder %s38, 0
      %p145 = por %p143, %p144
      %s146 = ssub.s32 %s40, %s47
      %p147 = scmp.eq.s32.totalorder %s146, 0
      %s149 = sadd.s32 %s148, 1
      %s150 = scalar_select %p147, %s148, %s149
      %p153 = pneg %p147
      %p154 = scmp.eq.s32.totalorder %s32, 3
      %p155 = por %p153, %p154
      %p156 = scmp.ne.s32.totalorder %s148, %s151
      %p157 = scmp.eq.s32.totalorder %s32, 0
      %p158 = por %p156, %p157
      %p159 = scmp.ne.s32.totalorder %s148, %s151
      %p160 = scmp.eq.s32.totalorder %s37, 3
      %p161 = por %p159, %p160
      %p162 = scmp.ne.s32.totalorder %s151, %s152
      %p163 = scmp.eq.s32.totalorder %s37, 0
      %p164 = por %p162, %p163
      %p165 = scmp.ne.s32.totalorder %s151, %s152
      %p166 = scmp.eq.s32.totalorder %s38, 3
      %p167 = por %p165, %p166
      %p169 = scmp.ne.s32.totalorder %s152, %s168
      %p170 = scmp.eq.s32.totalorder %s38, 0
      %p171 = por %p169, %p170
      %s172 = ssub.s32 %s40, %s47
      %p173 = scmp.eq.s32.totalorder %s172, 0
      %s175 = sadd.s32 %s174, 1
      %s176 = scalar_select %p173, %s174, %s175
      %p179 = pneg %p173
      %p180 = scmp.eq.s32.totalorder %s32, 3
      %p181 = por %p179, %p180
      %p182 = scmp.ne.s32.totalorder %s174, %s177
      %p183 = scmp.eq.s32.totalorder %s32, 0
      %p184 = por %p182, %p183
      %p185 = scmp.ne.s32.totalorder %s174, %s177
      %p186 = scmp.eq.s32.totalorder %s37, 3
      %p187 = por %p185, %p186
      %p188 = scmp.ne.s32.totalorder %s177, %s178
      %p189 = scmp.eq.s32.totalorder %s37, 0
      %p190 = por %p188, %p189
      %p191 = scmp.ne.s32.totalorder %s177, %s178
      %p192 = scmp.eq.s32.totalorder %s38, 3
      %p193 = por %p191, %p192
      %p195 = scmp.ne.s32.totalorder %s178, %s194
      %p196 = scmp.eq.s32.totalorder %s38, 0
      %p197 = por %p195, %p196
      %s198 = ssub.s32 %s40, %s47
      %p199 = scmp.eq.s32.totalorder %s198, 0
      %s201 = sadd.s32 %s200, 1
      %s202 = scalar_select %p199, %s200, %s201
      %p205 = pneg %p199
      %p206 = scmp.eq.s32.totalorder %s32, 3
      %p207 = por %p205, %p206
      %p208 = scmp.ne.s32.totalorder %s200, %s203
      %p209 = scmp.eq.s32.totalorder %s32, 0
      %p210 = por %p208, %p209
      %p211 = scmp.ne.s32.totalorder %s200, %s203
      %p212 = scmp.eq.s32.totalorder %s37, 3
      %p213 = por %p211, %p212
      %p214 = scmp.ne.s32.totalorder %s203, %s204
      %p215 = scmp.eq.s32.totalorder %s37, 0
      %p216 = por %p214, %p215
      %p217 = scmp.ne.s32.totalorder %s203, %s204
      %p218 = scmp.eq.s32.totalorder %s38, 3
      %p219 = por %p217, %p218
      %p221 = scmp.ne.s32.totalorder %s204, %s220
      %p222 = scmp.eq.s32.totalorder %s38, 0
      %p223 = por %p221, %p222
      %s224 = ssub.s32 %s40, %s47
      %p225 = scmp.eq.s32.totalorder %s224, 0
      %s227 = sadd.s32 %s226, 1
      %s228 = scalar_select %p225, %s226, %s227
      %p231 = pneg %p225
      %p232 = scmp.eq.s32.totalorder %s32, 3
      %p233 = por %p231, %p232
      %p234 = scmp.ne.s32.totalorder %s226, %s229
      %p235 = scmp.eq.s32.totalorder %s32, 0
      %p236 = por %p234, %p235
      %p237 = scmp.ne.s32.totalorder %s226, %s229
      %p238 = scmp.eq.s32.totalorder %s37, 3
      %p239 = por %p237, %p238
      %p240 = scmp.ne.s32.totalorder %s229, %s230
      %p241 = scmp.eq.s32.totalorder %s37, 0
      %p242 = por %p240, %p241
      %p243 = scmp.ne.s32.totalorder %s229, %s230
      %p244 = scmp.eq.s32.totalorder %s38, 3
      %p245 = por %p243, %p244
      %p247 = scmp.ne.s32.totalorder %s230, %s246
      %p248 = scmp.eq.s32.totalorder %s38, 0
      %p249 = por %p247, %p248
      %s250 = ssub.s32 %s40, %s47
      %p251 = scmp.eq.s32.totalorder %s250, 0
      %s253 = sadd.s32 %s252, 1
      %s254 = scalar_select %p251, %s252, %s253
      %p257 = pneg %p251
      %p258 = scmp.eq.s32.totalorder %s32, 3
      %p259 = por %p257, %p258
      %p260 = scmp.ne.s32.totalorder %s252, %s255
      %p261 = scmp.eq.s32.totalorder %s32, 0
      %p262 = por %p260, %p261
      %p263 = scmp.ne.s32.totalorder %s252, %s255
      %p264 = scmp.eq.s32.totalorder %s37, 3
      %p265 = por %p263, %p264
      %p266 = scmp.ne.s32.totalorder %s255, %s256
      %p267 = scmp.eq.s32.totalorder %s37, 0
      %p268 = por %p266, %p267
      %p269 = scmp.ne.s32.totalorder %s255, %s256
      %p270 = scmp.eq.s32.totalorder %s38, 3
      %p271 = por %p269, %p270
      %p273 = scmp.ne.s32.totalorder %s256, %s272
      %p274 = scmp.eq.s32.totalorder %s38, 0
      %p275 = por %p273, %p274
      %s276 = ssub.s32 %s40, %s47
      %p277 = scmp.eq.s32.totalorder %s276, 0
      %s279 = sadd.s32 %s278, 1
      %s280 = scalar_select %p277, %s278, %s279
      %p283 = pneg %p277
      %p284 = scmp.eq.s32.totalorder %s32, 3
      %p285 = por %p283, %p284
      %p286 = scmp.ne.s32.totalorder %s278, %s281
      %p287 = scmp.eq.s32.totalorder %s32, 0
      %p288 = por %p286, %p287
      %p289 = scmp.ne.s32.totalorder %s278, %s281
      %p290 = scmp.eq.s32.totalorder %s37, 3
      %p291 = por %p289, %p290
      %p292 = scmp.ne.s32.totalorder %s281, %s282
      %p293 = scmp.eq.s32.totalorder %s37, 0
      %p294 = por %p292, %p293
      %p295 = scmp.ne.s32.totalorder %s281, %s282
      %p296 = scmp.eq.s32.totalorder %s38, 3
      %p297 = por %p295, %p296
      %p299 = scmp.ne.s32.totalorder %s282, %s298
      %p300 = scmp.eq.s32.totalorder %s38, 0
      %p301 = por %p299, %p300
      %s302 = ssub.s32 %s40, %s47
      %p303 = scmp.eq.s32.totalorder %s302, 0
      %s305 = sadd.s32 %s304, 1
      %s306 = scalar_select %p303, %s304, %s305
      %p309 = pneg %p303
      %p310 = scmp.eq.s32.totalorder %s32, 3
      %p311 = por %p309, %p310
      %p312 = scmp.ne.s32.totalorder %s304, %s307
      %p313 = scmp.eq.s32.totalorder %s32, 0
      %p314 = por %p312, %p313
      %p315 = scmp.ne.s32.totalorder %s304, %s307
      %p316 = scmp.eq.s32.totalorder %s37, 3
      %p317 = por %p315, %p316
      %p318 = scmp.ne.s32.totalorder %s307, %s308
      %p319 = scmp.eq.s32.totalorder %s37, 0
      %p320 = por %p318, %p319
      %p321 = scmp.ne.s32.totalorder %s307, %s308
      %p322 = scmp.eq.s32.totalorder %s38, 3
      %p323 = por %p321, %p322
      %p325 = scmp.ne.s32.totalorder %s308, %s324
      %p326 = scmp.eq.s32.totalorder %s38, 0
      %p327 = por %p325, %p326
      %s328 = ssub.s32 %s40, %s47
      %p329 = scmp.eq.s32.totalorder %s328, 0
      %s331 = sadd.s32 %s330, 1
      %s332 = scalar_select %p329, %s330, %s331
      %p335 = pneg %p329
      %p336 = scmp.eq.s32.totalorder %s32, 3
      %p337 = por %p335, %p336
      %p338 = scmp.ne.s32.totalorder %s330, %s333
      %p339 = scmp.eq.s32.totalorder %s32, 0
      %p340 = por %p338, %p339
      %p341 = scmp.ne.s32.totalorder %s330, %s333
      %p342 = scmp.eq.s32.totalorder %s37, 3
      %p343 = por %p341, %p342
      %p344 = scmp.ne.s32.totalorder %s333, %s334
      %p345 = scmp.eq.s32.totalorder %s37, 0
      %p346 = por %p344, %p345
      %p347 = scmp.ne.s32.totalorder %s333, %s334
      %p348 = scmp.eq.s32.totalorder %s38, 3
      %p349 = por %p347, %p348
      %p351 = scmp.ne.s32.totalorder %s334, %s350
      %p352 = scmp.eq.s32.totalorder %s38, 0
      %p353 = por %p351, %p352
      %s354 = ssub.s32 %s40, %s47
      %p355 = scmp.eq.s32.totalorder %s354, 0
      %s357 = sadd.s32 %s356, 1
      %s358 = scalar_select %p355, %s356, %s357
      %p361 = pneg %p355
      %p362 = scmp.eq.s32.totalorder %s32, 3
      %p363 = por %p361, %p362
      %p364 = scmp.ne.s32.totalorder %s356, %s359
      %p365 = scmp.eq.s32.totalorder %s32, 0
      %p366 = por %p364, %p365
      %p367 = scmp.ne.s32.totalorder %s356, %s359
      %p368 = scmp.eq.s32.totalorder %s37, 3
      %p369 = por %p367, %p368
      %p370 = scmp.ne.s32.totalorder %s359, %s360
      %p371 = scmp.eq.s32.totalorder %s37, 0
      %p372 = por %p370, %p371
      %p373 = scmp.ne.s32.totalorder %s359, %s360
      %p374 = scmp.eq.s32.totalorder %s38, 3
      %p375 = por %p373, %p374
      %p377 = scmp.ne.s32.totalorder %s360, %s376
      %p378 = scmp.eq.s32.totalorder %s38, 0
      %p379 = por %p377, %p378
      %s380 = ssub.s32 %s40, %s47
      %p381 = scmp.eq.s32.totalorder %s380, 0
      %s383 = sadd.s32 %s382, 1
      %s384 = scalar_select %p381, %s382, %s383
      %p387 = pneg %p381
      %p388 = scmp.eq.s32.totalorder %s32, 3
      %p389 = por %p387, %p388
      %p390 = scmp.ne.s32.totalorder %s382, %s385
      %p391 = scmp.eq.s32.totalorder %s32, 0
      %p392 = por %p390, %p391
      %p393 = scmp.ne.s32.totalorder %s382, %s385
      %p394 = scmp.eq.s32.totalorder %s37, 3
      %p395 = por %p393, %p394
      %p396 = scmp.ne.s32.totalorder %s385, %s386
      %p397 = scmp.eq.s32.totalorder %s37, 0
      %p398 = por %p396, %p397
      %p399 = scmp.ne.s32.totalorder %s385, %s386
      %p400 = scmp.eq.s32.totalorder %s38, 3
      %p401 = por %p399, %p400
      %p403 = scmp.ne.s32.totalorder %s386, %s402
      %p404 = scmp.eq.s32.totalorder %s38, 0
      %p405 = por %p403, %p404
      %s406 = ssub.s32 %s40, %s47
      %p407 = scmp.eq.s32.totalorder %s406, 0
      %s409 = sadd.s32 %s408, 1
      %s410 = scalar_select %p407, %s408, %s409
      %p413 = pneg %p407
      %p414 = scmp.eq.s32.totalorder %s32, 3
      %p415 = por %p413, %p414
      %p416 = scmp.ne.s32.totalorder %s408, %s411
      %p417 = scmp.eq.s32.totalorder %s32, 0
      %p418 = por %p416, %p417
      %p419 = scmp.ne.s32.totalorder %s408, %s411
      %p420 = scmp.eq.s32.totalorder %s37, 3
      %p421 = por %p419, %p420
      %p422 = scmp.ne.s32.totalorder %s411, %s412
      %p423 = scmp.eq.s32.totalorder %s37, 0
      %p424 = por %p422, %p423
      %p425 = scmp.ne.s32.totalorder %s411, %s412
      %p426 = scmp.eq.s32.totalorder %s38, 3
      %p427 = por %p425, %p426
      %p429 = scmp.ne.s32.totalorder %s412, %s428
      %p430 = scmp.eq.s32.totalorder %s38, 0
      %p431 = por %p429, %p430
      %s432 = ssub.s32 %s40, %s47
      %p433 = scmp.eq.s32.totalorder %s432, 0
      %s435 = sadd.s32 %s434, 1
      %s436 = scalar_select %p433, %s434, %s435
      %p439 = pneg %p433
      %p440 = scmp.eq.s32.totalorder %s32, 3
      %p441 = por %p439, %p440
      %p442 = scmp.ne.s32.totalorder %s434, %s437
      %p443 = scmp.eq.s32.totalorder %s32, 0
      %p444 = por %p442, %p443
      %p445 = scmp.ne.s32.totalorder %s434, %s437
      %p446 = scmp.eq.s32.totalorder %s37, 3
      %p447 = por %p445, %p446
      %p448 = scmp.ne.s32.totalorder %s437, %s438
      %p449 = scmp.eq.s32.totalorder %s37, 0
      %p450 = por %p448, %p449
      %p451 = scmp.ne.s32.totalorder %s437, %s438
      %p452 = scmp.eq.s32.totalorder %s38, 3
      %p453 = por %p451, %p452
      %p455 = scmp.ne.s32.totalorder %s438, %s454
      %p456 = scmp.eq.s32.totalorder %s38, 0
      %p457 = por %p455, %p456
      %s458 = ssub.s32 %s40, %s47
      %p459 = scmp.eq.s32.totalorder %s458, 0
      %s461 = sadd.s32 %s460, 1
      %s462 = scalar_select %p459, %s460, %s461
      %p465 = pneg %p459
      %p466 = scmp.eq.s32.totalorder %s32, 3
      %p467 = por %p465, %p466
      %p468 = scmp.ne.s32.totalorder %s460, %s463
      %p469 = scmp.eq.s32.totalorder %s32, 0
      %p470 = por %p468, %p469
      %p471 = scmp.ne.s32.totalorder %s460, %s463
      %p472 = scmp.eq.s32.totalorder %s37, 3
      %p473 = por %p471, %p472
      %p474 = scmp.ne.s32.totalorder %s463, %s464
      %p475 = scmp.eq.s32.totalorder %s37, 0
      %p476 = por %p474, %p475
      %p477 = scmp.ne.s32.totalorder %s463, %s464
      %p478 = scmp.eq.s32.totalorder %s38, 3
      %p479 = por %p477, %p478
      %p481 = scmp.ne.s32.totalorder %s464, %s480
      %p482 = scmp.eq.s32.totalorder %s38, 0
      %p483 = por %p481, %p482
      %s484 = ssub.s32 %s40, %s47
      %p485 = scmp.eq.s32.totalorder %s484, 0
      %s487 = sadd.s32 %s486, 1
      %s488 = scalar_select %p485, %s486, %s487
      %p491 = pneg %p485
      %p492 = scmp.eq.s32.totalorder %s32, 3
      %p493 = por %p491, %p492
      %p494 = scmp.ne.s32.totalorder %s486, %s489
      %p495 = scmp.eq.s32.totalorder %s32, 0
      %p496 = por %p494, %p495
      %p497 = scmp.ne.s32.totalorder %s486, %s489
      %p498 = scmp.eq.s32.totalorder %s37, 3
      %p499 = por %p497, %p498
      %p500 = scmp.ne.s32.totalorder %s489, %s490
      %p501 = scmp.eq.s32.totalorder %s37, 0
      %p502 = por %p500, %p501
      %p503 = scmp.ne.s32.totalorder %s489, %s490
      %p504 = scmp.eq.s32.totalorder %s38, 3
      %p505 = por %p503, %p504
      %p507 = scmp.ne.s32.totalorder %s490, %s506
      %p508 = scmp.eq.s32.totalorder %s38, 0
      %p509 = por %p507, %p508
      %s510 = ssub.s32 %s40, %s47
      %p511 = scmp.eq.s32.totalorder %s510, 0
      %s513 = sadd.s32 %s512, 1
      %s514 = scalar_select %p511, %s512, %s513
      %p517 = pneg %p511
      %p518 = scmp.eq.s32.totalorder %s32, 3
      %p519 = por %p517, %p518
      %p520 = scmp.ne.s32.totalorder %s512, %s515
      %p521 = scmp.eq.s32.totalorder %s32, 0
      %p522 = por %p520, %p521
      %p523 = scmp.ne.s32.totalorder %s512, %s515
      %p524 = scmp.eq.s32.totalorder %s37, 3
      %p525 = por %p523, %p524
      %p526 = scmp.ne.s32.totalorder %s515, %s516
      %p527 = scmp.eq.s32.totalorder %s37, 0
      %p528 = por %p526, %p527
      %p529 = scmp.ne.s32.totalorder %s515, %s516
      %p530 = scmp.eq.s32.totalorder %s38, 3
      %p531 = por %p529, %p530
      %p533 = scmp.ne.s32.totalorder %s516, %s532
      %p534 = scmp.eq.s32.totalorder %s38, 0
      %p535 = por %p533, %p534
      %s537 = sadd.s32 %s536, 1
      %p540 = scmp.eq.s32.totalorder %s32, 3
      %p541 = scmp.ne.s32.totalorder %s536, %s538
      %p542 = scmp.eq.s32.totalorder %s32, 0
      %p543 = por %p541, %p542
      %p544 = scmp.ne.s32.totalorder %s536, %s538
      %p545 = scmp.eq.s32.totalorder %s37, 3
      %p546 = por %p544, %p545
      %p547 = scmp.ne.s32.totalorder %s538, %s539
      %p548 = scmp.eq.s32.totalorder %s37, 0
      %p549 = por %p547, %p548
      %p550 = scmp.ne.s32.totalorder %s538, %s539
      %p551 = scmp.eq.s32.totalorder %s38, 3
      %p552 = por %p550, %p551
      %p554 = scmp.ne.s32.totalorder %s539, %s553
      %p555 = scmp.eq.s32.totalorder %s38, 0
      %p556 = por %p554, %p555
      %s558 = sadd.s32 %s557, 1
      %p561 = scmp.eq.s32.totalorder %s32, 3
      %p562 = scmp.ne.s32.totalorder %s557, %s559
      %p563 = scmp.eq.s32.totalorder %s32, 0
      %p564 = por %p562, %p563
      %p565 = scmp.ne.s32.totalorder %s557, %s559
      %p566 = scmp.eq.s32.totalorder %s37, 3
      %p567 = por %p565, %p566
      %p568 = scmp.ne.s32.totalorder %s559, %s560
      %p569 = scmp.eq.s32.totalorder %s37, 0
      %p570 = por %p568, %p569
      %p571 = scmp.ne.s32.totalorder %s559, %s560
      %p572 = scmp.eq.s32.totalorder %s38, 3
      %p573 = por %p571, %p572
      %p575 = scmp.ne.s32.totalorder %s560, %s574
      %p576 = scmp.eq.s32.totalorder %s38, 0
      %p577 = por %p575, %p576
      %s578 = ssub.s32 %s39, %s51
      %p579 = scmp.eq.s32.totalorder %s578, 0
      %s581 = sadd.s32 %s580, 1
      %s582 = scalar_select %p579, %s580, %s581
      %p585 = pneg %p579
      %p586 = scmp.eq.s32.totalorder %s32, 3
      %p587 = por %p585, %p586
      %p588 = scmp.ne.s32.totalorder %s580, %s583
      %p589 = scmp.eq.s32.totalorder %s32, 0
      %p590 = por %p588, %p589
      %p591 = scmp.ne.s32.totalorder %s580, %s583
      %p592 = scmp.eq.s32.totalorder %s37, 3
      %p593 = por %p591, %p592
      %p594 = scmp.ne.s32.totalorder %s583, %s584
      %p595 = scmp.eq.s32.totalorder %s37, 0
      %p596 = por %p594, %p595
      %p597 = scmp.ne.s32.totalorder %s583, %s584
      %p598 = scmp.eq.s32.totalorder %s38, 3
      %p599 = por %p597, %p598
      %p601 = scmp.ne.s32.totalorder %s584, %s600
      %p602 = scmp.eq.s32.totalorder %s38, 0
      %p603 = por %p601, %p602
      %p604 = scmp.le.s32.totalorder 1, %s32
      %p605 = scmp.lt.s32.totalorder %s32, 5
      %p606 = pnand %p604, %p605
      %p607 = pneg %p606
      // Predicated region
      $region9: #{tpu_custom_call.1} parent=5 // pred_check
        _
      $region10: #{tpu_custom_call.1} parent=5 // pred_check_branch
        %609 = sbr.rel (%p606) target = $region12
      $region11: #{tpu_custom_call.1} parent=5 // pred_region
        %s610 = ssub.s32 %s32, 1
        // Predicated region
        $region13: #{tpu_custom_call.1} parent=11 // pred_check
          %p611 = pneg %p91
        $region14: #{tpu_custom_call.1} parent=11 // pred_check_branch
          %613 = sbr.rel (%p611) target = $region16
        $region15: #{tpu_custom_call.1} parent=11 // pred_region
          %s615 = ssub.s32 128, 128
          %616 = vsyncadd [#allocation6], %s615
          %s617 = sshll.u32 [#allocation5], 4
          %s618 = int_to_ptr.vmem [resolvable:$true] %s617
          %623 = dma.hbm_to_vmem [thread:$0]  %s1, 128, %s618, [#allocation6], 64, 64, 4
        $region16: #{tpu_custom_call.1} parent=11 // pred_fallthru
          _
        // Predicated region
        $region17: #{tpu_custom_call.1} parent=11 // pred_check
          %p624 = pneg %p112
        $region18: #{tpu_custom_call.1} parent=11 // pred_check_branch
          %626 = sbr.rel (%p624) target = $region20
        $region19: #{tpu_custom_call.1} parent=11 // pred_region
          %s628 = ssub.s32 16, 16
          %629 = vsyncadd [#allocation9], %s628
          %s631 = sshll.u32 [#allocation8], 4
          %s632 = int_to_ptr.vmem [resolvable:$true] %s631
          %634 = dma.hbm_to_vmem [thread:$0]  %s2, 16, %s632, [#allocation9]
        $region20: #{tpu_custom_call.1} parent=11 // pred_fallthru
          _
        // Predicated region
        $region21: #{tpu_custom_call.1} parent=11 // pred_check
          %p635 = pneg %p549
        $region22: #{tpu_custom_call.1} parent=11 // pred_check_branch
          %637 = sbr.rel (%p635) target = $region24
        $region23: #{tpu_custom_call.1} parent=11 // pred_region
          _
        $region24: #{tpu_custom_call.1} parent=11 // pred_fallthru
          _
        // Predicated region
        $region25: #{tpu_custom_call.1} parent=11 // pred_check
          %p638 = pneg %p570
        $region26: #{tpu_custom_call.1} parent=11 // pred_check_branch
          %640 = sbr.rel (%p638) target = $region28
        $region27: #{tpu_custom_call.1} parent=11 // pred_region
          _
        $region28: #{tpu_custom_call.1} parent=11 // pred_fallthru
          _
      $region12: #{tpu_custom_call.1} parent=5 // pred_fallthru
        _
      %p641 = scmp.lt.s32.totalorder %s32, 4
      // Predicated region
      $region29: #{tpu_custom_call.1} parent=5 // pred_check
        %p642 = pneg %p641
      $region30: #{tpu_custom_call.1} parent=5 // pred_check_branch
        %644 = sbr.rel (%p642) target = $region32
      $region31: #{tpu_custom_call.1} parent=5 // pred_region
        // Predicated region
        $region33: #{tpu_custom_call.1} parent=31 // pred_check
          %p645 = pneg %p64
        $region34: #{tpu_custom_call.1} parent=31 // pred_check_branch
          %647 = sbr.rel (%p645) target = $region36
        $region35: #{tpu_custom_call.1} parent=31 // pred_region
          %s648 = smul.u32 2, %s39
          %p649 = scmp.lt.s32.totalorder %s648, 3
          %s650 = scalar_select %p649, %s648, 3
          %s651 = smul.addr %s650, 8
          %s652 = scalar_lea.vmem %s0, %s651
          %s653 = smul.u32 2, %s39
        $region36: #{tpu_custom_call.1} parent=31 // pred_fallthru
          _
        // Predicated region
        $region37: #{tpu_custom_call.1} parent=31 // pred_check
          %p654 = pneg %p132
        $region38: #{tpu_custom_call.1} parent=31 // pred_check_branch
          %656 = sbr.rel (%p654) target = $region40
        $region39: #{tpu_custom_call.1} parent=31 // pred_region
          %p657 = scmp.lt.s32.totalorder %s40, 1
          %s658 = scalar_select %p657, %s40, 1
          %s659 = smul.addr %s658, 4
          %s660 = smul.addr %s659, 4
          %s661 = scalar_lea.vmem %s3, %s660
        $region40: #{tpu_custom_call.1} parent=31 // pred_fallthru
          _
        // Predicated region
        $region41: #{tpu_custom_call.1} parent=31 // pred_check
          %p662 = pneg %p158
        $region42: #{tpu_custom_call.1} parent=31 // pred_check_branch
          %664 = sbr.rel (%p662) target = $region44
        $region43: #{tpu_custom_call.1} parent=31 // pred_region
          %s665 = sand.u32 %s32, 1
          %s666 = scalar_lea.sflag [#allocation6], %s665
          %s667 = sand.u32 %s148, 1
          %s668 = scalar_lea.vmem [#allocation10], %s667
          %s670 = ssub.s32 16, 16
          %671 = vsyncadd %s666, %s670
          %s672 = smul.addr %s40, 16
          %s673 = scalar_lea.hbm %s4, %s672
          %s675 = sshll.u32 %s668, 4
          %s676 = int_to_ptr.vmem [resolvable:$true] %s675
          %678 = dma.hbm_to_vmem [thread:$0]  %s673, 16, %s676, %s666
        $region44: #{tpu_custom_call.1} parent=31 // pred_fallthru
          _
        // Predicated region
        $region45: #{tpu_custom_call.1} parent=31 // pred_check
          %p679 = pneg %p184
        $region46: #{tpu_custom_call.1} parent=31 // pred_check_branch
          %681 = sbr.rel (%p679) target = $region48
        $region47: #{tpu_custom_call.1} parent=31 // pred_region
          %p682 = scmp.lt.s32.totalorder %s40, 1
          %s683 = scalar_select %p682, %s40, 1
          %s684 = smul.addr %s683, 4
          %s685 = smul.addr %s684, 4
          %s686 = scalar_lea.vmem %s5, %s685
        $region48: #{tpu_custom_call.1} parent=31 // pred_fallthru
          _
        // Predicated region
        $region49: #{tpu_custom_call.1} parent=31 // pred_check
          %p687 = pneg %p210
        $region50: #{tpu_custom_call.1} parent=31 // pred_check_branch
          %689 = sbr.rel (%p687) target = $region52
        $region51: #{tpu_custom_call.1} parent=31 // pred_region
          %s690 = sand.u32 %s32, 1
          %s691 = scalar_lea.sflag [#allocation6], %s690
          %s692 = sand.u32 %s200, 1
          %s693 = scalar_lea.vmem [#allocation11], %s692
          %s695 = ssub.s32 16, 16
          %696 = vsyncadd %s691, %s695
          %s697 = smul.addr %s40, 16
          %s698 = scalar_lea.hbm %s6, %s697
          %s700 = sshll.u32 %s693, 4
          %s701 = int_to_ptr.vmem [resolvable:$true] %s700
          %703 = dma.hbm_to_vmem [thread:$0]  %s698, 16, %s701, %s691
        $region52: #{tpu_custom_call.1} parent=31 // pred_fallthru
          _
        // Predicated region
        $region53: #{tpu_custom_call.1} parent=31 // pred_check
          %p704 = pneg %p236
        $region54: #{tpu_custom_call.1} parent=31 // pred_check_branch
          %706 = sbr.rel (%p704) target = $region56
        $region55: #{tpu_custom_call.1} parent=31 // pred_region
          %s707 = sand.u32 %s32, 1
          %s708 = scalar_lea.sflag [#allocation6], %s707
          %s709 = sand.u32 %s226, 1
          %s710 = smul.addr %s709, 16
          %s711 = scalar_lea.vmem [#allocation12], %s710
          %s713 = ssub.s32 256, 256
          %714 = vsyncadd %s708, %s713
          %s715 = smul.addr %s40, 4
          %s716 = smul.addr %s715, 64
          %s717 = scalar_lea.hbm %s7, %s716
          %s718 = sshll.u32 %s711, 4
          %s719 = int_to_ptr.vmem [resolvable:$true] %s718
          %724 = dma.hbm_to_vmem [thread:$0]  %s717, 256, %s719, %s708, 64, 64, 4
        $region56: #{tpu_custom_call.1} parent=31 // pred_fallthru
          _
        // Predicated region
        $region57: #{tpu_custom_call.1} parent=31 // pred_check
          %p725 = pneg %p262
        $region58: #{tpu_custom_call.1} parent=31 // pred_check_branch
          %727 = sbr.rel (%p725) target = $region60
        $region59: #{tpu_custom_call.1} parent=31 // pred_region
          %s728 = sand.u32 %s32, 1
          %s729 = scalar_lea.sflag [#allocation6], %s728
          %s730 = sand.u32 %s252, 1
          %s731 = scalar_lea.vmem [#allocation13], %s730
          %s733 = ssub.s32 16, 16
          %734 = vsyncadd %s729, %s733
          %s735 = smul.addr %s40, 16
          %s736 = scalar_lea.hbm %s8, %s735
          %s738 = sshll.u32 %s731, 4
          %s739 = int_to_ptr.vmem [resolvable:$true] %s738
          %741 = dma.hbm_to_vmem [thread:$0]  %s736, 16, %s739, %s729
        $region60: #{tpu_custom_call.1} parent=31 // pred_fallthru
          _
        // Predicated region
        $region61: #{tpu_custom_call.1} parent=31 // pred_check
          %p742 = pneg %p288
        $region62: #{tpu_custom_call.1} parent=31 // pred_check_branch
          %744 = sbr.rel (%p742) target = $region64
        $region63: #{tpu_custom_call.1} parent=31 // pred_region
          %s745 = sand.u32 %s32, 1
          %s746 = scalar_lea.sflag [#allocation6], %s745
          %s747 = sand.u32 %s278, 1
          %s748 = smul.addr %s747, 16
          %s749 = scalar_lea.vmem [#allocation14], %s748
          %s751 = ssub.s32 256, 256
          %752 = vsyncadd %s746, %s751
          %s753 = smul.addr %s40, 4
          %s754 = smul.addr %s753, 64
          %s755 = scalar_lea.hbm %s9, %s754
          %s756 = sshll.u32 %s749, 4
          %s757 = int_to_ptr.vmem [resolvable:$true] %s756
          %762 = dma.hbm_to_vmem [thread:$0]  %s755, 256, %s757, %s746, 64, 64, 4
        $region64: #{tpu_custom_call.1} parent=31 // pred_fallthru
          _
        // Predicated region
        $region65: #{tpu_custom_call.1} parent=31 // pred_check
          %p763 = pneg %p314
        $region66: #{tpu_custom_call.1} parent=31 // pred_check_branch
          %765 = sbr.rel (%p763) target = $region68
        $region67: #{tpu_custom_call.1} parent=31 // pred_region
          %p766 = scmp.lt.s32.totalorder %s40, 1
          %s767 = scalar_select %p766, %s40, 1
          %s768 = scalar_lea.vmem %s10, %s767
        $region68: #{tpu_custom_call.1} parent=31 // pred_fallthru
          _
        // Predicated region
        $region69: #{tpu_custom_call.1} parent=31 // pred_check
          %p769 = pneg %p340
        $region70: #{tpu_custom_call.1} parent=31 // pred_check_branch
          %771 = sbr.rel (%p769) target = $region72
        $region71: #{tpu_custom_call.1} parent=31 // pred_region
          %p772 = scmp.lt.s32.totalorder %s40, 1
          %s773 = scalar_select %p772, %s40, 1
          %s774 = scalar_lea.vmem %s11, %s773
        $region72: #{tpu_custom_call.1} parent=31 // pred_fallthru
          _
        // Predicated region
        $region73: #{tpu_custom_call.1} parent=31 // pred_check
          %p775 = pneg %p366
        $region74: #{tpu_custom_call.1} parent=31 // pred_check_branch
          %777 = sbr.rel (%p775) target = $region76
        $region75: #{tpu_custom_call.1} parent=31 // pred_region
          %s778 = sand.u32 %s32, 1
          %s779 = scalar_lea.sflag [#allocation6], %s778
          %s780 = sand.u32 %s356, 1
          %s781 = scalar_lea.vmem [#allocation15], %s780
          %s783 = ssub.s32 16, 16
          %784 = vsyncadd %s779, %s783
          %s785 = smul.addr %s40, 16
          %s786 = scalar_lea.hbm %s12, %s785
          %s788 = sshll.u32 %s781, 4
          %s789 = int_to_ptr.vmem [resolvable:$true] %s788
          %791 = dma.hbm_to_vmem [thread:$0]  %s786, 16, %s789, %s779
        $region76: #{tpu_custom_call.1} parent=31 // pred_fallthru
          _
        // Predicated region
        $region77: #{tpu_custom_call.1} parent=31 // pred_check
          %p792 = pneg %p392
        $region78: #{tpu_custom_call.1} parent=31 // pred_check_branch
          %794 = sbr.rel (%p792) target = $region80
        $region79: #{tpu_custom_call.1} parent=31 // pred_region
          %s795 = sand.u32 %s32, 1
          %s796 = scalar_lea.sflag [#allocation6], %s795
          %s797 = sand.u32 %s382, 1
          %s798 = smul.addr %s797, 16
          %s799 = scalar_lea.vmem [#allocation16], %s798
          %s801 = ssub.s32 256, 256
          %802 = vsyncadd %s796, %s801
          %s803 = smul.addr %s40, 4
          %s804 = smul.addr %s803, 64
          %s805 = scalar_lea.hbm %s13, %s804
          %s806 = sshll.u32 %s799, 4
          %s807 = int_to_ptr.vmem [resolvable:$true] %s806
          %812 = dma.hbm_to_vmem [thread:$0]  %s805, 256, %s807, %s796, 64, 64, 4
        $region80: #{tpu_custom_call.1} parent=31 // pred_fallthru
          _
        // Predicated region
        $region81: #{tpu_custom_call.1} parent=31 // pred_check
          %p813 = pneg %p418
        $region82: #{tpu_custom_call.1} parent=31 // pred_check_branch
          %815 = sbr.rel (%p813) target = $region84
        $region83: #{tpu_custom_call.1} parent=31 // pred_region
          %p816 = scmp.lt.s32.totalorder %s40, 1
          %s817 = scalar_select %p816, %s40, 1
          %s818 = scalar_lea.vmem %s14, %s817
        $region84: #{tpu_custom_call.1} parent=31 // pred_fallthru
          _
        // Predicated region
        $region85: #{tpu_custom_call.1} parent=31 // pred_check
          %p819 = pneg %p444
        $region86: #{tpu_custom_call.1} parent=31 // pred_check_branch
          %821 = sbr.rel (%p819) target = $region88
        $region87: #{tpu_custom_call.1} parent=31 // pred_region
          %p822 = scmp.lt.s32.totalorder %s40, 1
          %s823 = scalar_select %p822, %s40, 1
          %s824 = smul.addr %s823, 8
          %s825 = smul.addr %s824, 4
          %s826 = scalar_lea.vmem %s15, %s825
        $region88: #{tpu_custom_call.1} parent=31 // pred_fallthru
          _
        // Predicated region
        $region89: #{tpu_custom_call.1} parent=31 // pred_check
          %p827 = pneg %p470
        $region90: #{tpu_custom_call.1} parent=31 // pred_check_branch
          %829 = sbr.rel (%p827) target = $region92
        $region91: #{tpu_custom_call.1} parent=31 // pred_region
          %p830 = scmp.lt.s32.totalorder %s40, 1
          %s831 = scalar_select %p830, %s40, 1
          %s832 = scalar_lea.vmem %s16, %s831
        $region92: #{tpu_custom_call.1} parent=31 // pred_fallthru
          _
        // Predicated region
        $region93: #{tpu_custom_call.1} parent=31 // pred_check
          %p833 = pneg %p496
        $region94: #{tpu_custom_call.1} parent=31 // pred_check_branch
          %835 = sbr.rel (%p833) target = $region96
        $region95: #{tpu_custom_call.1} parent=31 // pred_region
          %p836 = scmp.lt.s32.totalorder %s40, 1
          %s837 = scalar_select %p836, %s40, 1
          %s838 = scalar_lea.vmem %s17, %s837
        $region96: #{tpu_custom_call.1} parent=31 // pred_fallthru
          _
        // Predicated region
        $region97: #{tpu_custom_call.1} parent=31 // pred_check
          %p839 = pneg %p522
        $region98: #{tpu_custom_call.1} parent=31 // pred_check_branch
          %841 = sbr.rel (%p839) target = $region100
        $region99: #{tpu_custom_call.1} parent=31 // pred_region
          %p842 = scmp.lt.s32.totalorder %s40, 1
          %s843 = scalar_select %p842, %s40, 1
          %s844 = scalar_lea.vmem %s18, %s843
        $region100: #{tpu_custom_call.1} parent=31 // pred_fallthru
          _
      $region32: #{tpu_custom_call.1} parent=5 // pred_fallthru
        _
      %p845 = scmp.le.s32.totalorder 1, %s32
      %p846 = scmp.lt.s32.totalorder %s32, 5
      %p847 = pnand %p845, %p846
      %p848 = pneg %p847
      // Predicated region
      $region101: #{tpu_custom_call.1} parent=5 // pred_check
        _
      $region102: #{tpu_custom_call.1} parent=5 // pred_check_branch
        %850 = sbr.rel (%p847) target = $region104
      $region103: #{tpu_custom_call.1} parent=5 // pred_region
        %s851 = ssub.s32 %s32, 1
        // Predicated region
        $region105: #{tpu_custom_call.1} parent=103 // pred_check
          %p852 = pneg %p91
        $region106: #{tpu_custom_call.1} parent=103 // pred_check_branch
          %854 = sbr.rel (%p852) target = $region108
        $region107: #{tpu_custom_call.1} parent=103 // pred_region
          %855 = dma.done [#allocation6], 128
        $region108: #{tpu_custom_call.1} parent=103 // pred_fallthru
          _
        // Predicated region
        $region109: #{tpu_custom_call.1} parent=103 // pred_check
          %p856 = pneg %p112
        $region110: #{tpu_custom_call.1} parent=103 // pred_check_branch
          %858 = sbr.rel (%p856) target = $region112
        $region111: #{tpu_custom_call.1} parent=103 // pred_region
          %859 = dma.done [#allocation9], 16
        $region112: #{tpu_custom_call.1} parent=103 // pred_fallthru
          _
        %s860 = sand.u32 %s37, 1
        %s861 = scalar_lea.sflag [#allocation6], %s860
        %s862 = sand.u32 %s151, 1
        %s863 = scalar_lea.vmem [#allocation10], %s862
        // Predicated region
        $region113: #{tpu_custom_call.1} parent=103 // pred_check
          %p864 = pneg %p164
        $region114: #{tpu_custom_call.1} parent=103 // pred_check_branch
          %866 = sbr.rel (%p864) target = $region116
        $region115: #{tpu_custom_call.1} parent=103 // pred_region
          %867 = dma.done %s861, 16
        $region116: #{tpu_custom_call.1} parent=103 // pred_fallthru
          _
        %s868 = sand.u32 %s37, 1
        %s869 = scalar_lea.sflag [#allocation6], %s868
        %s870 = sand.u32 %s203, 1
        %s871 = scalar_lea.vmem [#allocation11], %s870
        // Predicated region
        $region117: #{tpu_custom_call.1} parent=103 // pred_check
          %p872 = pneg %p216
        $region118: #{tpu_custom_call.1} parent=103 // pred_check_branch
          %874 = sbr.rel (%p872) target = $region120
        $region119: #{tpu_custom_call.1} parent=103 // pred_region
          %875 = dma.done %s869, 16
        $region120: #{tpu_custom_call.1} parent=103 // pred_fallthru
          _
        %s876 = sand.u32 %s37, 1
        %s877 = scalar_lea.sflag [#allocation6], %s876
        %s878 = sand.u32 %s229, 1
        %s879 = smul.addr %s878, 16
        %s880 = scalar_lea.vmem [#allocation12], %s879
        // Predicated region
        $region121: #{tpu_custom_call.1} parent=103 // pred_check
          %p881 = pneg %p242
        $region122: #{tpu_custom_call.1} parent=103 // pred_check_branch
          %883 = sbr.rel (%p881) target = $region124
        $region123: #{tpu_custom_call.1} parent=103 // pred_region
          %884 = dma.done %s877, 256
        $region124: #{tpu_custom_call.1} parent=103 // pred_fallthru
          _
        %s885 = sand.u32 %s37, 1
        %s886 = scalar_lea.sflag [#allocation6], %s885
        %s887 = sand.u32 %s255, 1
        %s888 = scalar_lea.vmem [#allocation13], %s887
        // Predicated region
        $region125: #{tpu_custom_call.1} parent=103 // pred_check
          %p889 = pneg %p268
        $region126: #{tpu_custom_call.1} parent=103 // pred_check_branch
          %891 = sbr.rel (%p889) target = $region128
        $region127: #{tpu_custom_call.1} parent=103 // pred_region
          %892 = dma.done %s886, 16
        $region128: #{tpu_custom_call.1} parent=103 // pred_fallthru
          _
        %s893 = sand.u32 %s37, 1
        %s894 = scalar_lea.sflag [#allocation6], %s893
        %s895 = sand.u32 %s281, 1
        %s896 = smul.addr %s895, 16
        %s897 = scalar_lea.vmem [#allocation14], %s896
        // Predicated region
        $region129: #{tpu_custom_call.1} parent=103 // pred_check
          %p898 = pneg %p294
        $region130: #{tpu_custom_call.1} parent=103 // pred_check_branch
          %900 = sbr.rel (%p898) target = $region132
        $region131: #{tpu_custom_call.1} parent=103 // pred_region
          %901 = dma.done %s894, 256
        $region132: #{tpu_custom_call.1} parent=103 // pred_fallthru
          _
        %s902 = sand.u32 %s37, 1
        %s903 = scalar_lea.sflag [#allocation6], %s902
        %s904 = sand.u32 %s359, 1
        %s905 = scalar_lea.vmem [#allocation15], %s904
        // Predicated region
        $region133: #{tpu_custom_call.1} parent=103 // pred_check
          %p906 = pneg %p372
        $region134: #{tpu_custom_call.1} parent=103 // pred_check_branch
          %908 = sbr.rel (%p906) target = $region136
        $region135: #{tpu_custom_call.1} parent=103 // pred_region
          %909 = dma.done %s903, 16
        $region136: #{tpu_custom_call.1} parent=103 // pred_fallthru
          _
        %s910 = sand.u32 %s37, 1
        %s911 = scalar_lea.sflag [#allocation6], %s910
        %s912 = sand.u32 %s385, 1
        %s913 = smul.addr %s912, 16
        %s914 = scalar_lea.vmem [#allocation16], %s913
        // Predicated region
        $region137: #{tpu_custom_call.1} parent=103 // pred_check
          %p915 = pneg %p398
        $region138: #{tpu_custom_call.1} parent=103 // pred_check_branch
          %917 = sbr.rel (%p915) target = $region140
        $region139: #{tpu_custom_call.1} parent=103 // pred_region
          %918 = dma.done %s911, 256
        $region140: #{tpu_custom_call.1} parent=103 // pred_fallthru
          _
        %s919 = smul.u32 2, %s41
        %p920 = scmp.lt.s32.totalorder %s919, 3
        %s921 = scalar_select %p920, %s919, 3
        %s922 = smul.addr %s921, 8
        %s923 = scalar_lea.vmem %s0, %s922
        %p924 = pneg %p70
        %p925 = pneg %p67
        %p926 = pneg %p91
        %p927 = pneg %p88
        %p928 = pneg %p112
        %p929 = pneg %p109
        %p930 = scmp.lt.s32.totalorder %s42, 1
        %s931 = scalar_select %p930, %s42, 1
        %s932 = smul.addr %s931, 4
        %s933 = smul.addr %s932, 4
        %s934 = scalar_lea.vmem %s3, %s933
        %p935 = pneg %p138
        %p936 = pneg %p135
        %s937 = sand.u32 %s37, 1
        %s938 = scalar_lea.sflag [#allocation6], %s937
        %s939 = sand.u32 %s151, 1
        %s940 = scalar_lea.vmem [#allocation10], %s939
        %p941 = pneg %p164
        %p942 = pneg %p161
        %p943 = scmp.lt.s32.totalorder %s42, 1
        %s944 = scalar_select %p943, %s42, 1
        %s945 = smul.addr %s944, 4
        %s946 = smul.addr %s945, 4
        %s947 = scalar_lea.vmem %s5, %s946
        %p948 = pneg %p190
        %p949 = pneg %p187
        %s950 = sand.u32 %s37, 1
        %s951 = scalar_lea.sflag [#allocation6], %s950
        %s952 = sand.u32 %s203, 1
        %s953 = scalar_lea.vmem [#allocation11], %s952
        %p954 = pneg %p216
        %p955 = pneg %p213
        %s956 = sand.u32 %s37, 1
        %s957 = scalar_lea.sflag [#allocation6], %s956
        %s958 = sand.u32 %s229, 1
        %s959 = smul.addr %s958, 16
        %s960 = scalar_lea.vmem [#allocation12], %s959
        %p961 = pneg %p242
        %p962 = pneg %p239
        %s963 = sand.u32 %s37, 1
        %s964 = scalar_lea.sflag [#allocation6], %s963
        %s965 = sand.u32 %s255, 1
        %s966 = scalar_lea.vmem [#allocation13], %s965
        %p967 = pneg %p268
        %p968 = pneg %p265
        %s969 = sand.u32 %s37, 1
        %s970 = scalar_lea.sflag [#allocation6], %s969
        %s971 = sand.u32 %s281, 1
        %s972 = smul.addr %s971, 16
        %s973 = scalar_lea.vmem [#allocation14], %s972
        %p974 = pneg %p294
        %p975 = pneg %p291
        %p976 = scmp.lt.s32.totalorder %s42, 1
        %s977 = scalar_select %p976, %s42, 1
        %s978 = scalar_lea.vmem %s10, %s977
        %p979 = pneg %p320
        %p980 = pneg %p317
        %p981 = scmp.lt.s32.totalorder %s42, 1
        %s982 = scalar_select %p981, %s42, 1
        %s983 = scalar_lea.vmem %s11, %s982
        %p984 = pneg %p346
        %p985 = pneg %p343
        %s986 = sand.u32 %s37, 1
        %s987 = scalar_lea.sflag [#allocation6], %s986
        %s988 = sand.u32 %s359, 1
        %s989 = scalar_lea.vmem [#allocation15], %s988
        %p990 = pneg %p372
        %p991 = pneg %p369
        %s992 = sand.u32 %s37, 1
        %s993 = scalar_lea.sflag [#allocation6], %s992
        %s994 = sand.u32 %s385, 1
        %s995 = smul.addr %s994, 16
        %s996 = scalar_lea.vmem [#allocation16], %s995
        %p997 = pneg %p398
        %p998 = pneg %p395
        %p999 = scmp.lt.s32.totalorder %s42, 1
        %s1000 = scalar_select %p999, %s42, 1
        %s1001 = scalar_lea.vmem %s14, %s1000
        %p1002 = pneg %p424
        %p1003 = pneg %p421
        %p1004 = scmp.lt.s32.totalorder %s42, 1
        %s1005 = scalar_select %p1004, %s42, 1
        %s1006 = smul.addr %s1005, 8
        %s1007 = smul.addr %s1006, 4
        %s1008 = scalar_lea.vmem %s15, %s1007
        %p1009 = pneg %p450
        %p1010 = pneg %p447
        %p1011 = scmp.lt.s32.totalorder %s42, 1
        %s1012 = scalar_select %p1011, %s42, 1
        %s1013 = scalar_lea.vmem %s16, %s1012
        %p1014 = pneg %p476
        %p1015 = pneg %p473
        %p1016 = scmp.lt.s32.totalorder %s42, 1
        %s1017 = scalar_select %p1016, %s42, 1
        %s1018 = scalar_lea.vmem %s17, %s1017
        %p1019 = pneg %p502
        %p1020 = pneg %p499
        %p1021 = scmp.lt.s32.totalorder %s42, 1
        %s1022 = scalar_select %p1021, %s42, 1
        %s1023 = scalar_lea.vmem %s18, %s1022
        %p1024 = pneg %p528
        %p1025 = pneg %p525
        %p1026 = pneg %p549
        %p1027 = pneg %p546
        %p1028 = pneg %p570
        %p1029 = pneg %p567
        %p1030 = pneg %p596
        %p1031 = pneg %p593
        %s1032 = sand.u32 %s583, 1
        %s1033 = scalar_lea.sflag [#allocation7], %s1032
        %s1034 = sand.u32 %s583, 1
        %s1035 = smul.addr %s1034, 16
        %s1036 = scalar_lea.vmem [#allocation17], %s1035
        %s1037 = smul.u32 2, %s41
        %p1038 = scmp.lt.s32.totalorder %s1037, 3
        %s1039 = scalar_select %p1038, %s1037, 3
        %s1040 = smul.addr %s1039, 8
        %s1041 = scalar_lea.vmem %s0, %s1040
        %s1042 = smul.u32 2, %s41
        %p1043 = scmp.lt.s32.totalorder %s42, 1
        %s1044 = scalar_select %p1043, %s42, 1
        %s1045 = smul.addr %s1044, 4
        %s1046 = smul.addr %s1045, 4
        %s1047 = scalar_lea.vmem %s3, %s1046
        %p1048 = scmp.lt.s32.totalorder %s42, 1
        %s1049 = scalar_select %p1048, %s42, 1
        %s1050 = smul.addr %s1049, 4
        %s1051 = smul.addr %s1050, 4
        %s1052 = scalar_lea.vmem %s5, %s1051
        %p1053 = scmp.lt.s32.totalorder %s42, 1
        %s1054 = scalar_select %p1053, %s42, 1
        %s1055 = scalar_lea.vmem %s10, %s1054
        %p1056 = scmp.lt.s32.totalorder %s42, 1
        %s1057 = scalar_select %p1056, %s42, 1
        %s1058 = scalar_lea.vmem %s11, %s1057
        %p1059 = scmp.lt.s32.totalorder %s42, 1
        %s1060 = scalar_select %p1059, %s42, 1
        %s1061 = scalar_lea.vmem %s14, %s1060
        %p1062 = scmp.lt.s32.totalorder %s42, 1
        %s1063 = scalar_select %p1062, %s42, 1
        %s1064 = smul.addr %s1063, 8
        %s1065 = smul.addr %s1064, 4
        %s1066 = scalar_lea.vmem %s15, %s1065
        %p1067 = scmp.lt.s32.totalorder %s42, 1
        %s1068 = scalar_select %p1067, %s42, 1
        %s1069 = scalar_lea.vmem %s16, %s1068
        %p1070 = scmp.lt.s32.totalorder %s42, 1
        %s1071 = scalar_select %p1070, %s42, 1
        %s1072 = scalar_lea.vmem %s17, %s1071
        %p1073 = scmp.lt.s32.totalorder %s42, 1
        %s1074 = scalar_select %p1073, %s42, 1
        %s1075 = scalar_lea.vmem %s18, %s1074
        %s1076 = smul.u32 2, %s41
        %p1078 = scmp.eq.s32.totalorder %s42, 0
        // Predicated region
        $region141: #{tpu_custom_call.1} parent=103 // pred_check
          %p1079 = pneg %p1078
        $region142: #{tpu_custom_call.1} parent=103 // pred_check_branch
          %1081 = sbr.rel (%p1079) target = $region144
        $region143: #{tpu_custom_call.1} parent=103 // pred_region
          %v1082 = vld [vmem:[%s1041] sm:$0xff]
          %v1083 = vld [vmem:[%s1041 + $0x8] sm:$0xff]
          %vm1084 = vcmask 130048
          %v1085 = vsel %vm1084, %v1082, 0.0
          %1086 = vadd.xlane.f32.xlu0 %v1085
          %v1087 = vpop.xlane.xlu0 %1086
          %v1088 = vsel %vm1084, %v1083, 0.0
          %1089 = vadd.xlane.f32.xlu0 %v1088
          %v1090 = vpop.xlane.xlu0 %1089
          %v1091 = vrcp.pop 16.0
          %v1092 = vmul.f32 %v1087, %v1091
          %v1093 = vmul.f32 %v1090, %v1091
          %v1094 = vsub.f32 %v1082, %v1092
          %v1095 = vsub.f32 %v1083, %v1093
          %v1096 = vmul.f32 %v1094, %v1094
          %v1097 = vmul.f32 %v1095, %v1095
          %v1098 = vsel %vm1084, %v1096, 0.0
          %1099 = vadd.xlane.f32.xlu0 %v1098
          %v1100 = vpop.xlane.xlu0 %1099
          %v1101 = vsel %vm1084, %v1097, 0.0
          %1102 = vadd.xlane.f32.xlu0 %v1101
          %v1103 = vpop.xlane.xlu0 %1102
          %v1104 = vmul.f32 %v1100, %v1091
          %v1105 = vmul.f32 %v1103, %v1091
          %v1106 = vadd.f32 %v1104, 1e-05
          %v1107 = vadd.f32 %v1105, 1e-05
          %v1108 = vrsqrt.pop %v1106
          %v1109 = vmul.f32 %v1106, %v1108
          %vm1110 = vcmp.eq.f32.partialorder %v1106, inf
          %v1111 = vsel %vm1110, %v1106, %v1109
          %vm1112 = vcmp.eq.f32.partialorder %v1106, 0.0
          %v1113 = vand.u32 %v1106, 2147483648
          %v1114 = vsel %vm1112, %v1113, %v1111
          %v1115 = vrsqrt.pop %v1107
          %v1116 = vmul.f32 %v1107, %v1115
          %vm1117 = vcmp.eq.f32.partialorder %v1107, inf
          %v1118 = vsel %vm1117, %v1107, %v1116
          %vm1119 = vcmp.eq.f32.partialorder %v1107, 0.0
          %v1120 = vand.u32 %v1107, 2147483648
          %v1121 = vsel %vm1119, %v1120, %v1118
          %vm1122 = vcmask 7168
          %1123 = vst.msk [vmem:[#allocation3] sm:$0xff] %vm1122, %v1092
          %1124 = vst.msk [vmem:[#allocation3 + $0x8] sm:$0xff] %vm1122, %v1093
          %1125 = vst.msk [vmem:[#allocation4] sm:$0xff] %vm1122, %v1114
          %1126 = vst.msk [vmem:[#allocation4 + $0x8] sm:$0xff] %vm1122, %v1121
          %v1127 = vrcp.pop %v1114
          %v1128 = vmul.f32 %v1094, %v1127
          %v1129 = vrcp.pop %v1121
          %v1130 = vmul.f32 %v1095, %v1129
          %v1131 = vpack.c.bf16 %v1130, %v1128
          %v1132 = vld [vmem:[#allocation5] sm:$0xf]
          %v1133 = vld [vmem:[#allocation5 + $0x4] sm:$0xf]
          %v1134 = vld [vmem:[#allocation8] sm:$0x1]
          %v1136 = vlaneseq
          %v1137 = vshrl.u32 %v1136, 7
          %v1138 = vsub.s32 0, %v1137
          %v1139 = vrot.slane %v1134, %v1138
          %v1143 = vunpack.c.l.b16 %v1132
          %v1144 = vunpack.c.l.b16 %v1133
          %v1145 = vpack.c.b16 %v1144, %v1143
          %v1148 = vsel %vm1084, %v1131, 0
          %1150 = vmatprep.subr.bf16.mxu0 0
          %1151 = vmatpush1.bf16.msra.mxu0 0
          %1152 = vmatprep.subr.bf16.mxu0 0
          %1153 = vmatpush1.bf16.msra.mxu0 0
          %1154 = vmatprep.subr.bf16.mxu0 0
          %1155 = vmatpush1.bf16.msra.mxu0 0
          %1156 = vmatprep.subr.bf16.mxu0 0
          %1157 = vmatpush1.bf16.msra.mxu0 0
          %1158 = vmatprep.subr.bf16.mxu0 0
          %1159 = vmatpush1.bf16.msra.mxu0 0
          %1160 = vmatprep.subr.bf16.mxu0 0
          %1161 = vmatpush1.bf16.msra.mxu0 0
          %1162 = vmatprep.subr.bf16.mxu0 0
          %1163 = vmatpush1.bf16.msra.mxu0 0
          %1164 = vmatprep.subr.bf16.mxu0 0
          %1165 = vmatpush1.bf16.msra.mxu0 %v1145
          %1166 = vmatprep.subr.bf16.mxu0 0
          %1167 = vmatpush2.bf16.msra.mxu0 0
          %1168 = vmatprep.subr.bf16.mxu0 0
          %1169 = vmatpush2.bf16.msra.mxu0 0
          %1170 = vmatprep.subr.bf16.mxu0 0
          %1171 = vmatpush2.bf16.msra.mxu0 0
          %1172 = vmatprep.subr.bf16.mxu0 0
          %1173 = vmatpush2.bf16.msra.mxu0 0
          %1174 = vmatprep.subr.bf16.mxu0 0
          %1175 = vmatpush2.bf16.msra.mxu0 0
          %1176 = vmatprep.subr.bf16.mxu0 0
          %1177 = vmatpush2.bf16.msra.mxu0 0
          %1178 = vmatprep.subr.bf16.mxu0 0
          %1179 = vmatpush2.bf16.msra.mxu0 0
          %1180 = vmatprep.subr.bf16.mxu0 0
          %1181 = vmatpush2.bf16.msra.mxu0 0
          %1182 = vmatprep.mubr.bf16.mxu0 0
          %1183 = vmatmul.mubr.bf16.gmra.mxu0 %v1148
          %v1184 = vpop.f32.mrf.mxu0
          %v1185 = vadd.f32 %v1139, %v1184
          %v1186 = vpop.f32.mrf.mxu0
          %v1187 = vpop.f32.mrf.mxu0
          %v1188 = vadd.f32 %v1139, %v1187
          %v1189 = vpop.f32.mrf.mxu0
          %1190 = vdwg.mxu0
          %vm1191 = vcmask 261120
          %1192 = vst.msk [vmem:[#allocation2] sm:$0xff] %vm1191, %v1185
          %1193 = vst.msk [vmem:[#allocation2 + $0x8] sm:$0xff] %vm1191, %v1188
        $region144: #{tpu_custom_call.1} parent=103 // pred_fallthru
          _
        %v1194 = vld [vmem:[#allocation2] sm:$0xff]
        %v1195 = vld [vmem:[#allocation2 + $0x8] sm:$0xff]
        %v1196 = vpack.c.bf16 %v1195, %v1194
        %v1197 = vld [vmem:[%s1047] sm:$0xf]
        %v1198 = vld [vmem:[%s1047 + $0x4] sm:$0xf]
        %v1199 = vld [vmem:[%s1047 + $0x8] sm:$0xf]
        %v1200 = vld [vmem:[%s1047 + $0xc] sm:$0xf]
        %v1201 = vld [vmem:[%s863] sm:$0x1]
        %v1203 = vlaneseq
        %v1204 = vshrl.u32 %v1203, 7
        %v1205 = vsub.s32 0, %v1204
        %v1206 = vrot.slane %v1201, %v1205
        %v1212 = vunpack.c.l.b16 %v1197
        %v1213 = vunpack.c.l.b16 %v1198
        %v1214 = vunpack.c.l.b16 %v1199
        %v1215 = vunpack.c.l.b16 %v1200
        %v1216 = vpack.c.b16 %v1213, %v1212
        %v1217 = vpack.c.b16 %v1215, %v1214
        %vm1220 = vcmask 261120
        %v1222 = vsel %vm1220, %v1196, 0
        %1224 = vmatprep.subr.bf16.mxu0 0
        %1225 = vmatpush1.bf16.msra.mxu0 0
        %1226 = vmatprep.subr.bf16.mxu0 0
        %1227 = vmatpush1.bf16.msra.mxu0 0
        %1228 = vmatprep.subr.bf16.mxu0 0
        %1229 = vmatpush1.bf16.msra.mxu0 0
        %1230 = vmatprep.subr.bf16.mxu0 0
        %1231 = vmatpush1.bf16.msra.mxu0 0
        %1232 = vmatprep.subr.bf16.mxu0 0
        %1233 = vmatpush1.bf16.msra.mxu0 0
        %1234 = vmatprep.subr.bf16.mxu0 0
        %1235 = vmatpush1.bf16.msra.mxu0 0
        %1236 = vmatprep.subr.bf16.mxu0 0
        %1237 = vmatpush1.bf16.msra.mxu0 %v1217
        %1238 = vmatprep.subr.bf16.mxu0 0
        %1239 = vmatpush1.bf16.msra.mxu0 %v1216
        %1240 = vmatprep.subr.bf16.mxu0 0
        %1241 = vmatpush2.bf16.msra.mxu0 0
        %1242 = vmatprep.subr.bf16.mxu0 0
        %1243 = vmatpush2.bf16.msra.mxu0 0
        %1244 = vmatprep.subr.bf16.mxu0 0
        %1245 = vmatpush2.bf16.msra.mxu0 0
        %1246 = vmatprep.subr.bf16.mxu0 0
        %1247 = vmatpush2.bf16.msra.mxu0 0
        %1248 = vmatprep.subr.bf16.mxu0 0
        %1249 = vmatpush2.bf16.msra.mxu0 0
        %1250 = vmatprep.subr.bf16.mxu0 0
        %1251 = vmatpush2.bf16.msra.mxu0 0
        %1252 = vmatprep.subr.bf16.mxu0 0
        %1253 = vmatpush2.bf16.msra.mxu0 0
        %1254 = vmatprep.subr.bf16.mxu0 0
        %1255 = vmatpush2.bf16.msra.mxu0 0
        %1256 = vmatprep.mubr.bf16.mxu0 0
        %1257 = vmatmul.mubr.bf16.gmra.mxu0 %v1222
        %v1258 = vpop.f32.mrf.mxu0
        %v1259 = vadd.f32 %v1206, %v1258
        %v1260 = vpop.f32.mrf.mxu0
        %v1261 = vpop.f32.mrf.mxu0
        %v1262 = vadd.f32 %v1206, %v1261
        %v1263 = vpop.f32.mrf.mxu0
        %1264 = vdwg.mxu0
        %v1265 = vld [vmem:[%s1052] sm:$0xf]
        %v1266 = vld [vmem:[%s1052 + $0x4] sm:$0xf]
        %v1267 = vld [vmem:[%s1052 + $0x8] sm:$0xf]
        %v1268 = vld [vmem:[%s1052 + $0xc] sm:$0xf]
        %v1269 = vld [vmem:[%s871] sm:$0x1]
        %v1271 = vlaneseq
        %v1272 = vshrl.u32 %v1271, 7
        %v1273 = vsub.s32 0, %v1272
        %v1274 = vrot.slane %v1269, %v1273
        %v1280 = vunpack.c.l.b16 %v1265
        %v1281 = vunpack.c.l.b16 %v1266
        %v1282 = vunpack.c.l.b16 %v1267
        %v1283 = vunpack.c.l.b16 %v1268
        %v1284 = vpack.c.b16 %v1281, %v1280
        %v1285 = vpack.c.b16 %v1283, %v1282
        %1288 = vmatprep.subr.bf16.mxu0 0
        %1289 = vmatpush1.bf16.msra.mxu0 0
        %1290 = vmatprep.subr.bf16.mxu0 0
        %1291 = vmatpush1.bf16.msra.mxu0 0
        %1292 = vmatprep.subr.bf16.mxu0 0
        %1293 = vmatpush1.bf16.msra.mxu0 0
        %1294 = vmatprep.subr.bf16.mxu0 0
        %1295 = vmatpush1.bf16.msra.mxu0 0
        %1296 = vmatprep.subr.bf16.mxu0 0
        %1297 = vmatpush1.bf16.msra.mxu0 0
        %1298 = vmatprep.subr.bf16.mxu0 0
        %1299 = vmatpush1.bf16.msra.mxu0 0
        %1300 = vmatprep.subr.bf16.mxu0 0
        %1301 = vmatpush1.bf16.msra.mxu0 %v1285
        %1302 = vmatprep.subr.bf16.mxu0 0
        %1303 = vmatpush1.bf16.msra.mxu0 %v1284
        %1304 = vmatprep.subr.bf16.mxu0 0
        %1305 = vmatpush2.bf16.msra.mxu0 0
        %1306 = vmatprep.subr.bf16.mxu0 0
        %1307 = vmatpush2.bf16.msra.mxu0 0
        %1308 = vmatprep.subr.bf16.mxu0 0
        %1309 = vmatpush2.bf16.msra.mxu0 0
        %1310 = vmatprep.subr.bf16.mxu0 0
        %1311 = vmatpush2.bf16.msra.mxu0 0
        %1312 = vmatprep.subr.bf16.mxu0 0
        %1313 = vmatpush2.bf16.msra.mxu0 0
        %1314 = vmatprep.subr.bf16.mxu0 0
        %1315 = vmatpush2.bf16.msra.mxu0 0
        %1316 = vmatprep.subr.bf16.mxu0 0
        %1317 = vmatpush2.bf16.msra.mxu0 0
        %1318 = vmatprep.subr.bf16.mxu0 0
        %1319 = vmatpush2.bf16.msra.mxu0 0
        %1320 = vmatprep.mubr.bf16.mxu0 0
        %1321 = vmatmul.mubr.bf16.gmra.mxu0 %v1222
        %v1322 = vpop.f32.mrf.mxu0
        %v1323 = vadd.f32 %v1274, %v1322
        %v1324 = vpop.f32.mrf.mxu0
        %v1325 = vpop.f32.mrf.mxu0
        %v1326 = vadd.f32 %v1274, %v1325
        %v1327 = vpop.f32.mrf.mxu0
        %1328 = vdwg.mxu0
        %v1329 = vld [vmem:[%s880] sm:$0xf]
        %v1330 = vld [vmem:[%s880 + $0x4] sm:$0xf]
        %v1331 = vld [vmem:[%s880 + $0x8] sm:$0xf]
        %v1332 = vld [vmem:[%s880 + $0xc] sm:$0xf]
        %v1333 = vld [vmem:[%s888] sm:$0x1]
        %v1335 = vlaneseq
        %v1336 = vshrl.u32 %v1335, 7
        %v1337 = vsub.s32 0, %v1336
        %v1338 = vrot.slane %v1333, %v1337
        %v1344 = vunpack.c.l.b16 %v1329
        %v1345 = vunpack.c.l.b16 %v1330
        %v1346 = vunpack.c.l.b16 %v1331
        %v1347 = vunpack.c.l.b16 %v1332
        %v1348 = vpack.c.b16 %v1345, %v1344
        %v1349 = vpack.c.b16 %v1347, %v1346
        %1352 = vmatprep.subr.bf16.mxu0 0
        %1353 = vmatpush1.bf16.msra.mxu0 0
        %1354 = vmatprep.subr.bf16.mxu0 0
        %1355 = vmatpush1.bf16.msra.mxu0 0
        %1356 = vmatprep.subr.bf16.mxu0 0
        %1357 = vmatpush1.bf16.msra.mxu0 0
        %1358 = vmatprep.subr.bf16.mxu0 0
        %1359 = vmatpush1.bf16.msra.mxu0 0
        %1360 = vmatprep.subr.bf16.mxu0 0
        %1361 = vmatpush1.bf16.msra.mxu0 0
        %1362 = vmatprep.subr.bf16.mxu0 0
        %1363 = vmatpush1.bf16.msra.mxu0 0
        %1364 = vmatprep.subr.bf16.mxu0 0
        %1365 = vmatpush1.bf16.msra.mxu0 %v1349
        %1366 = vmatprep.subr.bf16.mxu0 0
        %1367 = vmatpush1.bf16.msra.mxu0 %v1348
        %1368 = vmatprep.subr.bf16.mxu0 0
        %1369 = vmatpush2.bf16.msra.mxu0 0
        %1370 = vmatprep.subr.bf16.mxu0 0
        %1371 = vmatpush2.bf16.msra.mxu0 0
        %1372 = vmatprep.subr.bf16.mxu0 0
        %1373 = vmatpush2.bf16.msra.mxu0 0
        %1374 = vmatprep.subr.bf16.mxu0 0
        %1375 = vmatpush2.bf16.msra.mxu0 0
        %1376 = vmatprep.subr.bf16.mxu0 0
        %1377 = vmatpush2.bf16.msra.mxu0 0
        %1378 = vmatprep.subr.bf16.mxu0 0
        %1379 = vmatpush2.bf16.msra.mxu0 0
        %1380 = vmatprep.subr.bf16.mxu0 0
        %1381 = vmatpush2.bf16.msra.mxu0 0
        %1382 = vmatprep.subr.bf16.mxu0 0
        %1383 = vmatpush2.bf16.msra.mxu0 0
        %1384 = vmatprep.mubr.bf16.mxu0 0
        %1385 = vmatmul.mubr.bf16.gmra.mxu0 %v1222
        %v1386 = vpop.f32.mrf.mxu0
        %v1387 = vadd.f32 %v1338, %v1386
        %v1388 = vpop.f32.mrf.mxu0
        %v1389 = vpop.f32.mrf.mxu0
        %v1390 = vadd.f32 %v1338, %v1389
        %v1391 = vpop.f32.mrf.mxu0
        %1392 = vdwg.mxu0
        %1393 = vxpose.xlu0.b32.start [1/16] %v1259, 128
        %1394 = vxpose.xlu0.b32.cont [2/16] 0.0, 128
        %1395 = vxpose.xlu0.b32.cont [3/16] 0.0, 128
        %1396 = vxpose.xlu0.b32.cont [4/16] 0.0, 128
        %1397 = vxpose.xlu0.b32.cont [5/16] 0.0, 128
        %1398 = vxpose.xlu0.b32.cont [6/16] 0.0, 128
        %1399 = vxpose.xlu0.b32.cont [7/16] 0.0, 128
        %1400 = vxpose.xlu0.b32.cont [8/16] 0.0, 128
        %1401 = vxpose.xlu0.b32.cont [9/16] 0.0, 128
        %1402 = vxpose.xlu0.b32.cont [10/16] 0.0, 128
        %1403 = vxpose.xlu0.b32.cont [11/16] 0.0, 128
        %1404 = vxpose.xlu0.b32.cont [12/16] 0.0, 128
        %1405 = vxpose.xlu0.b32.cont [13/16] 0.0, 128
        %1406 = vxpose.xlu0.b32.cont [14/16] 0.0, 128
        %1407 = vxpose.xlu0.b32.cont [15/16] 0.0, 128
        %1408 = vxpose.xlu0.b32.end [16/16] 0.0, 128
        %v1409 = vpop.trf.xlu0
        %v1410 = vpop.trf.xlu0
        %v1411 = vpop.trf.xlu0
        %v1412 = vpop.trf.xlu0
        %v1413 = vpop.trf.xlu0
        %v1414 = vpop.trf.xlu0
        %v1415 = vpop.trf.xlu0
        %v1416 = vpop.trf.xlu0
        %v1417 = vpop.trf.xlu0
        %v1418 = vpop.trf.xlu0
        %v1419 = vpop.trf.xlu0
        %v1420 = vpop.trf.xlu0
        %v1421 = vpop.trf.xlu0
        %v1422 = vpop.trf.xlu0
        %v1423 = vpop.trf.xlu0
        %v1424 = vpop.trf.xlu0
        %1425 = vxpose.xlu0.b32.start [1/16] %v1262, 128
        %1426 = vxpose.xlu0.b32.cont [2/16] 0.0, 128
        %1427 = vxpose.xlu0.b32.cont [3/16] 0.0, 128
        %1428 = vxpose.xlu0.b32.cont [4/16] 0.0, 128
        %1429 = vxpose.xlu0.b32.cont [5/16] 0.0, 128
        %1430 = vxpose.xlu0.b32.cont [6/16] 0.0, 128
        %1431 = vxpose.xlu0.b32.cont [7/16] 0.0, 128
        %1432 = vxpose.xlu0.b32.cont [8/16] 0.0, 128
        %1433 = vxpose.xlu0.b32.cont [9/16] 0.0, 128
        %1434 = vxpose.xlu0.b32.cont [10/16] 0.0, 128
        %1435 = vxpose.xlu0.b32.cont [11/16] 0.0, 128
        %1436 = vxpose.xlu0.b32.cont [12/16] 0.0, 128
        %1437 = vxpose.xlu0.b32.cont [13/16] 0.0, 128
        %1438 = vxpose.xlu0.b32.cont [14/16] 0.0, 128
        %1439 = vxpose.xlu0.b32.cont [15/16] 0.0, 128
        %1440 = vxpose.xlu0.b32.end [16/16] 0.0, 128
        %v1441 = vpop.trf.xlu0
        %v1442 = vpop.trf.xlu0
        %v1443 = vpop.trf.xlu0
        %v1444 = vpop.trf.xlu0
        %v1445 = vpop.trf.xlu0
        %v1446 = vpop.trf.xlu0
        %v1447 = vpop.trf.xlu0
        %v1448 = vpop.trf.xlu0
        %v1449 = vpop.trf.xlu0
        %v1450 = vpop.trf.xlu0
        %v1451 = vpop.trf.xlu0
        %v1452 = vpop.trf.xlu0
        %v1453 = vpop.trf.xlu0
        %v1454 = vpop.trf.xlu0
        %v1455 = vpop.trf.xlu0
        %v1456 = vpop.trf.xlu0
        %1457 = vxpose.xlu0.b32.start [1/16] %v1409, 128
        %1458 = vxpose.xlu0.b32.cont [2/16] 0.0, 128
        %1459 = vxpose.xlu0.b32.cont [3/16] 0.0, 128
        %1460 = vxpose.xlu0.b32.cont [4/16] 0.0, 128
        %1461 = vxpose.xlu0.b32.cont [5/16] 0.0, 128
        %1462 = vxpose.xlu0.b32.cont [6/16] 0.0, 128
        %1463 = vxpose.xlu0.b32.cont [7/16] 0.0, 128
        %1464 = vxpose.xlu0.b32.cont [8/16] 0.0, 128
        %1465 = vxpose.xlu0.b32.cont [9/16] 0.0, 128
        %1466 = vxpose.xlu0.b32.cont [10/16] 0.0, 128
        %1467 = vxpose.xlu0.b32.cont [11/16] 0.0, 128
        %1468 = vxpose.xlu0.b32.cont [12/16] 0.0, 128
        %1469 = vxpose.xlu0.b32.cont [13/16] 0.0, 128
        %1470 = vxpose.xlu0.b32.cont [14/16] 0.0, 128
        %1471 = vxpose.xlu0.b32.cont [15/16] 0.0, 128
        %1472 = vxpose.xlu0.b32.end [16/16] 0.0, 128
        %v1473 = vpop.trf.xlu0
        %v1474 = vpop.trf.xlu0
        %v1475 = vpop.trf.xlu0
        %v1476 = vpop.trf.xlu0
        %v1477 = vpop.trf.xlu0
        %v1478 = vpop.trf.xlu0
        %v1479 = vpop.trf.xlu0
        %v1480 = vpop.trf.xlu0
        %v1481 = vpop.trf.xlu0
        %v1482 = vpop.trf.xlu0
        %v1483 = vpop.trf.xlu0
        %v1484 = vpop.trf.xlu0
        %v1485 = vpop.trf.xlu0
        %v1486 = vpop.trf.xlu0
        %v1487 = vpop.trf.xlu0
        %v1488 = vpop.trf.xlu0
        %1489 = vxpose.xlu0.b32.start [1/16] %v1410, 128
        %1490 = vxpose.xlu0.b32.cont [2/16] 0.0, 128
        %1491 = vxpose.xlu0.b32.cont [3/16] 0.0, 128
        %1492 = vxpose.xlu0.b32.cont [4/16] 0.0, 128
        %1493 = vxpose.xlu0.b32.cont [5/16] 0.0, 128
        %1494 = vxpose.xlu0.b32.cont [6/16] 0.0, 128
        %1495 = vxpose.xlu0.b32.cont [7/16] 0.0, 128
        %1496 = vxpose.xlu0.b32.cont [8/16] 0.0, 128
        %1497 = vxpose.xlu0.b32.cont [9/16] 0.0, 128
        %1498 = vxpose.xlu0.b32.cont [10/16] 0.0, 128
        %1499 = vxpose.xlu0.b32.cont [11/16] 0.0, 128
        %1500 = vxpose.xlu0.b32.cont [12/16] 0.0, 128
        %1501 = vxpose.xlu0.b32.cont [13/16] 0.0, 128
        %1502 = vxpose.xlu0.b32.cont [14/16] 0.0, 128
        %1503 = vxpose.xlu0.b32.cont [15/16] 0.0, 128
        %1504 = vxpose.xlu0.b32.end [16/16] 0.0, 128
        %v1505 = vpop.trf.xlu0
        %v1506 = vpop.trf.xlu0
        %v1507 = vpop.trf.xlu0
        %v1508 = vpop.trf.xlu0
        %v1509 = vpop.trf.xlu0
        %v1510 = vpop.trf.xlu0
        %v1511 = vpop.trf.xlu0
        %v1512 = vpop.trf.xlu0
        %v1513 = vpop.trf.xlu0
        %v1514 = vpop.trf.xlu0
        %v1515 = vpop.trf.xlu0
        %v1516 = vpop.trf.xlu0
        %v1517 = vpop.trf.xlu0
        %v1518 = vpop.trf.xlu0
        %v1519 = vpop.trf.xlu0
        %v1520 = vpop.trf.xlu0
        %1521 = vxpose.xlu0.b32.start [1/16] %v1411, 128
        %1522 = vxpose.xlu0.b32.cont [2/16] 0.0, 128
        %1523 = vxpose.xlu0.b32.cont [3/16] 0.0, 128
        %1524 = vxpose.xlu0.b32.cont [4/16] 0.0, 128
        %1525 = vxpose.xlu0.b32.cont [5/16] 0.0, 128
        %1526 = vxpose.xlu0.b32.cont [6/16] 0.0, 128
        %1527 = vxpose.xlu0.b32.cont [7/16] 0.0, 128
        %1528 = vxpose.xlu0.b32.cont [8/16] 0.0, 128
        %1529 = vxpose.xlu0.b32.cont [9/16] 0.0, 128
        %1530 = vxpose.xlu0.b32.cont [10/16] 0.0, 128
        %1531 = vxpose.xlu0.b32.cont [11/16] 0.0, 128
        %1532 = vxpose.xlu0.b32.cont [12/16] 0.0, 128
        %1533 = vxpose.xlu0.b32.cont [13/16] 0.0, 128
        %1534 = vxpose.xlu0.b32.cont [14/16] 0.0, 128
        %1535 = vxpose.xlu0.b32.cont [15/16] 0.0, 128
        %1536 = vxpose.xlu0.b32.end [16/16] 0.0, 128
        %v1537 = vpop.trf.xlu0
        %v1538 = vpop.trf.xlu0
        %v1539 = vpop.trf.xlu0
        %v1540 = vpop.trf.xlu0
        %v1541 = vpop.trf.xlu0
        %v1542 = vpop.trf.xlu0
        %v1543 = vpop.trf.xlu0
        %v1544 = vpop.trf.xlu0
        %v1545 = vpop.trf.xlu0
        %v1546 = vpop.trf.xlu0
        %v1547 = vpop.trf.xlu0
        %v1548 = vpop.trf.xlu0
        %v1549 = vpop.trf.xlu0
        %v1550 = vpop.trf.xlu0
        %v1551 = vpop.trf.xlu0
        %v1552 = vpop.trf.xlu0
        %1553 = vxpose.xlu0.b32.start [1/16] %v1412, 128
        %1554 = vxpose.xlu0.b32.cont [2/16] 0.0, 128
        %1555 = vxpose.xlu0.b32.cont [3/16] 0.0, 128
        %1556 = vxpose.xlu0.b32.cont [4/16] 0.0, 128
        %1557 = vxpose.xlu0.b32.cont [5/16] 0.0, 128
        %1558 = vxpose.xlu0.b32.cont [6/16] 0.0, 128
        %1559 = vxpose.xlu0.b32.cont [7/16] 0.0, 128
        %1560 = vxpose.xlu0.b32.cont [8/16] 0.0, 128
        %1561 = vxpose.xlu0.b32.cont [9/16] 0.0, 128
        %1562 = vxpose.xlu0.b32.cont [10/16] 0.0, 128
        %1563 = vxpose.xlu0.b32.cont [11/16] 0.0, 128
        %1564 = vxpose.xlu0.b32.cont [12/16] 0.0, 128
        %1565 = vxpose.xlu0.b32.cont [13/16] 0.0, 128
        %1566 = vxpose.xlu0.b32.cont [14/16] 0.0, 128
        %1567 = vxpose.xlu0.b32.cont [15/16] 0.0, 128
        %1568 = vxpose.xlu0.b32.end [16/16] 0.0, 128
        %v1569 = vpop.trf.xlu0
        %v1570 = vpop.trf.xlu0
        %v1571 = vpop.trf.xlu0
        %v1572 = vpop.trf.xlu0
        %v1573 = vpop.trf.xlu0
        %v1574 = vpop.trf.xlu0
        %v1575 = vpop.trf.xlu0
        %v1576 = vpop.trf.xlu0
        %v1577 = vpop.trf.xlu0
        %v1578 = vpop.trf.xlu0
        %v1579 = vpop.trf.xlu0
        %v1580 = vpop.trf.xlu0
        %v1581 = vpop.trf.xlu0
        %v1582 = vpop.trf.xlu0
        %v1583 = vpop.trf.xlu0
        %v1584 = vpop.trf.xlu0
        %1585 = vxpose.xlu0.b32.start [1/16] %v1441, 128
        %1586 = vxpose.xlu0.b32.cont [2/16] 0.0, 128
        %1587 = vxpose.xlu0.b32.cont [3/16] 0.0, 128
        %1588 = vxpose.xlu0.b32.cont [4/16] 0.0, 128
        %1589 = vxpose.xlu0.b32.cont [5/16] 0.0, 128
        %1590 = vxpose.xlu0.b32.cont [6/16] 0.0, 128
        %1591 = vxpose.xlu0.b32.cont [7/16] 0.0, 128
        %1592 = vxpose.xlu0.b32.cont [8/16] 0.0, 128
        %1593 = vxpose.xlu0.b32.cont [9/16] 0.0, 128
        %1594 = vxpose.xlu0.b32.cont [10/16] 0.0, 128
        %1595 = vxpose.xlu0.b32.cont [11/16] 0.0, 128
        %1596 = vxpose.xlu0.b32.cont [12/16] 0.0, 128
        %1597 = vxpose.xlu0.b32.cont [13/16] 0.0, 128
        %1598 = vxpose.xlu0.b32.cont [14/16] 0.0, 128
        %1599 = vxpose.xlu0.b32.cont [15/16] 0.0, 128
        %1600 = vxpose.xlu0.b32.end [16/16] 0.0, 128
        %v1601 = vpop.trf.xlu0
        %v1602 = vpop.trf.xlu0
        %v1603 = vpop.trf.xlu0
        %v1604 = vpop.trf.xlu0
        %v1605 = vpop.trf.xlu0
        %v1606 = vpop.trf.xlu0
        %v1607 = vpop.trf.xlu0
        %v1608 = vpop.trf.xlu0
        %v1609 = vpop.trf.xlu0
        %v1610 = vpop.trf.xlu0
        %v1611 = vpop.trf.xlu0
        %v1612 = vpop.trf.xlu0
        %v1613 = vpop.trf.xlu0
        %v1614 = vpop.trf.xlu0
        %v1615 = vpop.trf.xlu0
        %v1616 = vpop.trf.xlu0
        %1617 = vxpose.xlu0.b32.start [1/16] %v1442, 128
        %1618 = vxpose.xlu0.b32.cont [2/16] 0.0, 128
        %1619 = vxpose.xlu0.b32.cont [3/16] 0.0, 128
        %1620 = vxpose.xlu0.b32.cont [4/16] 0.0, 128
        %1621 = vxpose.xlu0.b32.cont [5/16] 0.0, 128
        %1622 = vxpose.xlu0.b32.cont [6/16] 0.0, 128
        %1623 = vxpose.xlu0.b32.cont [7/16] 0.0, 128
        %1624 = vxpose.xlu0.b32.cont [8/16] 0.0, 128
        %1625 = vxpose.xlu0.b32.cont [9/16] 0.0, 128
        %1626 = vxpose.xlu0.b32.cont [10/16] 0.0, 128
        %1627 = vxpose.xlu0.b32.cont [11/16] 0.0, 128
        %1628 = vxpose.xlu0.b32.cont [12/16] 0.0, 128
        %1629 = vxpose.xlu0.b32.cont [13/16] 0.0, 128
        %1630 = vxpose.xlu0.b32.cont [14/16] 0.0, 128
        %1631 = vxpose.xlu0.b32.cont [15/16] 0.0, 128
        %1632 = vxpose.xlu0.b32.end [16/16] 0.0, 128
        %v1633 = vpop.trf.xlu0
        %v1634 = vpop.trf.xlu0
        %v1635 = vpop.trf.xlu0
        %v1636 = vpop.trf.xlu0
        %v1637 = vpop.trf.xlu0
        %v1638 = vpop.trf.xlu0
        %v1639 = vpop.trf.xlu0
        %v1640 = vpop.trf.xlu0
        %v1641 = vpop.trf.xlu0
        %v1642 = vpop.trf.xlu0
        %v1643 = vpop.trf.xlu0
        %v1644 = vpop.trf.xlu0
        %v1645 = vpop.trf.xlu0
        %v1646 = vpop.trf.xlu0
        %v1647 = vpop.trf.xlu0
        %v1648 = vpop.trf.xlu0
        %1649 = vxpose.xlu0.b32.start [1/16] %v1443, 128
        %1650 = vxpose.xlu0.b32.cont [2/16] 0.0, 128
        %1651 = vxpose.xlu0.b32.cont [3/16] 0.0, 128
        %1652 = vxpose.xlu0.b32.cont [4/16] 0.0, 128
        %1653 = vxpose.xlu0.b32.cont [5/16] 0.0, 128
        %1654 = vxpose.xlu0.b32.cont [6/16] 0.0, 128
        %1655 = vxpose.xlu0.b32.cont [7/16] 0.0, 128
        %1656 = vxpose.xlu0.b32.cont [8/16] 0.0, 128
        %1657 = vxpose.xlu0.b32.cont [9/16] 0.0, 128
        %1658 = vxpose.xlu0.b32.cont [10/16] 0.0, 128
        %1659 = vxpose.xlu0.b32.cont [11/16] 0.0, 128
        %1660 = vxpose.xlu0.b32.cont [12/16] 0.0, 128
        %1661 = vxpose.xlu0.b32.cont [13/16] 0.0, 128
        %1662 = vxpose.xlu0.b32.cont [14/16] 0.0, 128
        %1663 = vxpose.xlu0.b32.cont [15/16] 0.0, 128
        %1664 = vxpose.xlu0.b32.end [16/16] 0.0, 128
        %v1665 = vpop.trf.xlu0
        %v1666 = vpop.trf.xlu0
        %v1667 = vpop.trf.xlu0
        %v1668 = vpop.trf.xlu0
        %v1669 = vpop.trf.xlu0
        %v1670 = vpop.trf.xlu0
        %v1671 = vpop.trf.xlu0
        %v1672 = vpop.trf.xlu0
        %v1673 = vpop.trf.xlu0
        %v1674 = vpop.trf.xlu0
        %v1675 = vpop.trf.xlu0
        %v1676 = vpop.trf.xlu0
        %v1677 = vpop.trf.xlu0
        %v1678 = vpop.trf.xlu0
        %v1679 = vpop.trf.xlu0
        %v1680 = vpop.trf.xlu0
        %1681 = vxpose.xlu0.b32.start [1/16] %v1444, 128
        %1682 = vxpose.xlu0.b32.cont [2/16] 0.0, 128
        %1683 = vxpose.xlu0.b32.cont [3/16] 0.0, 128
        %1684 = vxpose.xlu0.b32.cont [4/16] 0.0, 128
        %1685 = vxpose.xlu0.b32.cont [5/16] 0.0, 128
        %1686 = vxpose.xlu0.b32.cont [6/16] 0.0, 128
        %1687 = vxpose.xlu0.b32.cont [7/16] 0.0, 128
        %1688 = vxpose.xlu0.b32.cont [8/16] 0.0, 128
        %1689 = vxpose.xlu0.b32.cont [9/16] 0.0, 128
        %1690 = vxpose.xlu0.b32.cont [10/16] 0.0, 128
        %1691 = vxpose.xlu0.b32.cont [11/16] 0.0, 128
        %1692 = vxpose.xlu0.b32.cont [12/16] 0.0, 128
        %1693 = vxpose.xlu0.b32.cont [13/16] 0.0, 128
        %1694 = vxpose.xlu0.b32.cont [14/16] 0.0, 128
        %1695 = vxpose.xlu0.b32.cont [15/16] 0.0, 128
        %1696 = vxpose.xlu0.b32.end [16/16] 0.0, 128
        %v1697 = vpop.trf.xlu0
        %v1698 = vpop.trf.xlu0
        %v1699 = vpop.trf.xlu0
        %v1700 = vpop.trf.xlu0
        %v1701 = vpop.trf.xlu0
        %v1702 = vpop.trf.xlu0
        %v1703 = vpop.trf.xlu0
        %v1704 = vpop.trf.xlu0
        %v1705 = vpop.trf.xlu0
        %v1706 = vpop.trf.xlu0
        %v1707 = vpop.trf.xlu0
        %v1708 = vpop.trf.xlu0
        %v1709 = vpop.trf.xlu0
        %v1710 = vpop.trf.xlu0
        %v1711 = vpop.trf.xlu0
        %v1712 = vpop.trf.xlu0
        %1713 = vxpose.xlu0.b32.start [1/16] %v1323, 128
        %1714 = vxpose.xlu0.b32.cont [2/16] 0.0, 128
        %1715 = vxpose.xlu0.b32.cont [3/16] 0.0, 128
        %1716 = vxpose.xlu0.b32.cont [4/16] 0.0, 128
        %1717 = vxpose.xlu0.b32.cont [5/16] 0.0, 128
        %1718 = vxpose.xlu0.b32.cont [6/16] 0.0, 128
        %1719 = vxpose.xlu0.b32.cont [7/16] 0.0, 128
        %1720 = vxpose.xlu0.b32.cont [8/16] 0.0, 128
        %1721 = vxpose.xlu0.b32.cont [9/16] 0.0, 128
        %1722 = vxpose.xlu0.b32.cont [10/16] 0.0, 128
        %1723 = vxpose.xlu0.b32.cont [11/16] 0.0, 128
        %1724 = vxpose.xlu0.b32.cont [12/16] 0.0, 128
        %1725 = vxpose.xlu0.b32.cont [13/16] 0.0, 128
        %1726 = vxpose.xlu0.b32.cont [14/16] 0.0, 128
        %1727 = vxpose.xlu0.b32.cont [15/16] 0.0, 128
        %1728 = vxpose.xlu0.b32.end [16/16] 0.0, 128
        %v1729 = vpop.trf.xlu0
        %v1730 = vpop.trf.xlu0
        %v1731 = vpop.trf.xlu0
        %v1732 = vpop.trf.xlu0
        %v1733 = vpop.trf.xlu0
        %v1734 = vpop.trf.xlu0
        %v1735 = vpop.trf.xlu0
        %v1736 = vpop.trf.xlu0
        %v1737 = vpop.trf.xlu0
        %v1738 = vpop.trf.xlu0
        %v1739 = vpop.trf.xlu0
        %v1740 = vpop.trf.xlu0
        %v1741 = vpop.trf.xlu0
        %v1742 = vpop.trf.xlu0
        %v1743 = vpop.trf.xlu0
        %v1744 = vpop.trf.xlu0
        %1745 = vxpose.xlu0.b32.start [1/16] %v1326, 128
        %1746 = vxpose.xlu0.b32.cont [2/16] 0.0, 128
        %1747 = vxpose.xlu0.b32.cont [3/16] 0.0, 128
        %1748 = vxpose.xlu0.b32.cont [4/16] 0.0, 128
        %1749 = vxpose.xlu0.b32.cont [5/16] 0.0, 128
        %1750 = vxpose.xlu0.b32.cont [6/16] 0.0, 128
        %1751 = vxpose.xlu0.b32.cont [7/16] 0.0, 128
        %1752 = vxpose.xlu0.b32.cont [8/16] 0.0, 128
        %1753 = vxpose.xlu0.b32.cont [9/16] 0.0, 128
        %1754 = vxpose.xlu0.b32.cont [10/16] 0.0, 128
        %1755 = vxpose.xlu0.b32.cont [11/16] 0.0, 128
        %1756 = vxpose.xlu0.b32.cont [12/16] 0.0, 128
        %1757 = vxpose.xlu0.b32.cont [13/16] 0.0, 128
        %1758 = vxpose.xlu0.b32.cont [14/16] 0.0, 128
        %1759 = vxpose.xlu0.b32.cont [15/16] 0.0, 128
        %1760 = vxpose.xlu0.b32.end [16/16] 0.0, 128
        %v1761 = vpop.trf.xlu0
        %v1762 = vpop.trf.xlu0
        %v1763 = vpop.trf.xlu0
        %v1764 = vpop.trf.xlu0
        %v1765 = vpop.trf.xlu0
        %v1766 = vpop.trf.xlu0
        %v1767 = vpop.trf.xlu0
        %v1768 = vpop.trf.xlu0
        %v1769 = vpop.trf.xlu0
        %v1770 = vpop.trf.xlu0
        %v1771 = vpop.trf.xlu0
        %v1772 = vpop.trf.xlu0
        %v1773 = vpop.trf.xlu0
        %v1774 = vpop.trf.xlu0
        %v1775 = vpop.trf.xlu0
        %v1776 = vpop.trf.xlu0
        %1777 = vxpose.xlu0.b32.start [1/16] %v1729, 128
        %1778 = vxpose.xlu0.b32.cont [2/16] 0.0, 128
        %1779 = vxpose.xlu0.b32.cont [3/16] 0.0, 128
        %1780 = vxpose.xlu0.b32.cont [4/16] 0.0, 128
        %1781 = vxpose.xlu0.b32.cont [5/16] 0.0, 128
        %1782 = vxpose.xlu0.b32.cont [6/16] 0.0, 128
        %1783 = vxpose.xlu0.b32.cont [7/16] 0.0, 128
        %1784 = vxpose.xlu0.b32.cont [8/16] 0.0, 128
        %1785 = vxpose.xlu0.b32.cont [9/16] 0.0, 128
        %1786 = vxpose.xlu0.b32.cont [10/16] 0.0, 128
        %1787 = vxpose.xlu0.b32.cont [11/16] 0.0, 128
        %1788 = vxpose.xlu0.b32.cont [12/16] 0.0, 128
        %1789 = vxpose.xlu0.b32.cont [13/16] 0.0, 128
        %1790 = vxpose.xlu0.b32.cont [14/16] 0.0, 128
        %1791 = vxpose.xlu0.b32.cont [15/16] 0.0, 128
        %1792 = vxpose.xlu0.b32.end [16/16] 0.0, 128
        %v1793 = vpop.trf.xlu0
        %v1794 = vpop.trf.xlu0
        %v1795 = vpop.trf.xlu0
        %v1796 = vpop.trf.xlu0
        %v1797 = vpop.trf.xlu0
        %v1798 = vpop.trf.xlu0
        %v1799 = vpop.trf.xlu0
        %v1800 = vpop.trf.xlu0
        %v1801 = vpop.trf.xlu0
        %v1802 = vpop.trf.xlu0
        %v1803 = vpop.trf.xlu0
        %v1804 = vpop.trf.xlu0
        %v1805 = vpop.trf.xlu0
        %v1806 = vpop.trf.xlu0
        %v1807 = vpop.trf.xlu0
        %v1808 = vpop.trf.xlu0
        %1809 = vxpose.xlu0.b32.start [1/16] %v1730, 128
        %1810 = vxpose.xlu0.b32.cont [2/16] 0.0, 128
        %1811 = vxpose.xlu0.b32.cont [3/16] 0.0, 128
        %1812 = vxpose.xlu0.b32.cont [4/16] 0.0, 128
        %1813 = vxpose.xlu0.b32.cont [5/16] 0.0, 128
        %1814 = vxpose.xlu0.b32.cont [6/16] 0.0, 128
        %1815 = vxpose.xlu0.b32.cont [7/16] 0.0, 128
        %1816 = vxpose.xlu0.b32.cont [8/16] 0.0, 128
        %1817 = vxpose.xlu0.b32.cont [9/16] 0.0, 128
        %1818 = vxpose.xlu0.b32.cont [10/16] 0.0, 128
        %1819 = vxpose.xlu0.b32.cont [11/16] 0.0, 128
        %1820 = vxpose.xlu0.b32.cont [12/16] 0.0, 128
        %1821 = vxpose.xlu0.b32.cont [13/16] 0.0, 128
        %1822 = vxpose.xlu0.b32.cont [14/16] 0.0, 128
        %1823 = vxpose.xlu0.b32.cont [15/16] 0.0, 128
        %1824 = vxpose.xlu0.b32.end [16/16] 0.0, 128
        %v1825 = vpop.trf.xlu0
        %v1826 = vpop.trf.xlu0
        %v1827 = vpop.trf.xlu0
        %v1828 = vpop.trf.xlu0
        %v1829 = vpop.trf.xlu0
        %v1830 = vpop.trf.xlu0
        %v1831 = vpop.trf.xlu0
        %v1832 = vpop.trf.xlu0
        %v1833 = vpop.trf.xlu0
        %v1834 = vpop.trf.xlu0
        %v1835 = vpop.trf.xlu0
        %v1836 = vpop.trf.xlu0
        %v1837 = vpop.trf.xlu0
        %v1838 = vpop.trf.xlu0
        %v1839 = vpop.trf.xlu0
        %v1840 = vpop.trf.xlu0
        %1841 = vxpose.xlu0.b32.start [1/16] %v1731, 128
        %1842 = vxpose.xlu0.b32.cont [2/16] 0.0, 128
        %1843 = vxpose.xlu0.b32.cont [3/16] 0.0, 128
        %1844 = vxpose.xlu0.b32.cont [4/16] 0.0, 128
        %1845 = vxpose.xlu0.b32.cont [5/16] 0.0, 128
        %1846 = vxpose.xlu0.b32.cont [6/16] 0.0, 128
        %1847 = vxpose.xlu0.b32.cont [7/16] 0.0, 128
        %1848 = vxpose.xlu0.b32.cont [8/16] 0.0, 128
        %1849 = vxpose.xlu0.b32.cont [9/16] 0.0, 128
        %1850 = vxpose.xlu0.b32.cont [10/16] 0.0, 128
        %1851 = vxpose.xlu0.b32.cont [11/16] 0.0, 128
        %1852 = vxpose.xlu0.b32.cont [12/16] 0.0, 128
        %1853 = vxpose.xlu0.b32.cont [13/16] 0.0, 128
        %1854 = vxpose.xlu0.b32.cont [14/16] 0.0, 128
        %1855 = vxpose.xlu0.b32.cont [15/16] 0.0, 128
        %1856 = vxpose.xlu0.b32.end [16/16] 0.0, 128
        %v1857 = vpop.trf.xlu0
        %v1858 = vpop.trf.xlu0
        %v1859 = vpop.trf.xlu0
        %v1860 = vpop.trf.xlu0
        %v1861 = vpop.trf.xlu0
        %v1862 = vpop.trf.xlu0
        %v1863 = vpop.trf.xlu0
        %v1864 = vpop.trf.xlu0
        %v1865 = vpop.trf.xlu0
        %v1866 = vpop.trf.xlu0
        %v1867 = vpop.trf.xlu0
        %v1868 = vpop.trf.xlu0
        %v1869 = vpop.trf.xlu0
        %v1870 = vpop.trf.xlu0
        %v1871 = vpop.trf.xlu0
        %v1872 = vpop.trf.xlu0
        %1873 = vxpose.xlu0.b32.start [1/16] %v1732, 128
        %1874 = vxpose.xlu0.b32.cont [2/16] 0.0, 128
        %1875 = vxpose.xlu0.b32.cont [3/16] 0.0, 128
        %1876 = vxpose.xlu0.b32.cont [4/16] 0.0, 128
        %1877 = vxpose.xlu0.b32.cont [5/16] 0.0, 128
        %1878 = vxpose.xlu0.b32.cont [6/16] 0.0, 128
        %1879 = vxpose.xlu0.b32.cont [7/16] 0.0, 128
        %1880 = vxpose.xlu0.b32.cont [8/16] 0.0, 128
        %1881 = vxpose.xlu0.b32.cont [9/16] 0.0, 128
        %1882 = vxpose.xlu0.b32.cont [10/16] 0.0, 128
        %1883 = vxpose.xlu0.b32.cont [11/16] 0.0, 128
        %1884 = vxpose.xlu0.b32.cont [12/16] 0.0, 128
        %1885 = vxpose.xlu0.b32.cont [13/16] 0.0, 128
        %1886 = vxpose.xlu0.b32.cont [14/16] 0.0, 128
        %1887 = vxpose.xlu0.b32.cont [15/16] 0.0, 128
        %1888 = vxpose.xlu0.b32.end [16/16] 0.0, 128
        %v1889 = vpop.trf.xlu0
        %v1890 = vpop.trf.xlu0
        %v1891 = vpop.trf.xlu0
        %v1892 = vpop.trf.xlu0
        %v1893 = vpop.trf.xlu0
        %v1894 = vpop.trf.xlu0
        %v1895 = vpop.trf.xlu0
        %v1896 = vpop.trf.xlu0
        %v1897 = vpop.trf.xlu0
        %v1898 = vpop.trf.xlu0
        %v1899 = vpop.trf.xlu0
        %v1900 = vpop.trf.xlu0
        %v1901 = vpop.trf.xlu0
        %v1902 = vpop.trf.xlu0
        %v1903 = vpop.trf.xlu0
        %v1904 = vpop.trf.xlu0
        %1905 = vxpose.xlu0.b32.start [1/16] %v1761, 128
        %1906 = vxpose.xlu0.b32.cont [2/16] 0.0, 128
        %1907 = vxpose.xlu0.b32.cont [3/16] 0.0, 128
        %1908 = vxpose.xlu0.b32.cont [4/16] 0.0, 128
        %1909 = vxpose.xlu0.b32.cont [5/16] 0.0, 128
        %1910 = vxpose.xlu0.b32.cont [6/16] 0.0, 128
        %1911 = vxpose.xlu0.b32.cont [7/16] 0.0, 128
        %1912 = vxpose.xlu0.b32.cont [8/16] 0.0, 128
        %1913 = vxpose.xlu0.b32.cont [9/16] 0.0, 128
        %1914 = vxpose.xlu0.b32.cont [10/16] 0.0, 128
        %1915 = vxpose.xlu0.b32.cont [11/16] 0.0, 128
        %1916 = vxpose.xlu0.b32.cont [12/16] 0.0, 128
        %1917 = vxpose.xlu0.b32.cont [13/16] 0.0, 128
        %1918 = vxpose.xlu0.b32.cont [14/16] 0.0, 128
        %1919 = vxpose.xlu0.b32.cont [15/16] 0.0, 128
        %1920 = vxpose.xlu0.b32.end [16/16] 0.0, 128
        %v1921 = vpop.trf.xlu0
        %v1922 = vpop.trf.xlu0
        %v1923 = vpop.trf.xlu0
        %v1924 = vpop.trf.xlu0
        %v1925 = vpop.trf.xlu0
        %v1926 = vpop.trf.xlu0
        %v1927 = vpop.trf.xlu0
        %v1928 = vpop.trf.xlu0
        %v1929 = vpop.trf.xlu0
        %v1930 = vpop.trf.xlu0
        %v1931 = vpop.trf.xlu0
        %v1932 = vpop.trf.xlu0
        %v1933 = vpop.trf.xlu0
        %v1934 = vpop.trf.xlu0
        %v1935 = vpop.trf.xlu0
        %v1936 = vpop.trf.xlu0
        %1937 = vxpose.xlu0.b32.start [1/16] %v1762, 128
        %1938 = vxpose.xlu0.b32.cont [2/16] 0.0, 128
        %1939 = vxpose.xlu0.b32.cont [3/16] 0.0, 128
        %1940 = vxpose.xlu0.b32.cont [4/16] 0.0, 128
        %1941 = vxpose.xlu0.b32.cont [5/16] 0.0, 128
        %1942 = vxpose.xlu0.b32.cont [6/16] 0.0, 128
        %1943 = vxpose.xlu0.b32.cont [7/16] 0.0, 128
        %1944 = vxpose.xlu0.b32.cont [8/16] 0.0, 128
        %1945 = vxpose.xlu0.b32.cont [9/16] 0.0, 128
        %1946 = vxpose.xlu0.b32.cont [10/16] 0.0, 128
        %1947 = vxpose.xlu0.b32.cont [11/16] 0.0, 128
        %1948 = vxpose.xlu0.b32.cont [12/16] 0.0, 128
        %1949 = vxpose.xlu0.b32.cont [13/16] 0.0, 128
        %1950 = vxpose.xlu0.b32.cont [14/16] 0.0, 128
        %1951 = vxpose.xlu0.b32.cont [15/16] 0.0, 128
        %1952 = vxpose.xlu0.b32.end [16/16] 0.0, 128
        %v1953 = vpop.trf.xlu0
        %v1954 = vpop.trf.xlu0
        %v1955 = vpop.trf.xlu0
        %v1956 = vpop.trf.xlu0
        %v1957 = vpop.trf.xlu0
        %v1958 = vpop.trf.xlu0
        %v1959 = vpop.trf.xlu0
        %v1960 = vpop.trf.xlu0
        %v1961 = vpop.trf.xlu0
        %v1962 = vpop.trf.xlu0
        %v1963 = vpop.trf.xlu0
        %v1964 = vpop.trf.xlu0
        %v1965 = vpop.trf.xlu0
        %v1966 = vpop.trf.xlu0
        %v1967 = vpop.trf.xlu0
        %v1968 = vpop.trf.xlu0
        %1969 = vxpose.xlu0.b32.start [1/16] %v1763, 128
        %1970 = vxpose.xlu0.b32.cont [2/16] 0.0, 128
        %1971 = vxpose.xlu0.b32.cont [3/16] 0.0, 128
        %1972 = vxpose.xlu0.b32.cont [4/16] 0.0, 128
        %1973 = vxpose.xlu0.b32.cont [5/16] 0.0, 128
        %1974 = vxpose.xlu0.b32.cont [6/16] 0.0, 128
        %1975 = vxpose.xlu0.b32.cont [7/16] 0.0, 128
        %1976 = vxpose.xlu0.b32.cont [8/16] 0.0, 128
        %1977 = vxpose.xlu0.b32.cont [9/16] 0.0, 128
        %1978 = vxpose.xlu0.b32.cont [10/16] 0.0, 128
        %1979 = vxpose.xlu0.b32.cont [11/16] 0.0, 128
        %1980 = vxpose.xlu0.b32.cont [12/16] 0.0, 128
        %1981 = vxpose.xlu0.b32.cont [13/16] 0.0, 128
        %1982 = vxpose.xlu0.b32.cont [14/16] 0.0, 128
        %1983 = vxpose.xlu0.b32.cont [15/16] 0.0, 128
        %1984 = vxpose.xlu0.b32.end [16/16] 0.0, 128
        %v1985 = vpop.trf.xlu0
        %v1986 = vpop.trf.xlu0
        %v1987 = vpop.trf.xlu0
        %v1988 = vpop.trf.xlu0
        %v1989 = vpop.trf.xlu0
        %v1990 = vpop.trf.xlu0
        %v1991 = vpop.trf.xlu0
        %v1992 = vpop.trf.xlu0
        %v1993 = vpop.trf.xlu0
        %v1994 = vpop.trf.xlu0
        %v1995 = vpop.trf.xlu0
        %v1996 = vpop.trf.xlu0
        %v1997 = vpop.trf.xlu0
        %v1998 = vpop.trf.xlu0
        %v1999 = vpop.trf.xlu0
        %v2000 = vpop.trf.xlu0
        %2001 = vxpose.xlu0.b32.start [1/16] %v1764, 128
        %2002 = vxpose.xlu0.b32.cont [2/16] 0.0, 128
        %2003 = vxpose.xlu0.b32.cont [3/16] 0.0, 128
        %2004 = vxpose.xlu0.b32.cont [4/16] 0.0, 128
        %2005 = vxpose.xlu0.b32.cont [5/16] 0.0, 128
        %2006 = vxpose.xlu0.b32.cont [6/16] 0.0, 128
        %2007 = vxpose.xlu0.b32.cont [7/16] 0.0, 128
        %2008 = vxpose.xlu0.b32.cont [8/16] 0.0, 128
        %2009 = vxpose.xlu0.b32.cont [9/16] 0.0, 128
        %2010 = vxpose.xlu0.b32.cont [10/16] 0.0, 128
        %2011 = vxpose.xlu0.b32.cont [11/16] 0.0, 128
        %2012 = vxpose.xlu0.b32.cont [12/16] 0.0, 128
        %2013 = vxpose.xlu0.b32.cont [13/16] 0.0, 128
        %2014 = vxpose.xlu0.b32.cont [14/16] 0.0, 128
        %2015 = vxpose.xlu0.b32.cont [15/16] 0.0, 128
        %2016 = vxpose.xlu0.b32.end [16/16] 0.0, 128
        %v2017 = vpop.trf.xlu0
        %v2018 = vpop.trf.xlu0
        %v2019 = vpop.trf.xlu0
        %v2020 = vpop.trf.xlu0
        %v2021 = vpop.trf.xlu0
        %v2022 = vpop.trf.xlu0
        %v2023 = vpop.trf.xlu0
        %v2024 = vpop.trf.xlu0
        %v2025 = vpop.trf.xlu0
        %v2026 = vpop.trf.xlu0
        %v2027 = vpop.trf.xlu0
        %v2028 = vpop.trf.xlu0
        %v2029 = vpop.trf.xlu0
        %v2030 = vpop.trf.xlu0
        %v2031 = vpop.trf.xlu0
        %v2032 = vpop.trf.xlu0
        %2033 = vxpose.xlu0.b32.start [1/16] %v1387, 128
        %2034 = vxpose.xlu0.b32.cont [2/16] 0.0, 128
        %2035 = vxpose.xlu0.b32.cont [3/16] 0.0, 128
        %2036 = vxpose.xlu0.b32.cont [4/16] 0.0, 128
        %2037 = vxpose.xlu0.b32.cont [5/16] 0.0, 128
        %2038 = vxpose.xlu0.b32.cont [6/16] 0.0, 128
        %2039 = vxpose.xlu0.b32.cont [7/16] 0.0, 128
        %2040 = vxpose.xlu0.b32.cont [8/16] 0.0, 128
        %2041 = vxpose.xlu0.b32.cont [9/16] 0.0, 128
        %2042 = vxpose.xlu0.b32.cont [10/16] 0.0, 128
        %2043 = vxpose.xlu0.b32.cont [11/16] 0.0, 128
        %2044 = vxpose.xlu0.b32.cont [12/16] 0.0, 128
        %2045 = vxpose.xlu0.b32.cont [13/16] 0.0, 128
        %2046 = vxpose.xlu0.b32.cont [14/16] 0.0, 128
        %2047 = vxpose.xlu0.b32.cont [15/16] 0.0, 128
        %2048 = vxpose.xlu0.b32.end [16/16] 0.0, 128
        %v2049 = vpop.trf.xlu0
        %v2050 = vpop.trf.xlu0
        %v2051 = vpop.trf.xlu0
        %v2052 = vpop.trf.xlu0
        %v2053 = vpop.trf.xlu0
        %v2054 = vpop.trf.xlu0
        %v2055 = vpop.trf.xlu0
        %v2056 = vpop.trf.xlu0
        %v2057 = vpop.trf.xlu0
        %v2058 = vpop.trf.xlu0
        %v2059 = vpop.trf.xlu0
        %v2060 = vpop.trf.xlu0
        %v2061 = vpop.trf.xlu0
        %v2062 = vpop.trf.xlu0
        %v2063 = vpop.trf.xlu0
        %v2064 = vpop.trf.xlu0
        %2065 = vxpose.xlu0.b32.start [1/16] %v1390, 128
        %2066 = vxpose.xlu0.b32.cont [2/16] 0.0, 128
        %2067 = vxpose.xlu0.b32.cont [3/16] 0.0, 128
        %2068 = vxpose.xlu0.b32.cont [4/16] 0.0, 128
        %2069 = vxpose.xlu0.b32.cont [5/16] 0.0, 128
        %2070 = vxpose.xlu0.b32.cont [6/16] 0.0, 128
        %2071 = vxpose.xlu0.b32.cont [7/16] 0.0, 128
        %2072 = vxpose.xlu0.b32.cont [8/16] 0.0, 128
        %2073 = vxpose.xlu0.b32.cont [9/16] 0.0, 128
        %2074 = vxpose.xlu0.b32.cont [10/16] 0.0, 128
        %2075 = vxpose.xlu0.b32.cont [11/16] 0.0, 128
        %2076 = vxpose.xlu0.b32.cont [12/16] 0.0, 128
        %2077 = vxpose.xlu0.b32.cont [13/16] 0.0, 128
        %2078 = vxpose.xlu0.b32.cont [14/16] 0.0, 128
        %2079 = vxpose.xlu0.b32.cont [15/16] 0.0, 128
        %2080 = vxpose.xlu0.b32.end [16/16] 0.0, 128
        %v2081 = vpop.trf.xlu0
        %v2082 = vpop.trf.xlu0
        %v2083 = vpop.trf.xlu0
        %v2084 = vpop.trf.xlu0
        %v2085 = vpop.trf.xlu0
        %v2086 = vpop.trf.xlu0
        %v2087 = vpop.trf.xlu0
        %v2088 = vpop.trf.xlu0
        %v2089 = vpop.trf.xlu0
        %v2090 = vpop.trf.xlu0
        %v2091 = vpop.trf.xlu0
        %v2092 = vpop.trf.xlu0
        %v2093 = vpop.trf.xlu0
        %v2094 = vpop.trf.xlu0
        %v2095 = vpop.trf.xlu0
        %v2096 = vpop.trf.xlu0
        %v2097 = vpack.c.bf16 %v1473, %v1473
        %v2098 = vpack.c.bf16 %v1505, %v1505
        %v2099 = vpack.c.bf16 %v1537, %v1537
        %v2100 = vpack.c.bf16 %v1569, %v1569
        %v2101 = vpack.c.bf16 %v1601, %v1601
        %v2102 = vpack.c.bf16 %v1633, %v1633
        %v2103 = vpack.c.bf16 %v1665, %v1665
        %v2104 = vpack.c.bf16 %v1697, %v1697
        %v2105 = vpack.c.bf16 %v1793, %v1793
        %v2106 = vpack.c.bf16 %v1825, %v1825
        %v2107 = vpack.c.bf16 %v1857, %v1857
        %v2108 = vpack.c.bf16 %v1889, %v1889
        %v2109 = vpack.c.bf16 %v1921, %v1921
        %v2110 = vpack.c.bf16 %v1953, %v1953
        %v2111 = vpack.c.bf16 %v1985, %v1985
        %v2112 = vpack.c.bf16 %v2017, %v2017
        %vm2113 = vcmask 64512
        %v2115 = vsel %vm2113, %v2097, 0
        %v2118 = vsel %vm2113, %v2105, 0
        %2120 = vmatprep.subr.bf16.mxu0 0
        %2121 = vmatpush1.bf16.xpose.msra.mxu0 0
        %2122 = vmatprep.subr.bf16.mxu0 0
        %2123 = vmatpush1.bf16.xpose.msra.mxu0 0
        %2124 = vmatprep.subr.bf16.mxu0 0
        %2125 = vmatpush1.bf16.xpose.msra.mxu0 0
        %2126 = vmatprep.subr.bf16.mxu0 0
        %2127 = vmatpush1.bf16.xpose.msra.mxu0 0
        %2128 = vmatprep.subr.bf16.mxu0 0
        %2129 = vmatpush1.bf16.xpose.msra.mxu0 0
        %2130 = vmatprep.subr.bf16.mxu0 0
        %2131 = vmatpush1.bf16.xpose.msra.mxu0 0
        %2132 = vmatprep.subr.bf16.mxu0 0
        %2133 = vmatpush1.bf16.xpose.msra.mxu0 0
        %2134 = vmatprep.subr.bf16.mxu0 0
        %2135 = vmatpush1.bf16.xpose.msra.mxu0 %v2118
        %2136 = vmatprep.subr.bf16.mxu0 0
        %2137 = vmatpush2.bf16.xpose.msra.mxu0 0
        %2138 = vmatprep.subr.bf16.mxu0 0
        %2139 = vmatpush2.bf16.xpose.msra.mxu0 0
        %2140 = vmatprep.subr.bf16.mxu0 0
        %2141 = vmatpush2.bf16.xpose.msra.mxu0 0
        %2142 = vmatprep.subr.bf16.mxu0 0
        %2143 = vmatpush2.bf16.xpose.msra.mxu0 0
        %2144 = vmatprep.subr.bf16.mxu0 0
        %2145 = vmatpush2.bf16.xpose.msra.mxu0 0
        %2146 = vmatprep.subr.bf16.mxu0 0
        %2147 = vmatpush2.bf16.xpose.msra.mxu0 0
        %2148 = vmatprep.subr.bf16.mxu0 0
        %2149 = vmatpush2.bf16.xpose.msra.mxu0 0
        %2150 = vmatprep.subr.bf16.mxu0 0
        %2151 = vmatpush2.bf16.xpose.msra.mxu0 0
        %2152 = vmatprep.mubr.bf16.mxu0 0
        %2153 = vmatmul.mubr.bf16.gmra.mxu0 %v2115
        %v2154 = vpop.f32.mrf.mxu0
        %v2155 = vadd.f32 0.0, %v2154
        %v2156 = vpop.f32.mrf.mxu0
        %v2157 = vpop.f32.mrf.mxu0
        %v2158 = vpop.f32.mrf.mxu0
        %2159 = vdwg.mxu0
        %v2161 = vsel %vm2113, %v2098, 0
        %v2164 = vsel %vm2113, %v2106, 0
        %2166 = vmatprep.subr.bf16.mxu0 0
        %2167 = vmatpush1.bf16.xpose.msra.mxu0 0
        %2168 = vmatprep.subr.bf16.mxu0 0
        %2169 = vmatpush1.bf16.xpose.msra.mxu0 0
        %2170 = vmatprep.subr.bf16.mxu0 0
        %2171 = vmatpush1.bf16.xpose.msra.mxu0 0
        %2172 = vmatprep.subr.bf16.mxu0 0
        %2173 = vmatpush1.bf16.xpose.msra.mxu0 0
        %2174 = vmatprep.subr.bf16.mxu0 0
        %2175 = vmatpush1.bf16.xpose.msra.mxu0 0
        %2176 = vmatprep.subr.bf16.mxu0 0
        %2177 = vmatpush1.bf16.xpose.msra.mxu0 0
        %2178 = vmatprep.subr.bf16.mxu0 0
        %2179 = vmatpush1.bf16.xpose.msra.mxu0 0
        %2180 = vmatprep.subr.bf16.mxu0 0
        %2181 = vmatpush1.bf16.xpose.msra.mxu0 %v2164
        %2182 = vmatprep.subr.bf16.mxu0 0
        %2183 = vmatpush2.bf16.xpose.msra.mxu0 0
        %2184 = vmatprep.subr.bf16.mxu0 0
        %2185 = vmatpush2.bf16.xpose.msra.mxu0 0
        %2186 = vmatprep.subr.bf16.mxu0 0
        %2187 = vmatpush2.bf16.xpose.msra.mxu0 0
        %2188 = vmatprep.subr.bf16.mxu0 0
        %2189 = vmatpush2.bf16.xpose.msra.mxu0 0
        %2190 = vmatprep.subr.bf16.mxu0 0
        %2191 = vmatpush2.bf16.xpose.msra.mxu0 0
        %2192 = vmatprep.subr.bf16.mxu0 0
        %2193 = vmatpush2.bf16.xpose.msra.mxu0 0
        %2194 = vmatprep.subr.bf16.mxu0 0
        %2195 = vmatpush2.bf16.xpose.msra.mxu0 0
        %2196 = vmatprep.subr.bf16.mxu0 0
        %2197 = vmatpush2.bf16.xpose.msra.mxu0 0
        %2198 = vmatprep.mubr.bf16.mxu0 0
        %2199 = vmatmul.mubr.bf16.gmra.mxu0 %v2161
        %v2200 = vpop.f32.mrf.mxu0
        %v2201 = vadd.f32 0.0, %v2200
        %v2202 = vpop.f32.mrf.mxu0
        %v2203 = vpop.f32.mrf.mxu0
        %v2204 = vpop.f32.mrf.mxu0
        %2205 = vdwg.mxu0
        %v2207 = vsel %vm2113, %v2099, 0
        %v2210 = vsel %vm2113, %v2107, 0
        %2212 = vmatprep.subr.bf16.mxu0 0
        %2213 = vmatpush1.bf16.xpose.msra.mxu0 0
        %2214 = vmatprep.subr.bf16.mxu0 0
        %2215 = vmatpush1.bf16.xpose.msra.mxu0 0
        %2216 = vmatprep.subr.bf16.mxu0 0
        %2217 = vmatpush1.bf16.xpose.msra.mxu0 0
        %2218 = vmatprep.subr.bf16.mxu0 0
        %2219 = vmatpush1.bf16.xpose.msra.mxu0 0
        %2220 = vmatprep.subr.bf16.mxu0 0
        %2221 = vmatpush1.bf16.xpose.msra.mxu0 0
        %2222 = vmatprep.subr.bf16.mxu0 0
        %2223 = vmatpush1.bf16.xpose.msra.mxu0 0
        %2224 = vmatprep.subr.bf16.mxu0 0
        %2225 = vmatpush1.bf16.xpose.msra.mxu0 0
        %2226 = vmatprep.subr.bf16.mxu0 0
        %2227 = vmatpush1.bf16.xpose.msra.mxu0 %v2210
        %2228 = vmatprep.subr.bf16.mxu0 0
        %2229 = vmatpush2.bf16.xpose.msra.mxu0 0
        %2230 = vmatprep.subr.bf16.mxu0 0
        %2231 = vmatpush2.bf16.xpose.msra.mxu0 0
        %2232 = vmatprep.subr.bf16.mxu0 0
        %2233 = vmatpush2.bf16.xpose.msra.mxu0 0
        %2234 = vmatprep.subr.bf16.mxu0 0
        %2235 = vmatpush2.bf16.xpose.msra.mxu0 0
        %2236 = vmatprep.subr.bf16.mxu0 0
        %2237 = vmatpush2.bf16.xpose.msra.mxu0 0
        %2238 = vmatprep.subr.bf16.mxu0 0
        %2239 = vmatpush2.bf16.xpose.msra.mxu0 0
        %2240 = vmatprep.subr.bf16.mxu0 0
        %2241 = vmatpush2.bf16.xpose.msra.mxu0 0
        %2242 = vmatprep.subr.bf16.mxu0 0
        %2243 = vmatpush2.bf16.xpose.msra.mxu0 0
        %2244 = vmatprep.mubr.bf16.mxu0 0
        %2245 = vmatmul.mubr.bf16.gmra.mxu0 %v2207
        %v2246 = vpop.f32.mrf.mxu0
        %v2247 = vadd.f32 0.0, %v2246
        %v2248 = vpop.f32.mrf.mxu0
        %v2249 = vpop.f32.mrf.mxu0
        %v2250 = vpop.f32.mrf.mxu0
        %2251 = vdwg.mxu0
        %v2253 = vsel %vm2113, %v2100, 0
        %v2256 = vsel %vm2113, %v2108, 0
        %2258 = vmatprep.subr.bf16.mxu0 0
        %2259 = vmatpush1.bf16.xpose.msra.mxu0 0
        %2260 = vmatprep.subr.bf16.mxu0 0
        %2261 = vmatpush1.bf16.xpose.msra.mxu0 0
        %2262 = vmatprep.subr.bf16.mxu0 0
        %2263 = vmatpush1.bf16.xpose.msra.mxu0 0
        %2264 = vmatprep.subr.bf16.mxu0 0
        %2265 = vmatpush1.bf16.xpose.msra.mxu0 0
        %2266 = vmatprep.subr.bf16.mxu0 0
        %2267 = vmatpush1.bf16.xpose.msra.mxu0 0
        %2268 = vmatprep.subr.bf16.mxu0 0
        %2269 = vmatpush1.bf16.xpose.msra.mxu0 0
        %2270 = vmatprep.subr.bf16.mxu0 0
        %2271 = vmatpush1.bf16.xpose.msra.mxu0 0
        %2272 = vmatprep.subr.bf16.mxu0 0
        %2273 = vmatpush1.bf16.xpose.msra.mxu0 %v2256
        %2274 = vmatprep.subr.bf16.mxu0 0
        %2275 = vmatpush2.bf16.xpose.msra.mxu0 0
        %2276 = vmatprep.subr.bf16.mxu0 0
        %2277 = vmatpush2.bf16.xpose.msra.mxu0 0
        %2278 = vmatprep.subr.bf16.mxu0 0
        %2279 = vmatpush2.bf16.xpose.msra.mxu0 0
        %2280 = vmatprep.subr.bf16.mxu0 0
        %2281 = vmatpush2.bf16.xpose.msra.mxu0 0
        %2282 = vmatprep.subr.bf16.mxu0 0
        %2283 = vmatpush2.bf16.xpose.msra.mxu0 0
        %2284 = vmatprep.subr.bf16.mxu0 0
        %2285 = vmatpush2.bf16.xpose.msra.mxu0 0
        %2286 = vmatprep.subr.bf16.mxu0 0
        %2287 = vmatpush2.bf16.xpose.msra.mxu0 0
        %2288 = vmatprep.subr.bf16.mxu0 0
        %2289 = vmatpush2.bf16.xpose.msra.mxu0 0
        %2290 = vmatprep.mubr.bf16.mxu0 0
        %2291 = vmatmul.mubr.bf16.gmra.mxu0 %v2253
        %v2292 = vpop.f32.mrf.mxu0
        %v2293 = vadd.f32 0.0, %v2292
        %v2294 = vpop.f32.mrf.mxu0
        %v2295 = vpop.f32.mrf.mxu0
        %v2296 = vpop.f32.mrf.mxu0
        %2297 = vdwg.mxu0
        %v2299 = vsel %vm2113, %v2101, 0
        %v2302 = vsel %vm2113, %v2109, 0
        %2304 = vmatprep.subr.bf16.mxu0 0
        %2305 = vmatpush1.bf16.xpose.msra.mxu0 0
        %2306 = vmatprep.subr.bf16.mxu0 0
        %2307 = vmatpush1.bf16.xpose.msra.mxu0 0
        %2308 = vmatprep.subr.bf16.mxu0 0
        %2309 = vmatpush1.bf16.xpose.msra.mxu0 0
        %2310 = vmatprep.subr.bf16.mxu0 0
        %2311 = vmatpush1.bf16.xpose.msra.mxu0 0
        %2312 = vmatprep.subr.bf16.mxu0 0
        %2313 = vmatpush1.bf16.xpose.msra.mxu0 0
        %2314 = vmatprep.subr.bf16.mxu0 0
        %2315 = vmatpush1.bf16.xpose.msra.mxu0 0
        %2316 = vmatprep.subr.bf16.mxu0 0
        %2317 = vmatpush1.bf16.xpose.msra.mxu0 0
        %2318 = vmatprep.subr.bf16.mxu0 0
        %2319 = vmatpush1.bf16.xpose.msra.mxu0 %v2302
        %2320 = vmatprep.subr.bf16.mxu0 0
        %2321 = vmatpush2.bf16.xpose.msra.mxu0 0
        %2322 = vmatprep.subr.bf16.mxu0 0
        %2323 = vmatpush2.bf16.xpose.msra.mxu0 0
        %2324 = vmatprep.subr.bf16.mxu0 0
        %2325 = vmatpush2.bf16.xpose.msra.mxu0 0
        %2326 = vmatprep.subr.bf16.mxu0 0
        %2327 = vmatpush2.bf16.xpose.msra.mxu0 0
        %2328 = vmatprep.subr.bf16.mxu0 0
        %2329 = vmatpush2.bf16.xpose.msra.mxu0 0
        %2330 = vmatprep.subr.bf16.mxu0 0
        %2331 = vmatpush2.bf16.xpose.msra.mxu0 0
        %2332 = vmatprep.subr.bf16.mxu0 0
        %2333 = vmatpush2.bf16.xpose.msra.mxu0 0
        %2334 = vmatprep.subr.bf16.mxu0 0
        %2335 = vmatpush2.bf16.xpose.msra.mxu0 0
        %2336 = vmatprep.mubr.bf16.mxu0 0
        %2337 = vmatmul.mubr.bf16.gmra.mxu0 %v2299
        %v2338 = vpop.f32.mrf.mxu0
        %v2339 = vadd.f32 0.0, %v2338
        %v2340 = vpop.f32.mrf.mxu0
        %v2341 = vpop.f32.mrf.mxu0
        %v2342 = vpop.f32.mrf.mxu0
        %2343 = vdwg.mxu0
        %v2345 = vsel %vm2113, %v2102, 0
        %v2348 = vsel %vm2113, %v2110, 0
        %2350 = vmatprep.subr.bf16.mxu0 0
        %2351 = vmatpush1.bf16.xpose.msra.mxu0 0
        %2352 = vmatprep.subr.bf16.mxu0 0
        %2353 = vmatpush1.bf16.xpose.msra.mxu0 0
        %2354 = vmatprep.subr.bf16.mxu0 0
        %2355 = vmatpush1.bf16.xpose.msra.mxu0 0
        %2356 = vmatprep.subr.bf16.mxu0 0
        %2357 = vmatpush1.bf16.xpose.msra.mxu0 0
        %2358 = vmatprep.subr.bf16.mxu0 0
        %2359 = vmatpush1.bf16.xpose.msra.mxu0 0
        %2360 = vmatprep.subr.bf16.mxu0 0
        %2361 = vmatpush1.bf16.xpose.msra.mxu0 0
        %2362 = vmatprep.subr.bf16.mxu0 0
        %2363 = vmatpush1.bf16.xpose.msra.mxu0 0
        %2364 = vmatprep.subr.bf16.mxu0 0
        %2365 = vmatpush1.bf16.xpose.msra.mxu0 %v2348
        %2366 = vmatprep.subr.bf16.mxu0 0
        %2367 = vmatpush2.bf16.xpose.msra.mxu0 0
        %2368 = vmatprep.subr.bf16.mxu0 0
        %2369 = vmatpush2.bf16.xpose.msra.mxu0 0
        %2370 = vmatprep.subr.bf16.mxu0 0
        %2371 = vmatpush2.bf16.xpose.msra.mxu0 0
        %2372 = vmatprep.subr.bf16.mxu0 0
        %2373 = vmatpush2.bf16.xpose.msra.mxu0 0
        %2374 = vmatprep.subr.bf16.mxu0 0
        %2375 = vmatpush2.bf16.xpose.msra.mxu0 0
        %2376 = vmatprep.subr.bf16.mxu0 0
        %2377 = vmatpush2.bf16.xpose.msra.mxu0 0
        %2378 = vmatprep.subr.bf16.mxu0 0
        %2379 = vmatpush2.bf16.xpose.msra.mxu0 0
        %2380 = vmatprep.subr.bf16.mxu0 0
        %2381 = vmatpush2.bf16.xpose.msra.mxu0 0
        %2382 = vmatprep.mubr.bf16.mxu0 0
        %2383 = vmatmul.mubr.bf16.gmra.mxu0 %v2345
        %v2384 = vpop.f32.mrf.mxu0
        %v2385 = vadd.f32 0.0, %v2384
        %v2386 = vpop.f32.mrf.mxu0
        %v2387 = vpop.f32.mrf.mxu0
        %v2388 = vpop.f32.mrf.mxu0
        %2389 = vdwg.mxu0
        %v2391 = vsel %vm2113, %v2103, 0
        %v2394 = vsel %vm2113, %v2111, 0
        %2396 = vmatprep.subr.bf16.mxu0 0
        %2397 = vmatpush1.bf16.xpose.msra.mxu0 0
        %2398 = vmatprep.subr.bf16.mxu0 0
        %2399 = vmatpush1.bf16.xpose.msra.mxu0 0
        %2400 = vmatprep.subr.bf16.mxu0 0
        %2401 = vmatpush1.bf16.xpose.msra.mxu0 0
        %2402 = vmatprep.subr.bf16.mxu0 0
        %2403 = vmatpush1.bf16.xpose.msra.mxu0 0
        %2404 = vmatprep.subr.bf16.mxu0 0
        %2405 = vmatpush1.bf16.xpose.msra.mxu0 0
        %2406 = vmatprep.subr.bf16.mxu0 0
        %2407 = vmatpush1.bf16.xpose.msra.mxu0 0
        %2408 = vmatprep.subr.bf16.mxu0 0
        %2409 = vmatpush1.bf16.xpose.msra.mxu0 0
        %2410 = vmatprep.subr.bf16.mxu0 0
        %2411 = vmatpush1.bf16.xpose.msra.mxu0 %v2394
        %2412 = vmatprep.subr.bf16.mxu0 0
        %2413 = vmatpush2.bf16.xpose.msra.mxu0 0
        %2414 = vmatprep.subr.bf16.mxu0 0
        %2415 = vmatpush2.bf16.xpose.msra.mxu0 0
        %2416 = vmatprep.subr.bf16.mxu0 0
        %2417 = vmatpush2.bf16.xpose.msra.mxu0 0
        %2418 = vmatprep.subr.bf16.mxu0 0
        %2419 = vmatpush2.bf16.xpose.msra.mxu0 0
        %2420 = vmatprep.subr.bf16.mxu0 0
        %2421 = vmatpush2.bf16.xpose.msra.mxu0 0
        %2422 = vmatprep.subr.bf16.mxu0 0
        %2423 = vmatpush2.bf16.xpose.msra.mxu0 0
        %2424 = vmatprep.subr.bf16.mxu0 0
        %2425 = vmatpush2.bf16.xpose.msra.mxu0 0
        %2426 = vmatprep.subr.bf16.mxu0 0
        %2427 = vmatpush2.bf16.xpose.msra.mxu0 0
        %2428 = vmatprep.mubr.bf16.mxu0 0
        %2429 = vmatmul.mubr.bf16.gmra.mxu0 %v2391
        %v2430 = vpop.f32.mrf.mxu0
        %v2431 = vadd.f32 0.0, %v2430
        %v2432 = vpop.f32.mrf.mxu0
        %v2433 = vpop.f32.mrf.mxu0
        %v2434 = vpop.f32.mrf.mxu0
        %2435 = vdwg.mxu0
        %v2437 = vsel %vm2113, %v2104, 0
        %v2440 = vsel %vm2113, %v2112, 0
        %2442 = vmatprep.subr.bf16.mxu0 0
        %2443 = vmatpush1.bf16.xpose.msra.mxu0 0
        %2444 = vmatprep.subr.bf16.mxu0 0
        %2445 = vmatpush1.bf16.xpose.msra.mxu0 0
        %2446 = vmatprep.subr.bf16.mxu0 0
        %2447 = vmatpush1.bf16.xpose.msra.mxu0 0
        %2448 = vmatprep.subr.bf16.mxu0 0
        %2449 = vmatpush1.bf16.xpose.msra.mxu0 0
        %2450 = vmatprep.subr.bf16.mxu0 0
        %2451 = vmatpush1.bf16.xpose.msra.mxu0 0
        %2452 = vmatprep.subr.bf16.mxu0 0
        %2453 = vmatpush1.bf16.xpose.msra.mxu0 0
        %2454 = vmatprep.subr.bf16.mxu0 0
        %2455 = vmatpush1.bf16.xpose.msra.mxu0 0
        %2456 = vmatprep.subr.bf16.mxu0 0
        %2457 = vmatpush1.bf16.xpose.msra.mxu0 %v2440
        %2458 = vmatprep.subr.bf16.mxu0 0
        %2459 = vmatpush2.bf16.xpose.msra.mxu0 0
        %2460 = vmatprep.subr.bf16.mxu0 0
        %2461 = vmatpush2.bf16.xpose.msra.mxu0 0
        %2462 = vmatprep.subr.bf16.mxu0 0
        %2463 = vmatpush2.bf16.xpose.msra.mxu0 0
        %2464 = vmatprep.subr.bf16.mxu0 0
        %2465 = vmatpush2.bf16.xpose.msra.mxu0 0
        %2466 = vmatprep.subr.bf16.mxu0 0
        %2467 = vmatpush2.bf16.xpose.msra.mxu0 0
        %2468 = vmatprep.subr.bf16.mxu0 0
        %2469 = vmatpush2.bf16.xpose.msra.mxu0 0
        %2470 = vmatprep.subr.bf16.mxu0 0
        %2471 = vmatpush2.bf16.xpose.msra.mxu0 0
        %2472 = vmatprep.subr.bf16.mxu0 0
        %2473 = vmatpush2.bf16.xpose.msra.mxu0 0
        %2474 = vmatprep.mubr.bf16.mxu0 0
        %2475 = vmatmul.mubr.bf16.gmra.mxu0 %v2437
        %v2476 = vpop.f32.mrf.mxu0
        %v2477 = vadd.f32 0.0, %v2476
        %v2478 = vpop.f32.mrf.mxu0
        %v2479 = vpop.f32.mrf.mxu0
        %v2480 = vpop.f32.mrf.mxu0
        %2481 = vdwg.mxu0
        %v2482 = vsel %vm2113, %v2155, -inf
        %2483 = vmax.xlane.f32.xlu0 %v2482
        %v2484 = vpop.xlane.xlu0 %2483
        %v2485 = vsel %vm2113, %v2201, -inf
        %2486 = vmax.xlane.f32.xlu0 %v2485
        %v2487 = vpop.xlane.xlu0 %2486
        %v2488 = vsel %vm2113, %v2247, -inf
        %2489 = vmax.xlane.f32.xlu0 %v2488
        %v2490 = vpop.xlane.xlu0 %2489
        %v2491 = vsel %vm2113, %v2293, -inf
        %2492 = vmax.xlane.f32.xlu0 %v2491
        %v2493 = vpop.xlane.xlu0 %2492
        %v2494 = vsel %vm2113, %v2339, -inf
        %2495 = vmax.xlane.f32.xlu0 %v2494
        %v2496 = vpop.xlane.xlu0 %2495
        %v2497 = vsel %vm2113, %v2385, -inf
        %2498 = vmax.xlane.f32.xlu0 %v2497
        %v2499 = vpop.xlane.xlu0 %2498
        %v2500 = vsel %vm2113, %v2431, -inf
        %2501 = vmax.xlane.f32.xlu0 %v2500
        %v2502 = vpop.xlane.xlu0 %2501
        %v2503 = vsel %vm2113, %v2477, -inf
        %2504 = vmax.xlane.f32.xlu0 %v2503
        %v2505 = vpop.xlane.xlu0 %2504
        %v2506 = vsub.f32 %v2155, %v2484
        %v2507 = vsub.f32 %v2201, %v2487
        %v2508 = vsub.f32 %v2247, %v2490
        %v2509 = vsub.f32 %v2293, %v2493
        %v2510 = vsub.f32 %v2339, %v2496
        %v2511 = vsub.f32 %v2385, %v2499
        %v2512 = vsub.f32 %v2431, %v2502
        %v2513 = vsub.f32 %v2477, %v2505
        %v2514 = vmul.f32 %v2506, 1.442695
        %v2515 = vpow.pop %v2514
        %v2516 = vmul.f32 %v2507, 1.442695
        %v2517 = vpow.pop %v2516
        %v2518 = vmul.f32 %v2508, 1.442695
        %v2519 = vpow.pop %v2518
        %v2520 = vmul.f32 %v2509, 1.442695
        %v2521 = vpow.pop %v2520
        %v2522 = vmul.f32 %v2510, 1.442695
        %v2523 = vpow.pop %v2522
        %v2524 = vmul.f32 %v2511, 1.442695
        %v2525 = vpow.pop %v2524
        %v2526 = vmul.f32 %v2512, 1.442695
        %v2527 = vpow.pop %v2526
        %v2528 = vmul.f32 %v2513, 1.442695
        %v2529 = vpow.pop %v2528
        %v2530 = vsel %vm2113, %v2515, 0.0
        %2531 = vadd.xlane.f32.xlu0 %v2530
        %v2532 = vpop.xlane.xlu0 %2531
        %v2533 = vsel %vm2113, %v2517, 0.0
        %2534 = vadd.xlane.f32.xlu0 %v2533
        %v2535 = vpop.xlane.xlu0 %2534
        %v2536 = vsel %vm2113, %v2519, 0.0
        %2537 = vadd.xlane.f32.xlu0 %v2536
        %v2538 = vpop.xlane.xlu0 %2537
        %v2539 = vsel %vm2113, %v2521, 0.0
        %2540 = vadd.xlane.f32.xlu0 %v2539
        %v2541 = vpop.xlane.xlu0 %2540
        %v2542 = vsel %vm2113, %v2523, 0.0
        %2543 = vadd.xlane.f32.xlu0 %v2542
        %v2544 = vpop.xlane.xlu0 %2543
        %v2545 = vsel %vm2113, %v2525, 0.0
        %2546 = vadd.xlane.f32.xlu0 %v2545
        %v2547 = vpop.xlane.xlu0 %2546
        %v2548 = vsel %vm2113, %v2527, 0.0
        %2549 = vadd.xlane.f32.xlu0 %v2548
        %v2550 = vpop.xlane.xlu0 %2549
        %v2551 = vsel %vm2113, %v2529, 0.0
        %2552 = vadd.xlane.f32.xlu0 %v2551
        %v2553 = vpop.xlane.xlu0 %2552
        %v2554 = vpack.c.bf16 %v2515, %v2515
        %v2555 = vpack.c.bf16 %v2517, %v2517
        %v2556 = vpack.c.bf16 %v2519, %v2519
        %v2557 = vpack.c.bf16 %v2521, %v2521
        %v2558 = vpack.c.bf16 %v2523, %v2523
        %v2559 = vpack.c.bf16 %v2525, %v2525
        %v2560 = vpack.c.bf16 %v2527, %v2527
        %v2561 = vpack.c.bf16 %v2529, %v2529
        %v2562 = vpack.c.bf16 %v2049, %v2049
        %v2563 = vpack.c.bf16 %v2050, %v2050
        %v2564 = vpack.c.bf16 %v2051, %v2051
        %v2565 = vpack.c.bf16 %v2052, %v2052
        %v2566 = vpack.c.bf16 %v2081, %v2081
        %v2567 = vpack.c.bf16 %v2082, %v2082
        %v2568 = vpack.c.bf16 %v2083, %v2083
        %v2569 = vpack.c.bf16 %v2084, %v2084
        %v2571 = vsel %vm2113, %v2554, 0
        %v2574 = vsel %vm2113, %v2562, 0
        %2576 = vmatprep.subr.bf16.mxu0 0
        %2577 = vmatpush1.bf16.xpose.msra.mxu0 0
        %2578 = vmatprep.subr.bf16.mxu0 0
        %2579 = vmatpush1.bf16.xpose.msra.mxu0 0
        %2580 = vmatprep.subr.bf16.mxu0 0
        %2581 = vmatpush1.bf16.xpose.msra.mxu0 0
        %2582 = vmatprep.subr.bf16.mxu0 0
        %2583 = vmatpush1.bf16.xpose.msra.mxu0 0
        %2584 = vmatprep.subr.bf16.mxu0 0
        %2585 = vmatpush1.bf16.xpose.msra.mxu0 0
        %2586 = vmatprep.subr.bf16.mxu0 0
        %2587 = vmatpush1.bf16.xpose.msra.mxu0 0
        %2588 = vmatprep.subr.bf16.mxu0 0
        %2589 = vmatpush1.bf16.xpose.msra.mxu0 0
        %2590 = vmatprep.subr.bf16.mxu0 0
        %2591 = vmatpush1.bf16.xpose.msra.mxu0 %v2574
        %2592 = vmatprep.subr.bf16.mxu0 0
        %2593 = vmatpush2.bf16.xpose.msra.mxu0 0
        %2594 = vmatprep.subr.bf16.mxu0 0
        %2595 = vmatpush2.bf16.xpose.msra.mxu0 0
        %2596 = vmatprep.subr.bf16.mxu0 0
        %2597 = vmatpush2.bf16.xpose.msra.mxu0 0
        %2598 = vmatprep.subr.bf16.mxu0 0
        %2599 = vmatpush2.bf16.xpose.msra.mxu0 0
        %2600 = vmatprep.subr.bf16.mxu0 0
        %2601 = vmatpush2.bf16.xpose.msra.mxu0 0
        %2602 = vmatprep.subr.bf16.mxu0 0
        %2603 = vmatpush2.bf16.xpose.msra.mxu0 0
        %2604 = vmatprep.subr.bf16.mxu0 0
        %2605 = vmatpush2.bf16.xpose.msra.mxu0 0
        %2606 = vmatprep.subr.bf16.mxu0 0
        %2607 = vmatpush2.bf16.xpose.msra.mxu0 0
        %2608 = vmatprep.mubr.bf16.mxu0 0
        %2609 = vmatmul.mubr.bf16.gmra.mxu0 %v2571
        %v2610 = vpop.f32.mrf.mxu0
        %v2611 = vadd.f32 0.0, %v2610
        %v2612 = vpop.f32.mrf.mxu0
        %v2613 = vpop.f32.mrf.mxu0
        %v2614 = vpop.f32.mrf.mxu0
        %2615 = vdwg.mxu0
        %v2617 = vsel %vm2113, %v2555, 0
        %v2620 = vsel %vm2113, %v2563, 0
        %2622 = vmatprep.subr.bf16.mxu0 0
        %2623 = vmatpush1.bf16.xpose.msra.mxu0 0
        %2624 = vmatprep.subr.bf16.mxu0 0
        %2625 = vmatpush1.bf16.xpose.msra.mxu0 0
        %2626 = vmatprep.subr.bf16.mxu0 0
        %2627 = vmatpush1.bf16.xpose.msra.mxu0 0
        %2628 = vmatprep.subr.bf16.mxu0 0
        %2629 = vmatpush1.bf16.xpose.msra.mxu0 0
        %2630 = vmatprep.subr.bf16.mxu0 0
        %2631 = vmatpush1.bf16.xpose.msra.mxu0 0
        %2632 = vmatprep.subr.bf16.mxu0 0
        %2633 = vmatpush1.bf16.xpose.msra.mxu0 0
        %2634 = vmatprep.subr.bf16.mxu0 0
        %2635 = vmatpush1.bf16.xpose.msra.mxu0 0
        %2636 = vmatprep.subr.bf16.mxu0 0
        %2637 = vmatpush1.bf16.xpose.msra.mxu0 %v2620
        %2638 = vmatprep.subr.bf16.mxu0 0
        %2639 = vmatpush2.bf16.xpose.msra.mxu0 0
        %2640 = vmatprep.subr.bf16.mxu0 0
        %2641 = vmatpush2.bf16.xpose.msra.mxu0 0
        %2642 = vmatprep.subr.bf16.mxu0 0
        %2643 = vmatpush2.bf16.xpose.msra.mxu0 0
        %2644 = vmatprep.subr.bf16.mxu0 0
        %2645 = vmatpush2.bf16.xpose.msra.mxu0 0
        %2646 = vmatprep.subr.bf16.mxu0 0
        %2647 = vmatpush2.bf16.xpose.msra.mxu0 0
        %2648 = vmatprep.subr.bf16.mxu0 0
        %2649 = vmatpush2.bf16.xpose.msra.mxu0 0
        %2650 = vmatprep.subr.bf16.mxu0 0
        %2651 = vmatpush2.bf16.xpose.msra.mxu0 0
        %2652 = vmatprep.subr.bf16.mxu0 0
        %2653 = vmatpush2.bf16.xpose.msra.mxu0 0
        %2654 = vmatprep.mubr.bf16.mxu0 0
        %2655 = vmatmul.mubr.bf16.gmra.mxu0 %v2617
        %v2656 = vpop.f32.mrf.mxu0
        %v2657 = vadd.f32 0.0, %v2656
        %v2658 = vpop.f32.mrf.mxu0
        %v2659 = vpop.f32.mrf.mxu0
        %v2660 = vpop.f32.mrf.mxu0
        %2661 = vdwg.mxu0
        %v2663 = vsel %vm2113, %v2556, 0
        %v2666 = vsel %vm2113, %v2564, 0
        %2668 = vmatprep.subr.bf16.mxu0 0
        %2669 = vmatpush1.bf16.xpose.msra.mxu0 0
        %2670 = vmatprep.subr.bf16.mxu0 0
        %2671 = vmatpush1.bf16.xpose.msra.mxu0 0
        %2672 = vmatprep.subr.bf16.mxu0 0
        %2673 = vmatpush1.bf16.xpose.msra.mxu0 0
        %2674 = vmatprep.subr.bf16.mxu0 0
        %2675 = vmatpush1.bf16.xpose.msra.mxu0 0
        %2676 = vmatprep.subr.bf16.mxu0 0
        %2677 = vmatpush1.bf16.xpose.msra.mxu0 0
        %2678 = vmatprep.subr.bf16.mxu0 0
        %2679 = vmatpush1.bf16.xpose.msra.mxu0 0
        %2680 = vmatprep.subr.bf16.mxu0 0
        %2681 = vmatpush1.bf16.xpose.msra.mxu0 0
        %2682 = vmatprep.subr.bf16.mxu0 0
        %2683 = vmatpush1.bf16.xpose.msra.mxu0 %v2666
        %2684 = vmatprep.subr.bf16.mxu0 0
        %2685 = vmatpush2.bf16.xpose.msra.mxu0 0
        %2686 = vmatprep.subr.bf16.mxu0 0
        %2687 = vmatpush2.bf16.xpose.msra.mxu0 0
        %2688 = vmatprep.subr.bf16.mxu0 0
        %2689 = vmatpush2.bf16.xpose.msra.mxu0 0
        %2690 = vmatprep.subr.bf16.mxu0 0
        %2691 = vmatpush2.bf16.xpose.msra.mxu0 0
        %2692 = vmatprep.subr.bf16.mxu0 0
        %2693 = vmatpush2.bf16.xpose.msra.mxu0 0
        %2694 = vmatprep.subr.bf16.mxu0 0
        %2695 = vmatpush2.bf16.xpose.msra.mxu0 0
        %2696 = vmatprep.subr.bf16.mxu0 0
        %2697 = vmatpush2.bf16.xpose.msra.mxu0 0
        %2698 = vmatprep.subr.bf16.mxu0 0
        %2699 = vmatpush2.bf16.xpose.msra.mxu0 0
        %2700 = vmatprep.mubr.bf16.mxu0 0
        %2701 = vmatmul.mubr.bf16.gmra.mxu0 %v2663
        %v2702 = vpop.f32.mrf.mxu0
        %v2703 = vadd.f32 0.0, %v2702
        %v2704 = vpop.f32.mrf.mxu0
        %v2705 = vpop.f32.mrf.mxu0
        %v2706 = vpop.f32.mrf.mxu0
        %2707 = vdwg.mxu0
        %v2709 = vsel %vm2113, %v2557, 0
        %v2712 = vsel %vm2113, %v2565, 0
        %2714 = vmatprep.subr.bf16.mxu0 0
        %2715 = vmatpush1.bf16.xpose.msra.mxu0 0
        %2716 = vmatprep.subr.bf16.mxu0 0
        %2717 = vmatpush1.bf16.xpose.msra.mxu0 0
        %2718 = vmatprep.subr.bf16.mxu0 0
        %2719 = vmatpush1.bf16.xpose.msra.mxu0 0
        %2720 = vmatprep.subr.bf16.mxu0 0
        %2721 = vmatpush1.bf16.xpose.msra.mxu0 0
        %2722 = vmatprep.subr.bf16.mxu0 0
        %2723 = vmatpush1.bf16.xpose.msra.mxu0 0
        %2724 = vmatprep.subr.bf16.mxu0 0
        %2725 = vmatpush1.bf16.xpose.msra.mxu0 0
        %2726 = vmatprep.subr.bf16.mxu0 0
        %2727 = vmatpush1.bf16.xpose.msra.mxu0 0
        %2728 = vmatprep.subr.bf16.mxu0 0
        %2729 = vmatpush1.bf16.xpose.msra.mxu0 %v2712
        %2730 = vmatprep.subr.bf16.mxu0 0
        %2731 = vmatpush2.bf16.xpose.msra.mxu0 0
        %2732 = vmatprep.subr.bf16.mxu0 0
        %2733 = vmatpush2.bf16.xpose.msra.mxu0 0
        %2734 = vmatprep.subr.bf16.mxu0 0
        %2735 = vmatpush2.bf16.xpose.msra.mxu0 0
        %2736 = vmatprep.subr.bf16.mxu0 0
        %2737 = vmatpush2.bf16.xpose.msra.mxu0 0
        %2738 = vmatprep.subr.bf16.mxu0 0
        %2739 = vmatpush2.bf16.xpose.msra.mxu0 0
        %2740 = vmatprep.subr.bf16.mxu0 0
        %2741 = vmatpush2.bf16.xpose.msra.mxu0 0
        %2742 = vmatprep.subr.bf16.mxu0 0
        %2743 = vmatpush2.bf16.xpose.msra.mxu0 0
        %2744 = vmatprep.subr.bf16.mxu0 0
        %2745 = vmatpush2.bf16.xpose.msra.mxu0 0
        %2746 = vmatprep.mubr.bf16.mxu0 0
        %2747 = vmatmul.mubr.bf16.gmra.mxu0 %v2709
        %v2748 = vpop.f32.mrf.mxu0
        %v2749 = vadd.f32 0.0, %v2748
        %v2750 = vpop.f32.mrf.mxu0
        %v2751 = vpop.f32.mrf.mxu0
        %v2752 = vpop.f32.mrf.mxu0
        %2753 = vdwg.mxu0
        %v2755 = vsel %vm2113, %v2558, 0
        %v2758 = vsel %vm2113, %v2566, 0
        %2760 = vmatprep.subr.bf16.mxu0 0
        %2761 = vmatpush1.bf16.xpose.msra.mxu0 0
        %2762 = vmatprep.subr.bf16.mxu0 0
        %2763 = vmatpush1.bf16.xpose.msra.mxu0 0
        %2764 = vmatprep.subr.bf16.mxu0 0
        %2765 = vmatpush1.bf16.xpose.msra.mxu0 0
        %2766 = vmatprep.subr.bf16.mxu0 0
        %2767 = vmatpush1.bf16.xpose.msra.mxu0 0
        %2768 = vmatprep.subr.bf16.mxu0 0
        %2769 = vmatpush1.bf16.xpose.msra.mxu0 0
        %2770 = vmatprep.subr.bf16.mxu0 0
        %2771 = vmatpush1.bf16.xpose.msra.mxu0 0
        %2772 = vmatprep.subr.bf16.mxu0 0
        %2773 = vmatpush1.bf16.xpose.msra.mxu0 0
        %2774 = vmatprep.subr.bf16.mxu0 0
        %2775 = vmatpush1.bf16.xpose.msra.mxu0 %v2758
        %2776 = vmatprep.subr.bf16.mxu0 0
        %2777 = vmatpush2.bf16.xpose.msra.mxu0 0
        %2778 = vmatprep.subr.bf16.mxu0 0
        %2779 = vmatpush2.bf16.xpose.msra.mxu0 0
        %2780 = vmatprep.subr.bf16.mxu0 0
        %2781 = vmatpush2.bf16.xpose.msra.mxu0 0
        %2782 = vmatprep.subr.bf16.mxu0 0
        %2783 = vmatpush2.bf16.xpose.msra.mxu0 0
        %2784 = vmatprep.subr.bf16.mxu0 0
        %2785 = vmatpush2.bf16.xpose.msra.mxu0 0
        %2786 = vmatprep.subr.bf16.mxu0 0
        %2787 = vmatpush2.bf16.xpose.msra.mxu0 0
        %2788 = vmatprep.subr.bf16.mxu0 0
        %2789 = vmatpush2.bf16.xpose.msra.mxu0 0
        %2790 = vmatprep.subr.bf16.mxu0 0
        %2791 = vmatpush2.bf16.xpose.msra.mxu0 0
        %2792 = vmatprep.mubr.bf16.mxu0 0
        %2793 = vmatmul.mubr.bf16.gmra.mxu0 %v2755
        %v2794 = vpop.f32.mrf.mxu0
        %v2795 = vadd.f32 0.0, %v2794
        %v2796 = vpop.f32.mrf.mxu0
        %v2797 = vpop.f32.mrf.mxu0
        %v2798 = vpop.f32.mrf.mxu0
        %2799 = vdwg.mxu0
        %v2801 = vsel %vm2113, %v2559, 0
        %v2804 = vsel %vm2113, %v2567, 0
        %2806 = vmatprep.subr.bf16.mxu0 0
        %2807 = vmatpush1.bf16.xpose.msra.mxu0 0
        %2808 = vmatprep.subr.bf16.mxu0 0
        %2809 = vmatpush1.bf16.xpose.msra.mxu0 0
        %2810 = vmatprep.subr.bf16.mxu0 0
        %2811 = vmatpush1.bf16.xpose.msra.mxu0 0
        %2812 = vmatprep.subr.bf16.mxu0 0
        %2813 = vmatpush1.bf16.xpose.msra.mxu0 0
        %2814 = vmatprep.subr.bf16.mxu0 0
        %2815 = vmatpush1.bf16.xpose.msra.mxu0 0
        %2816 = vmatprep.subr.bf16.mxu0 0
        %2817 = vmatpush1.bf16.xpose.msra.mxu0 0
        %2818 = vmatprep.subr.bf16.mxu0 0
        %2819 = vmatpush1.bf16.xpose.msra.mxu0 0
        %2820 = vmatprep.subr.bf16.mxu0 0
        %2821 = vmatpush1.bf16.xpose.msra.mxu0 %v2804
        %2822 = vmatprep.subr.bf16.mxu0 0
        %2823 = vmatpush2.bf16.xpose.msra.mxu0 0
        %2824 = vmatprep.subr.bf16.mxu0 0
        %2825 = vmatpush2.bf16.xpose.msra.mxu0 0
        %2826 = vmatprep.subr.bf16.mxu0 0
        %2827 = vmatpush2.bf16.xpose.msra.mxu0 0
        %2828 = vmatprep.subr.bf16.mxu0 0
        %2829 = vmatpush2.bf16.xpose.msra.mxu0 0
        %2830 = vmatprep.subr.bf16.mxu0 0
        %2831 = vmatpush2.bf16.xpose.msra.mxu0 0
        %2832 = vmatprep.subr.bf16.mxu0 0
        %2833 = vmatpush2.bf16.xpose.msra.mxu0 0
        %2834 = vmatprep.subr.bf16.mxu0 0
        %2835 = vmatpush2.bf16.xpose.msra.mxu0 0
        %2836 = vmatprep.subr.bf16.mxu0 0
        %2837 = vmatpush2.bf16.xpose.msra.mxu0 0
        %2838 = vmatprep.mubr.bf16.mxu0 0
        %2839 = vmatmul.mubr.bf16.gmra.mxu0 %v2801
        %v2840 = vpop.f32.mrf.mxu0
        %v2841 = vadd.f32 0.0, %v2840
        %v2842 = vpop.f32.mrf.mxu0
        %v2843 = vpop.f32.mrf.mxu0
        %v2844 = vpop.f32.mrf.mxu0
        %2845 = vdwg.mxu0
        %v2847 = vsel %vm2113, %v2560, 0
        %v2850 = vsel %vm2113, %v2568, 0
        %2852 = vmatprep.subr.bf16.mxu0 0
        %2853 = vmatpush1.bf16.xpose.msra.mxu0 0
        %2854 = vmatprep.subr.bf16.mxu0 0
        %2855 = vmatpush1.bf16.xpose.msra.mxu0 0
        %2856 = vmatprep.subr.bf16.mxu0 0
        %2857 = vmatpush1.bf16.xpose.msra.mxu0 0
        %2858 = vmatprep.subr.bf16.mxu0 0
        %2859 = vmatpush1.bf16.xpose.msra.mxu0 0
        %2860 = vmatprep.subr.bf16.mxu0 0
        %2861 = vmatpush1.bf16.xpose.msra.mxu0 0
        %2862 = vmatprep.subr.bf16.mxu0 0
        %2863 = vmatpush1.bf16.xpose.msra.mxu0 0
        %2864 = vmatprep.subr.bf16.mxu0 0
        %2865 = vmatpush1.bf16.xpose.msra.mxu0 0
        %2866 = vmatprep.subr.bf16.mxu0 0
        %2867 = vmatpush1.bf16.xpose.msra.mxu0 %v2850
        %2868 = vmatprep.subr.bf16.mxu0 0
        %2869 = vmatpush2.bf16.xpose.msra.mxu0 0
        %2870 = vmatprep.subr.bf16.mxu0 0
        %2871 = vmatpush2.bf16.xpose.msra.mxu0 0
        %2872 = vmatprep.subr.bf16.mxu0 0
        %2873 = vmatpush2.bf16.xpose.msra.mxu0 0
        %2874 = vmatprep.subr.bf16.mxu0 0
        %2875 = vmatpush2.bf16.xpose.msra.mxu0 0
        %2876 = vmatprep.subr.bf16.mxu0 0
        %2877 = vmatpush2.bf16.xpose.msra.mxu0 0
        %2878 = vmatprep.subr.bf16.mxu0 0
        %2879 = vmatpush2.bf16.xpose.msra.mxu0 0
        %2880 = vmatprep.subr.bf16.mxu0 0
        %2881 = vmatpush2.bf16.xpose.msra.mxu0 0
        %2882 = vmatprep.subr.bf16.mxu0 0
        %2883 = vmatpush2.bf16.xpose.msra.mxu0 0
        %2884 = vmatprep.mubr.bf16.mxu0 0
        %2885 = vmatmul.mubr.bf16.gmra.mxu0 %v2847
        %v2886 = vpop.f32.mrf.mxu0
        %v2887 = vadd.f32 0.0, %v2886
        %v2888 = vpop.f32.mrf.mxu0
        %v2889 = vpop.f32.mrf.mxu0
        %v2890 = vpop.f32.mrf.mxu0
        %2891 = vdwg.mxu0
        %v2893 = vsel %vm2113, %v2561, 0
        %v2896 = vsel %vm2113, %v2569, 0
        %2898 = vmatprep.subr.bf16.mxu0 0
        %2899 = vmatpush1.bf16.xpose.msra.mxu0 0
        %2900 = vmatprep.subr.bf16.mxu0 0
        %2901 = vmatpush1.bf16.xpose.msra.mxu0 0
        %2902 = vmatprep.subr.bf16.mxu0 0
        %2903 = vmatpush1.bf16.xpose.msra.mxu0 0
        %2904 = vmatprep.subr.bf16.mxu0 0
        %2905 = vmatpush1.bf16.xpose.msra.mxu0 0
        %2906 = vmatprep.subr.bf16.mxu0 0
        %2907 = vmatpush1.bf16.xpose.msra.mxu0 0
        %2908 = vmatprep.subr.bf16.mxu0 0
        %2909 = vmatpush1.bf16.xpose.msra.mxu0 0
        %2910 = vmatprep.subr.bf16.mxu0 0
        %2911 = vmatpush1.bf16.xpose.msra.mxu0 0
        %2912 = vmatprep.subr.bf16.mxu0 0
        %2913 = vmatpush1.bf16.xpose.msra.mxu0 %v2896
        %2914 = vmatprep.subr.bf16.mxu0 0
        %2915 = vmatpush2.bf16.xpose.msra.mxu0 0
        %2916 = vmatprep.subr.bf16.mxu0 0
        %2917 = vmatpush2.bf16.xpose.msra.mxu0 0
        %2918 = vmatprep.subr.bf16.mxu0 0
        %2919 = vmatpush2.bf16.xpose.msra.mxu0 0
        %2920 = vmatprep.subr.bf16.mxu0 0
        %2921 = vmatpush2.bf16.xpose.msra.mxu0 0
        %2922 = vmatprep.subr.bf16.mxu0 0
        %2923 = vmatpush2.bf16.xpose.msra.mxu0 0
        %2924 = vmatprep.subr.bf16.mxu0 0
        %2925 = vmatpush2.bf16.xpose.msra.mxu0 0
        %2926 = vmatprep.subr.bf16.mxu0 0
        %2927 = vmatpush2.bf16.xpose.msra.mxu0 0
        %2928 = vmatprep.subr.bf16.mxu0 0
        %2929 = vmatpush2.bf16.xpose.msra.mxu0 0
        %2930 = vmatprep.mubr.bf16.mxu0 0
        %2931 = vmatmul.mubr.bf16.gmra.mxu0 %v2893
        %v2932 = vpop.f32.mrf.mxu0
        %v2933 = vadd.f32 0.0, %v2932
        %v2934 = vpop.f32.mrf.mxu0
        %v2935 = vpop.f32.mrf.mxu0
        %v2936 = vpop.f32.mrf.mxu0
        %2937 = vdwg.mxu0
        %v2938 = vrcp.pop %v2532
        %v2939 = vrcp.pop %v2535
        %v2940 = vrcp.pop %v2538
        %v2941 = vrcp.pop %v2541
        %v2942 = vrcp.pop %v2544
        %v2943 = vrcp.pop %v2547
        %v2944 = vrcp.pop %v2550
        %v2945 = vrcp.pop %v2553
        %v2946 = vmul.f32 %v2611, %v2938
        %v2947 = vmul.f32 %v2657, %v2939
        %v2948 = vmul.f32 %v2703, %v2940
        %v2949 = vmul.f32 %v2749, %v2941
        %v2950 = vmul.f32 %v2795, %v2942
        %v2951 = vmul.f32 %v2841, %v2943
        %v2952 = vmul.f32 %v2887, %v2944
        %v2953 = vmul.f32 %v2933, %v2945
        %2954 = vxpose.xlu0.b32.start [1/16] %v2946, 128
        %2955 = vxpose.xlu0.b32.cont [2/16] 0.0, 128
        %2956 = vxpose.xlu0.b32.cont [3/16] 0.0, 128
        %2957 = vxpose.xlu0.b32.cont [4/16] 0.0, 128
        %2958 = vxpose.xlu0.b32.cont [5/16] 0.0, 128
        %2959 = vxpose.xlu0.b32.cont [6/16] 0.0, 128
        %2960 = vxpose.xlu0.b32.cont [7/16] 0.0, 128
        %2961 = vxpose.xlu0.b32.cont [8/16] 0.0, 128
        %2962 = vxpose.xlu0.b32.cont [9/16] 0.0, 128
        %2963 = vxpose.xlu0.b32.cont [10/16] 0.0, 128
        %2964 = vxpose.xlu0.b32.cont [11/16] 0.0, 128
        %2965 = vxpose.xlu0.b32.cont [12/16] 0.0, 128
        %2966 = vxpose.xlu0.b32.cont [13/16] 0.0, 128
        %2967 = vxpose.xlu0.b32.cont [14/16] 0.0, 128
        %2968 = vxpose.xlu0.b32.cont [15/16] 0.0, 128
        %2969 = vxpose.xlu0.b32.end [16/16] 0.0, 128
        %v2970 = vpop.trf.xlu0
        %v2971 = vpop.trf.xlu0
        %v2972 = vpop.trf.xlu0
        %v2973 = vpop.trf.xlu0
        %v2974 = vpop.trf.xlu0
        %v2975 = vpop.trf.xlu0
        %v2976 = vpop.trf.xlu0
        %v2977 = vpop.trf.xlu0
        %v2978 = vpop.trf.xlu0
        %v2979 = vpop.trf.xlu0
        %v2980 = vpop.trf.xlu0
        %v2981 = vpop.trf.xlu0
        %v2982 = vpop.trf.xlu0
        %v2983 = vpop.trf.xlu0
        %v2984 = vpop.trf.xlu0
        %v2985 = vpop.trf.xlu0
        %2986 = vxpose.xlu0.b32.start [1/16] %v2947, 128
        %2987 = vxpose.xlu0.b32.cont [2/16] 0.0, 128
        %2988 = vxpose.xlu0.b32.cont [3/16] 0.0, 128
        %2989 = vxpose.xlu0.b32.cont [4/16] 0.0, 128
        %2990 = vxpose.xlu0.b32.cont [5/16] 0.0, 128
        %2991 = vxpose.xlu0.b32.cont [6/16] 0.0, 128
        %2992 = vxpose.xlu0.b32.cont [7/16] 0.0, 128
        %2993 = vxpose.xlu0.b32.cont [8/16] 0.0, 128
        %2994 = vxpose.xlu0.b32.cont [9/16] 0.0, 128
        %2995 = vxpose.xlu0.b32.cont [10/16] 0.0, 128
        %2996 = vxpose.xlu0.b32.cont [11/16] 0.0, 128
        %2997 = vxpose.xlu0.b32.cont [12/16] 0.0, 128
        %2998 = vxpose.xlu0.b32.cont [13/16] 0.0, 128
        %2999 = vxpose.xlu0.b32.cont [14/16] 0.0, 128
        %3000 = vxpose.xlu0.b32.cont [15/16] 0.0, 128
        %3001 = vxpose.xlu0.b32.end [16/16] 0.0, 128
        %v3002 = vpop.trf.xlu0
        %v3003 = vpop.trf.xlu0
        %v3004 = vpop.trf.xlu0
        %v3005 = vpop.trf.xlu0
        %v3006 = vpop.trf.xlu0
        %v3007 = vpop.trf.xlu0
        %v3008 = vpop.trf.xlu0
        %v3009 = vpop.trf.xlu0
        %v3010 = vpop.trf.xlu0
        %v3011 = vpop.trf.xlu0
        %v3012 = vpop.trf.xlu0
        %v3013 = vpop.trf.xlu0
        %v3014 = vpop.trf.xlu0
        %v3015 = vpop.trf.xlu0
        %v3016 = vpop.trf.xlu0
        %v3017 = vpop.trf.xlu0
        %3018 = vxpose.xlu0.b32.start [1/16] %v2948, 128
        %3019 = vxpose.xlu0.b32.cont [2/16] 0.0, 128
        %3020 = vxpose.xlu0.b32.cont [3/16] 0.0, 128
        %3021 = vxpose.xlu0.b32.cont [4/16] 0.0, 128
        %3022 = vxpose.xlu0.b32.cont [5/16] 0.0, 128
        %3023 = vxpose.xlu0.b32.cont [6/16] 0.0, 128
        %3024 = vxpose.xlu0.b32.cont [7/16] 0.0, 128
        %3025 = vxpose.xlu0.b32.cont [8/16] 0.0, 128
        %3026 = vxpose.xlu0.b32.cont [9/16] 0.0, 128
        %3027 = vxpose.xlu0.b32.cont [10/16] 0.0, 128
        %3028 = vxpose.xlu0.b32.cont [11/16] 0.0, 128
        %3029 = vxpose.xlu0.b32.cont [12/16] 0.0, 128
        %3030 = vxpose.xlu0.b32.cont [13/16] 0.0, 128
        %3031 = vxpose.xlu0.b32.cont [14/16] 0.0, 128
        %3032 = vxpose.xlu0.b32.cont [15/16] 0.0, 128
        %3033 = vxpose.xlu0.b32.end [16/16] 0.0, 128
        %v3034 = vpop.trf.xlu0
        %v3035 = vpop.trf.xlu0
        %v3036 = vpop.trf.xlu0
        %v3037 = vpop.trf.xlu0
        %v3038 = vpop.trf.xlu0
        %v3039 = vpop.trf.xlu0
        %v3040 = vpop.trf.xlu0
        %v3041 = vpop.trf.xlu0
        %v3042 = vpop.trf.xlu0
        %v3043 = vpop.trf.xlu0
        %v3044 = vpop.trf.xlu0
        %v3045 = vpop.trf.xlu0
        %v3046 = vpop.trf.xlu0
        %v3047 = vpop.trf.xlu0
        %v3048 = vpop.trf.xlu0
        %v3049 = vpop.trf.xlu0
        %3050 = vxpose.xlu0.b32.start [1/16] %v2949, 128
        %3051 = vxpose.xlu0.b32.cont [2/16] 0.0, 128
        %3052 = vxpose.xlu0.b32.cont [3/16] 0.0, 128
        %3053 = vxpose.xlu0.b32.cont [4/16] 0.0, 128
        %3054 = vxpose.xlu0.b32.cont [5/16] 0.0, 128
        %3055 = vxpose.xlu0.b32.cont [6/16] 0.0, 128
        %3056 = vxpose.xlu0.b32.cont [7/16] 0.0, 128
        %3057 = vxpose.xlu0.b32.cont [8/16] 0.0, 128
        %3058 = vxpose.xlu0.b32.cont [9/16] 0.0, 128
        %3059 = vxpose.xlu0.b32.cont [10/16] 0.0, 128
        %3060 = vxpose.xlu0.b32.cont [11/16] 0.0, 128
        %3061 = vxpose.xlu0.b32.cont [12/16] 0.0, 128
        %3062 = vxpose.xlu0.b32.cont [13/16] 0.0, 128
        %3063 = vxpose.xlu0.b32.cont [14/16] 0.0, 128
        %3064 = vxpose.xlu0.b32.cont [15/16] 0.0, 128
        %3065 = vxpose.xlu0.b32.end [16/16] 0.0, 128
        %v3066 = vpop.trf.xlu0
        %v3067 = vpop.trf.xlu0
        %v3068 = vpop.trf.xlu0
        %v3069 = vpop.trf.xlu0
        %v3070 = vpop.trf.xlu0
        %v3071 = vpop.trf.xlu0
        %v3072 = vpop.trf.xlu0
        %v3073 = vpop.trf.xlu0
        %v3074 = vpop.trf.xlu0
        %v3075 = vpop.trf.xlu0
        %v3076 = vpop.trf.xlu0
        %v3077 = vpop.trf.xlu0
        %v3078 = vpop.trf.xlu0
        %v3079 = vpop.trf.xlu0
        %v3080 = vpop.trf.xlu0
        %v3081 = vpop.trf.xlu0
        %3082 = vxpose.xlu0.b32.start [1/16] %v2950, 128
        %3083 = vxpose.xlu0.b32.cont [2/16] 0.0, 128
        %3084 = vxpose.xlu0.b32.cont [3/16] 0.0, 128
        %3085 = vxpose.xlu0.b32.cont [4/16] 0.0, 128
        %3086 = vxpose.xlu0.b32.cont [5/16] 0.0, 128
        %3087 = vxpose.xlu0.b32.cont [6/16] 0.0, 128
        %3088 = vxpose.xlu0.b32.cont [7/16] 0.0, 128
        %3089 = vxpose.xlu0.b32.cont [8/16] 0.0, 128
        %3090 = vxpose.xlu0.b32.cont [9/16] 0.0, 128
        %3091 = vxpose.xlu0.b32.cont [10/16] 0.0, 128
        %3092 = vxpose.xlu0.b32.cont [11/16] 0.0, 128
        %3093 = vxpose.xlu0.b32.cont [12/16] 0.0, 128
        %3094 = vxpose.xlu0.b32.cont [13/16] 0.0, 128
        %3095 = vxpose.xlu0.b32.cont [14/16] 0.0, 128
        %3096 = vxpose.xlu0.b32.cont [15/16] 0.0, 128
        %3097 = vxpose.xlu0.b32.end [16/16] 0.0, 128
        %v3098 = vpop.trf.xlu0
        %v3099 = vpop.trf.xlu0
        %v3100 = vpop.trf.xlu0
        %v3101 = vpop.trf.xlu0
        %v3102 = vpop.trf.xlu0
        %v3103 = vpop.trf.xlu0
        %v3104 = vpop.trf.xlu0
        %v3105 = vpop.trf.xlu0
        %v3106 = vpop.trf.xlu0
        %v3107 = vpop.trf.xlu0
        %v3108 = vpop.trf.xlu0
        %v3109 = vpop.trf.xlu0
        %v3110 = vpop.trf.xlu0
        %v3111 = vpop.trf.xlu0
        %v3112 = vpop.trf.xlu0
        %v3113 = vpop.trf.xlu0
        %3114 = vxpose.xlu0.b32.start [1/16] %v2951, 128
        %3115 = vxpose.xlu0.b32.cont [2/16] 0.0, 128
        %3116 = vxpose.xlu0.b32.cont [3/16] 0.0, 128
        %3117 = vxpose.xlu0.b32.cont [4/16] 0.0, 128
        %3118 = vxpose.xlu0.b32.cont [5/16] 0.0, 128
        %3119 = vxpose.xlu0.b32.cont [6/16] 0.0, 128
        %3120 = vxpose.xlu0.b32.cont [7/16] 0.0, 128
        %3121 = vxpose.xlu0.b32.cont [8/16] 0.0, 128
        %3122 = vxpose.xlu0.b32.cont [9/16] 0.0, 128
        %3123 = vxpose.xlu0.b32.cont [10/16] 0.0, 128
        %3124 = vxpose.xlu0.b32.cont [11/16] 0.0, 128
        %3125 = vxpose.xlu0.b32.cont [12/16] 0.0, 128
        %3126 = vxpose.xlu0.b32.cont [13/16] 0.0, 128
        %3127 = vxpose.xlu0.b32.cont [14/16] 0.0, 128
        %3128 = vxpose.xlu0.b32.cont [15/16] 0.0, 128
        %3129 = vxpose.xlu0.b32.end [16/16] 0.0, 128
        %v3130 = vpop.trf.xlu0
        %v3131 = vpop.trf.xlu0
        %v3132 = vpop.trf.xlu0
        %v3133 = vpop.trf.xlu0
        %v3134 = vpop.trf.xlu0
        %v3135 = vpop.trf.xlu0
        %v3136 = vpop.trf.xlu0
        %v3137 = vpop.trf.xlu0
        %v3138 = vpop.trf.xlu0
        %v3139 = vpop.trf.xlu0
        %v3140 = vpop.trf.xlu0
        %v3141 = vpop.trf.xlu0
        %v3142 = vpop.trf.xlu0
        %v3143 = vpop.trf.xlu0
        %v3144 = vpop.trf.xlu0
        %v3145 = vpop.trf.xlu0
        %3146 = vxpose.xlu0.b32.start [1/16] %v2952, 128
        %3147 = vxpose.xlu0.b32.cont [2/16] 0.0, 128
        %3148 = vxpose.xlu0.b32.cont [3/16] 0.0, 128
        %3149 = vxpose.xlu0.b32.cont [4/16] 0.0, 128
        %3150 = vxpose.xlu0.b32.cont [5/16] 0.0, 128
        %3151 = vxpose.xlu0.b32.cont [6/16] 0.0, 128
        %3152 = vxpose.xlu0.b32.cont [7/16] 0.0, 128
        %3153 = vxpose.xlu0.b32.cont [8/16] 0.0, 128
        %3154 = vxpose.xlu0.b32.cont [9/16] 0.0, 128
        %3155 = vxpose.xlu0.b32.cont [10/16] 0.0, 128
        %3156 = vxpose.xlu0.b32.cont [11/16] 0.0, 128
        %3157 = vxpose.xlu0.b32.cont [12/16] 0.0, 128
        %3158 = vxpose.xlu0.b32.cont [13/16] 0.0, 128
        %3159 = vxpose.xlu0.b32.cont [14/16] 0.0, 128
        %3160 = vxpose.xlu0.b32.cont [15/16] 0.0, 128
        %3161 = vxpose.xlu0.b32.end [16/16] 0.0, 128
        %v3162 = vpop.trf.xlu0
        %v3163 = vpop.trf.xlu0
        %v3164 = vpop.trf.xlu0
        %v3165 = vpop.trf.xlu0
        %v3166 = vpop.trf.xlu0
        %v3167 = vpop.trf.xlu0
        %v3168 = vpop.trf.xlu0
        %v3169 = vpop.trf.xlu0
        %v3170 = vpop.trf.xlu0
        %v3171 = vpop.trf.xlu0
        %v3172 = vpop.trf.xlu0
        %v3173 = vpop.trf.xlu0
        %v3174 = vpop.trf.xlu0
        %v3175 = vpop.trf.xlu0
        %v3176 = vpop.trf.xlu0
        %v3177 = vpop.trf.xlu0
        %3178 = vxpose.xlu0.b32.start [1/16] %v2953, 128
        %3179 = vxpose.xlu0.b32.cont [2/16] 0.0, 128
        %3180 = vxpose.xlu0.b32.cont [3/16] 0.0, 128
        %3181 = vxpose.xlu0.b32.cont [4/16] 0.0, 128
        %3182 = vxpose.xlu0.b32.cont [5/16] 0.0, 128
        %3183 = vxpose.xlu0.b32.cont [6/16] 0.0, 128
        %3184 = vxpose.xlu0.b32.cont [7/16] 0.0, 128
        %3185 = vxpose.xlu0.b32.cont [8/16] 0.0, 128
        %3186 = vxpose.xlu0.b32.cont [9/16] 0.0, 128
        %3187 = vxpose.xlu0.b32.cont [10/16] 0.0, 128
        %3188 = vxpose.xlu0.b32.cont [11/16] 0.0, 128
        %3189 = vxpose.xlu0.b32.cont [12/16] 0.0, 128
        %3190 = vxpose.xlu0.b32.cont [13/16] 0.0, 128
        %3191 = vxpose.xlu0.b32.cont [14/16] 0.0, 128
        %3192 = vxpose.xlu0.b32.cont [15/16] 0.0, 128
        %3193 = vxpose.xlu0.b32.end [16/16] 0.0, 128
        %v3194 = vpop.trf.xlu0
        %v3195 = vpop.trf.xlu0
        %v3196 = vpop.trf.xlu0
        %v3197 = vpop.trf.xlu0
        %v3198 = vpop.trf.xlu0
        %v3199 = vpop.trf.xlu0
        %v3200 = vpop.trf.xlu0
        %v3201 = vpop.trf.xlu0
        %v3202 = vpop.trf.xlu0
        %v3203 = vpop.trf.xlu0
        %v3204 = vpop.trf.xlu0
        %v3205 = vpop.trf.xlu0
        %v3206 = vpop.trf.xlu0
        %v3207 = vpop.trf.xlu0
        %v3208 = vpop.trf.xlu0
        %v3209 = vpop.trf.xlu0
        %3210 = vxpose.xlu0.b32.start [1/16] %v2970, 128
        %3211 = vxpose.xlu0.b32.cont [2/16] %v3002, 128
        %3212 = vxpose.xlu0.b32.cont [3/16] %v3034, 128
        %3213 = vxpose.xlu0.b32.cont [4/16] %v3066, 128
        %3214 = vxpose.xlu0.b32.cont [5/16] 0.0, 128
        %3215 = vxpose.xlu0.b32.cont [6/16] 0.0, 128
        %3216 = vxpose.xlu0.b32.cont [7/16] 0.0, 128
        %3217 = vxpose.xlu0.b32.cont [8/16] 0.0, 128
        %3218 = vxpose.xlu0.b32.cont [9/16] 0.0, 128
        %3219 = vxpose.xlu0.b32.cont [10/16] 0.0, 128
        %3220 = vxpose.xlu0.b32.cont [11/16] 0.0, 128
        %3221 = vxpose.xlu0.b32.cont [12/16] 0.0, 128
        %3222 = vxpose.xlu0.b32.cont [13/16] 0.0, 128
        %3223 = vxpose.xlu0.b32.cont [14/16] 0.0, 128
        %3224 = vxpose.xlu0.b32.cont [15/16] 0.0, 128
        %3225 = vxpose.xlu0.b32.end [16/16] 0.0, 128
        %v3226 = vpop.trf.xlu0
        %v3227 = vpop.trf.xlu0
        %v3228 = vpop.trf.xlu0
        %v3229 = vpop.trf.xlu0
        %v3230 = vpop.trf.xlu0
        %v3231 = vpop.trf.xlu0
        %v3232 = vpop.trf.xlu0
        %v3233 = vpop.trf.xlu0
        %v3234 = vpop.trf.xlu0
        %v3235 = vpop.trf.xlu0
        %v3236 = vpop.trf.xlu0
        %v3237 = vpop.trf.xlu0
        %v3238 = vpop.trf.xlu0
        %v3239 = vpop.trf.xlu0
        %v3240 = vpop.trf.xlu0
        %v3241 = vpop.trf.xlu0
        %3242 = vxpose.xlu0.b32.start [1/16] %v3098, 128
        %3243 = vxpose.xlu0.b32.cont [2/16] %v3130, 128
        %3244 = vxpose.xlu0.b32.cont [3/16] %v3162, 128
        %3245 = vxpose.xlu0.b32.cont [4/16] %v3194, 128
        %3246 = vxpose.xlu0.b32.cont [5/16] 0.0, 128
        %3247 = vxpose.xlu0.b32.cont [6/16] 0.0, 128
        %3248 = vxpose.xlu0.b32.cont [7/16] 0.0, 128
        %3249 = vxpose.xlu0.b32.cont [8/16] 0.0, 128
        %3250 = vxpose.xlu0.b32.cont [9/16] 0.0, 128
        %3251 = vxpose.xlu0.b32.cont [10/16] 0.0, 128
        %3252 = vxpose.xlu0.b32.cont [11/16] 0.0, 128
        %3253 = vxpose.xlu0.b32.cont [12/16] 0.0, 128
        %3254 = vxpose.xlu0.b32.cont [13/16] 0.0, 128
        %3255 = vxpose.xlu0.b32.cont [14/16] 0.0, 128
        %3256 = vxpose.xlu0.b32.cont [15/16] 0.0, 128
        %3257 = vxpose.xlu0.b32.end [16/16] 0.0, 128
        %v3258 = vpop.trf.xlu0
        %v3259 = vpop.trf.xlu0
        %v3260 = vpop.trf.xlu0
        %v3261 = vpop.trf.xlu0
        %v3262 = vpop.trf.xlu0
        %v3263 = vpop.trf.xlu0
        %v3264 = vpop.trf.xlu0
        %v3265 = vpop.trf.xlu0
        %v3266 = vpop.trf.xlu0
        %v3267 = vpop.trf.xlu0
        %v3268 = vpop.trf.xlu0
        %v3269 = vpop.trf.xlu0
        %v3270 = vpop.trf.xlu0
        %v3271 = vpop.trf.xlu0
        %v3272 = vpop.trf.xlu0
        %v3273 = vpop.trf.xlu0
        %v3274 = vpack.c.bf16 %v3258, %v3226
        %v3275 = vld [vmem:[%s897] sm:$0xf]
        %v3276 = vld [vmem:[%s897 + $0x4] sm:$0xf]
        %v3277 = vld [vmem:[%s897 + $0x8] sm:$0xf]
        %v3278 = vld [vmem:[%s897 + $0xc] sm:$0xf]
        %v3279 = vld [vmem:[%s1055] sm:$0x1]
        %v3281 = vlaneseq
        %v3282 = vshrl.u32 %v3281, 7
        %v3283 = vsub.s32 0, %v3282
        %v3284 = vrot.slane %v3279, %v3283
        %v3290 = vunpack.c.l.b16 %v3275
        %v3291 = vunpack.c.l.b16 %v3276
        %v3292 = vunpack.c.l.b16 %v3277
        %v3293 = vunpack.c.l.b16 %v3278
        %v3294 = vpack.c.b16 %v3291, %v3290
        %v3295 = vpack.c.b16 %v3293, %v3292
        %v3299 = vsel %vm1220, %v3274, 0
        %3301 = vmatprep.subr.bf16.mxu0 0
        %3302 = vmatpush1.bf16.msra.mxu0 0
        %3303 = vmatprep.subr.bf16.mxu0 0
        %3304 = vmatpush1.bf16.msra.mxu0 0
        %3305 = vmatprep.subr.bf16.mxu0 0
        %3306 = vmatpush1.bf16.msra.mxu0 0
        %3307 = vmatprep.subr.bf16.mxu0 0
        %3308 = vmatpush1.bf16.msra.mxu0 0
        %3309 = vmatprep.subr.bf16.mxu0 0
        %3310 = vmatpush1.bf16.msra.mxu0 0
        %3311 = vmatprep.subr.bf16.mxu0 0
        %3312 = vmatpush1.bf16.msra.mxu0 0
        %3313 = vmatprep.subr.bf16.mxu0 0
        %3314 = vmatpush1.bf16.msra.mxu0 %v3295
        %3315 = vmatprep.subr.bf16.mxu0 0
        %3316 = vmatpush1.bf16.msra.mxu0 %v3294
        %3317 = vmatprep.subr.bf16.mxu0 0
        %3318 = vmatpush2.bf16.msra.mxu0 0
        %3319 = vmatprep.subr.bf16.mxu0 0
        %3320 = vmatpush2.bf16.msra.mxu0 0
        %3321 = vmatprep.subr.bf16.mxu0 0
        %3322 = vmatpush2.bf16.msra.mxu0 0
        %3323 = vmatprep.subr.bf16.mxu0 0
        %3324 = vmatpush2.bf16.msra.mxu0 0
        %3325 = vmatprep.subr.bf16.mxu0 0
        %3326 = vmatpush2.bf16.msra.mxu0 0
        %3327 = vmatprep.subr.bf16.mxu0 0
        %3328 = vmatpush2.bf16.msra.mxu0 0
        %3329 = vmatprep.subr.bf16.mxu0 0
        %3330 = vmatpush2.bf16.msra.mxu0 0
        %3331 = vmatprep.subr.bf16.mxu0 0
        %3332 = vmatpush2.bf16.msra.mxu0 0
        %3333 = vmatprep.mubr.bf16.mxu0 0
        %3334 = vmatmul.mubr.bf16.gmra.mxu0 %v3299
        %v3335 = vpop.f32.mrf.mxu0
        %v3336 = vadd.f32 %v3284, %v3335
        %v3337 = vpop.f32.mrf.mxu0
        %v3338 = vpop.f32.mrf.mxu0
        %v3339 = vadd.f32 %v3284, %v3338
        %v3340 = vpop.f32.mrf.mxu0
        %3341 = vdwg.mxu0
        %v3342 = vadd.f32 %v1194, %v3336
        %v3343 = vadd.f32 %v1195, %v3339
        %v3344 = vld [vmem:[%s1058] sm:$0x1]
        %v3345 = vld [vmem:[%s905] sm:$0x1]
        %v3346 = vsel %vm1220, %v3342, 0.0
        %3347 = vadd.xlane.f32.xlu0 %v3346
        %v3348 = vpop.xlane.xlu0 %3347
        %v3349 = vsel %vm1220, %v3343, 0.0
        %3350 = vadd.xlane.f32.xlu0 %v3349
        %v3351 = vpop.xlane.xlu0 %3350
        %v3352 = vrcp.pop 32.0
        %v3353 = vmul.f32 %v3348, %v3352
        %v3354 = vmul.f32 %v3351, %v3352
        %v3355 = vsub.f32 %v3342, %v3353
        %v3356 = vsub.f32 %v3343, %v3354
        %v3357 = vmul.f32 %v3355, %v3355
        %v3358 = vmul.f32 %v3356, %v3356
        %v3359 = vsel %vm1220, %v3357, 0.0
        %3360 = vadd.xlane.f32.xlu0 %v3359
        %v3361 = vpop.xlane.xlu0 %3360
        %v3362 = vsel %vm1220, %v3358, 0.0
        %3363 = vadd.xlane.f32.xlu0 %v3362
        %v3364 = vpop.xlane.xlu0 %3363
        %v3365 = vmul.f32 %v3361, %v3352
        %v3366 = vmul.f32 %v3364, %v3352
        %v3367 = vadd.f32 %v3365, 1e-05
        %v3368 = vadd.f32 %v3366, 1e-05
        %v3369 = vrsqrt.pop %v3367
        %v3370 = vrsqrt.pop %v3368
        %v3371 = vmul.f32 %v3355, %v3369
        %v3372 = vmul.f32 %v3356, %v3370
        %v3374 = vlaneseq
        %v3375 = vshrl.u32 %v3374, 7
        %v3376 = vsub.s32 0, %v3375
        %v3377 = vrot.slane %v3344, %v3376
        %v3379 = vmul.f32 %v3371, %v3377
        %v3380 = vmul.f32 %v3372, %v3377
        %v3382 = vlaneseq
        %v3383 = vshrl.u32 %v3382, 7
        %v3384 = vsub.s32 0, %v3383
        %v3385 = vrot.slane %v3345, %v3384
        %v3387 = vadd.f32 %v3379, %v3385
        %v3388 = vadd.f32 %v3380, %v3385
        %v3389 = vpack.c.bf16 %v3388, %v3387
        %v3390 = vld [vmem:[%s914] sm:$0xf]
        %v3391 = vld [vmem:[%s914 + $0x4] sm:$0xf]
        %v3392 = vld [vmem:[%s914 + $0x8] sm:$0xf]
        %v3393 = vld [vmem:[%s914 + $0xc] sm:$0xf]
        %v3394 = vld [vmem:[%s1061] sm:$0x1]
        %v3396 = vlaneseq
        %v3397 = vshrl.u32 %v3396, 7
        %v3398 = vsub.s32 0, %v3397
        %v3399 = vrot.slane %v3394, %v3398
        %v3405 = vunpack.c.l.b16 %v3390
        %v3406 = vunpack.c.l.b16 %v3391
        %v3407 = vunpack.c.l.b16 %v3392
        %v3408 = vunpack.c.l.b16 %v3393
        %v3409 = vpack.c.b16 %v3406, %v3405
        %v3410 = vpack.c.b16 %v3408, %v3407
        %v3414 = vsel %vm1220, %v3389, 0
        %3416 = vmatprep.subr.bf16.mxu0 0
        %3417 = vmatpush1.bf16.msra.mxu0 0
        %3418 = vmatprep.subr.bf16.mxu0 0
        %3419 = vmatpush1.bf16.msra.mxu0 0
        %3420 = vmatprep.subr.bf16.mxu0 0
        %3421 = vmatpush1.bf16.msra.mxu0 0
        %3422 = vmatprep.subr.bf16.mxu0 0
        %3423 = vmatpush1.bf16.msra.mxu0 0
        %3424 = vmatprep.subr.bf16.mxu0 0
        %3425 = vmatpush1.bf16.msra.mxu0 0
        %3426 = vmatprep.subr.bf16.mxu0 0
        %3427 = vmatpush1.bf16.msra.mxu0 0
        %3428 = vmatprep.subr.bf16.mxu0 0
        %3429 = vmatpush1.bf16.msra.mxu0 %v3410
        %3430 = vmatprep.subr.bf16.mxu0 0
        %3431 = vmatpush1.bf16.msra.mxu0 %v3409
        %3432 = vmatprep.subr.bf16.mxu0 0
        %3433 = vmatpush2.bf16.msra.mxu0 0
        %3434 = vmatprep.subr.bf16.mxu0 0
        %3435 = vmatpush2.bf16.msra.mxu0 0
        %3436 = vmatprep.subr.bf16.mxu0 0
        %3437 = vmatpush2.bf16.msra.mxu0 0
        %3438 = vmatprep.subr.bf16.mxu0 0
        %3439 = vmatpush2.bf16.msra.mxu0 0
        %3440 = vmatprep.subr.bf16.mxu0 0
        %3441 = vmatpush2.bf16.msra.mxu0 0
        %3442 = vmatprep.subr.bf16.mxu0 0
        %3443 = vmatpush2.bf16.msra.mxu0 0
        %3444 = vmatprep.subr.bf16.mxu0 0
        %3445 = vmatpush2.bf16.msra.mxu0 0
        %3446 = vmatprep.subr.bf16.mxu0 0
        %3447 = vmatpush2.bf16.msra.mxu0 0
        %3448 = vmatprep.mubr.bf16.mxu0 0
        %3449 = vmatmul.mubr.bf16.gmra.mxu0 %v3414
        %v3450 = vpop.f32.mrf.mxu0
        %v3451 = vadd.f32 %v3399, %v3450
        %v3452 = vpop.f32.mrf.mxu0
        %v3453 = vpop.f32.mrf.mxu0
        %v3454 = vadd.f32 %v3399, %v3453
        %v3455 = vpop.f32.mrf.mxu0
        %3456 = vdwg.mxu0
        %v3457 = vpack.c.bf16 %v3454, %v3451
        %v3458 = vmax.bf16 %v3457, 0
        %v3459 = vld [vmem:[%s1066] sm:$0xf]
        %v3460 = vld [vmem:[%s1066 + $0x4] sm:$0xf]
        %v3461 = vld [vmem:[%s1066 + $0x8] sm:$0xf]
        %v3462 = vld [vmem:[%s1066 + $0xc] sm:$0xf]
        %v3463 = vld [vmem:[%s1066 + $0x10] sm:$0xf]
        %v3464 = vld [vmem:[%s1066 + $0x14] sm:$0xf]
        %v3465 = vld [vmem:[%s1066 + $0x18] sm:$0xf]
        %v3466 = vld [vmem:[%s1066 + $0x1c] sm:$0xf]
        %v3467 = vld [vmem:[%s1069] sm:$0x1]
        %v3469 = vlaneseq
        %v3470 = vshrl.u32 %v3469, 7
        %v3471 = vsub.s32 0, %v3470
        %v3472 = vrot.slane %v3467, %v3471
        %v3482 = vunpack.c.l.b16 %v3459
        %v3483 = vunpack.c.l.b16 %v3460
        %v3484 = vunpack.c.l.b16 %v3461
        %v3485 = vunpack.c.l.b16 %v3462
        %v3486 = vunpack.c.l.b16 %v3463
        %v3487 = vunpack.c.l.b16 %v3464
        %v3488 = vunpack.c.l.b16 %v3465
        %v3489 = vunpack.c.l.b16 %v3466
        %v3490 = vpack.c.b16 %v3483, %v3482
        %v3491 = vpack.c.b16 %v3485, %v3484
        %v3492 = vpack.c.b16 %v3487, %v3486
        %v3493 = vpack.c.b16 %v3489, %v3488
        %vm3498 = vcmask 523264
        %v3500 = vsel %vm3498, %v3458, 0
        %3502 = vmatprep.subr.bf16.mxu0 0
        %3503 = vmatpush1.bf16.msra.mxu0 0
        %3504 = vmatprep.subr.bf16.mxu0 0
        %3505 = vmatpush1.bf16.msra.mxu0 0
        %3506 = vmatprep.subr.bf16.mxu0 0
        %3507 = vmatpush1.bf16.msra.mxu0 0
        %3508 = vmatprep.subr.bf16.mxu0 0
        %3509 = vmatpush1.bf16.msra.mxu0 0
        %3510 = vmatprep.subr.bf16.mxu0 0
        %3511 = vmatpush1.bf16.msra.mxu0 %v3493
        %3512 = vmatprep.subr.bf16.mxu0 0
        %3513 = vmatpush1.bf16.msra.mxu0 %v3492
        %3514 = vmatprep.subr.bf16.mxu0 0
        %3515 = vmatpush1.bf16.msra.mxu0 %v3491
        %3516 = vmatprep.subr.bf16.mxu0 0
        %3517 = vmatpush1.bf16.msra.mxu0 %v3490
        %3518 = vmatprep.subr.bf16.mxu0 0
        %3519 = vmatpush2.bf16.msra.mxu0 0
        %3520 = vmatprep.subr.bf16.mxu0 0
        %3521 = vmatpush2.bf16.msra.mxu0 0
        %3522 = vmatprep.subr.bf16.mxu0 0
        %3523 = vmatpush2.bf16.msra.mxu0 0
        %3524 = vmatprep.subr.bf16.mxu0 0
        %3525 = vmatpush2.bf16.msra.mxu0 0
        %3526 = vmatprep.subr.bf16.mxu0 0
        %3527 = vmatpush2.bf16.msra.mxu0 0
        %3528 = vmatprep.subr.bf16.mxu0 0
        %3529 = vmatpush2.bf16.msra.mxu0 0
        %3530 = vmatprep.subr.bf16.mxu0 0
        %3531 = vmatpush2.bf16.msra.mxu0 0
        %3532 = vmatprep.subr.bf16.mxu0 0
        %3533 = vmatpush2.bf16.msra.mxu0 0
        %3534 = vmatprep.mubr.bf16.mxu0 0
        %3535 = vmatmul.mubr.bf16.gmra.mxu0 %v3500
        %v3536 = vpop.f32.mrf.mxu0
        %v3537 = vadd.f32 %v3472, %v3536
        %v3538 = vpop.f32.mrf.mxu0
        %v3539 = vpop.f32.mrf.mxu0
        %v3540 = vadd.f32 %v3472, %v3539
        %v3541 = vpop.f32.mrf.mxu0
        %3542 = vdwg.mxu0
        %v3543 = vadd.f32 %v3387, %v3537
        %v3544 = vadd.f32 %v3388, %v3540
        %v3545 = vld [vmem:[%s1072] sm:$0x1]
        %v3546 = vld [vmem:[%s1075] sm:$0x1]
        %v3547 = vsel %vm1220, %v3543, 0.0
        %3548 = vadd.xlane.f32.xlu0 %v3547
        %v3549 = vpop.xlane.xlu0 %3548
        %v3550 = vsel %vm1220, %v3544, 0.0
        %3551 = vadd.xlane.f32.xlu0 %v3550
        %v3552 = vpop.xlane.xlu0 %3551
        %v3553 = vmul.f32 %v3549, %v3352
        %v3554 = vmul.f32 %v3552, %v3352
        %v3555 = vsub.f32 %v3543, %v3553
        %v3556 = vsub.f32 %v3544, %v3554
        %v3557 = vmul.f32 %v3555, %v3555
        %v3558 = vmul.f32 %v3556, %v3556
        %v3559 = vsel %vm1220, %v3557, 0.0
        %3560 = vadd.xlane.f32.xlu0 %v3559
        %v3561 = vpop.xlane.xlu0 %3560
        %v3562 = vsel %vm1220, %v3558, 0.0
        %3563 = vadd.xlane.f32.xlu0 %v3562
        %v3564 = vpop.xlane.xlu0 %3563
        %v3565 = vmul.f32 %v3561, %v3352
        %v3566 = vmul.f32 %v3564, %v3352
        %v3567 = vadd.f32 %v3565, 1e-05
        %v3568 = vadd.f32 %v3566, 1e-05
        %v3569 = vrsqrt.pop %v3567
        %v3570 = vrsqrt.pop %v3568
        %v3571 = vmul.f32 %v3555, %v3569
        %v3572 = vmul.f32 %v3556, %v3570
        %v3574 = vlaneseq
        %v3575 = vshrl.u32 %v3574, 7
        %v3576 = vsub.s32 0, %v3575
        %v3577 = vrot.slane %v3545, %v3576
        %v3579 = vmul.f32 %v3571, %v3577
        %v3580 = vmul.f32 %v3572, %v3577
        %v3582 = vlaneseq
        %v3583 = vshrl.u32 %v3582, 7
        %v3584 = vsub.s32 0, %v3583
        %v3585 = vrot.slane %v3546, %v3584
        %v3587 = vadd.f32 %v3579, %v3585
        %v3588 = vadd.f32 %v3580, %v3585
        %3589 = vst.msk [vmem:[#allocation2] sm:$0xff] %vm1220, %v3587
        %3590 = vst.msk [vmem:[#allocation2 + $0x8] sm:$0xff] %vm1220, %v3588
        %p3591 = scmp.eq.s32.totalorder %s42, 1
        // Predicated region
        $region145: #{tpu_custom_call.1} parent=103 // pred_check
          %p3592 = pneg %p3591
        $region146: #{tpu_custom_call.1} parent=103 // pred_check_branch
          %3594 = sbr.rel (%p3592) target = $region148
        $region147: #{tpu_custom_call.1} parent=103 // pred_region
          %v3595 = vld [vmem:[#allocation2] sm:$0xff]
          %v3596 = vld [vmem:[#allocation2 + $0x8] sm:$0xff]
          %v3597 = vpack.c.bf16 %v3596, %v3595
          %v3598 = vld [vmem:[%s19] sm:$0xf]
          %v3599 = vld [vmem:[%s19 + $0x4] sm:$0xf]
          %v3600 = vld [vmem:[%s19 + $0x8] sm:$0xf]
          %v3601 = vld [vmem:[%s19 + $0xc] sm:$0xf]
          %v3602 = vld [vmem:[%s20] sm:$0x1]
          %v3604 = vlaneseq
          %v3605 = vshrl.u32 %v3604, 7
          %v3606 = vsub.s32 0, %v3605
          %v3607 = vrot.slane %v3602, %v3606
          %v3613 = vunpack.c.l.b16 %v3598
          %v3614 = vunpack.c.l.b16 %v3599
          %v3615 = vunpack.c.l.b16 %v3600
          %v3616 = vunpack.c.l.b16 %v3601
          %v3617 = vpack.c.b16 %v3614, %v3613
          %v3618 = vpack.c.b16 %v3616, %v3615
          %v3622 = vsel %vm1220, %v3597, 0
          %3624 = vmatprep.subr.bf16.mxu0 0
          %3625 = vmatpush1.bf16.msra.mxu0 0
          %3626 = vmatprep.subr.bf16.mxu0 0
          %3627 = vmatpush1.bf16.msra.mxu0 0
          %3628 = vmatprep.subr.bf16.mxu0 0
          %3629 = vmatpush1.bf16.msra.mxu0 0
          %3630 = vmatprep.subr.bf16.mxu0 0
          %3631 = vmatpush1.bf16.msra.mxu0 0
          %3632 = vmatprep.subr.bf16.mxu0 0
          %3633 = vmatpush1.bf16.msra.mxu0 0
          %3634 = vmatprep.subr.bf16.mxu0 0
          %3635 = vmatpush1.bf16.msra.mxu0 0
          %3636 = vmatprep.subr.bf16.mxu0 0
          %3637 = vmatpush1.bf16.msra.mxu0 %v3618
          %3638 = vmatprep.subr.bf16.mxu0 0
          %3639 = vmatpush1.bf16.msra.mxu0 %v3617
          %3640 = vmatprep.subr.bf16.mxu0 0
          %3641 = vmatpush2.bf16.msra.mxu0 0
          %3642 = vmatprep.subr.bf16.mxu0 0
          %3643 = vmatpush2.bf16.msra.mxu0 0
          %3644 = vmatprep.subr.bf16.mxu0 0
          %3645 = vmatpush2.bf16.msra.mxu0 0
          %3646 = vmatprep.subr.bf16.mxu0 0
          %3647 = vmatpush2.bf16.msra.mxu0 0
          %3648 = vmatprep.subr.bf16.mxu0 0
          %3649 = vmatpush2.bf16.msra.mxu0 0
          %3650 = vmatprep.subr.bf16.mxu0 0
          %3651 = vmatpush2.bf16.msra.mxu0 0
          %3652 = vmatprep.subr.bf16.mxu0 0
          %3653 = vmatpush2.bf16.msra.mxu0 0
          %3654 = vmatprep.subr.bf16.mxu0 0
          %3655 = vmatpush2.bf16.msra.mxu0 0
          %3656 = vmatprep.mubr.bf16.mxu0 0
          %3657 = vmatmul.mubr.bf16.gmra.mxu0 %v3622
          %v3658 = vpop.f32.mrf.mxu0
          %v3659 = vadd.f32 %v3607, %v3658
          %v3660 = vpop.f32.mrf.mxu0
          %v3661 = vpop.f32.mrf.mxu0
          %v3662 = vadd.f32 %v3607, %v3661
          %v3663 = vpop.f32.mrf.mxu0
          %3664 = vdwg.mxu0
          %v3665 = vld [vmem:[#allocation4] sm:$0xff]
          %v3666 = vld [vmem:[#allocation4 + $0x8] sm:$0xff]
          %3668 = vset.pattern.permute.xlu0 0
          %3669 = vperm.xlu0 %3668, %v3665
          %v3670 = vpop.permute.xlu0 %3669
          %3673 = vset.pattern.permute.xlu0 0
          %3674 = vperm.xlu0 %3673, %v3666
          %v3675 = vpop.permute.xlu0 %3674
          %v3677 = vmul.f32 %v3659, %v3670
          %v3678 = vmul.f32 %v3662, %v3675
          %v3679 = vld [vmem:[#allocation3] sm:$0xff]
          %v3680 = vld [vmem:[#allocation3 + $0x8] sm:$0xff]
          %3682 = vset.pattern.permute.xlu0 0
          %3683 = vperm.xlu0 %3682, %v3679
          %v3684 = vpop.permute.xlu0 %3683
          %3687 = vset.pattern.permute.xlu0 0
          %3688 = vperm.xlu0 %3687, %v3680
          %v3689 = vpop.permute.xlu0 %3688
          %v3691 = vadd.f32 %v3677, %v3684
          %v3692 = vadd.f32 %v3678, %v3689
          %3693 = vst [vmem:[%s1036] sm:$0xff] %v3691
          %3694 = vst [vmem:[%s1036 + $0x8] sm:$0xff] %v3692
        $region148: #{tpu_custom_call.1} parent=103 // pred_fallthru
          _
        %s3695 = sand.u32 %s583, 1
        %s3696 = scalar_lea.sflag [#allocation7], %s3695
        %s3697 = sand.u32 %s583, 1
        %s3698 = smul.addr %s3697, 16
        %s3699 = scalar_lea.vmem [#allocation17], %s3698
        // Predicated region
        $region149: #{tpu_custom_call.1} parent=103 // pred_check
          %p3700 = pneg %p593
        $region150: #{tpu_custom_call.1} parent=103 // pred_check_branch
          %3702 = sbr.rel (%p3700) target = $region152
        $region151: #{tpu_custom_call.1} parent=103 // pred_region
          %s3703 = smul.u32 2, %s41
          %s3705 = ssub.s32 256, 256
          %3706 = vsyncadd %s3696, %s3705
          %s3707 = smul.addr %s3703, 128
          %s3708 = scalar_lea.hbm %s21, %s3707
          %s3709 = sshll.u32 %s3699, 4
          %s3710 = int_to_ptr.vmem [resolvable:$true] %s3709
          %3715 = dma.vmem_to_hbm [thread:$0]  %s3710, 256, %s3708, %s3696, 128, 128, 8
        $region152: #{tpu_custom_call.1} parent=103 // pred_fallthru
          _
      $region104: #{tpu_custom_call.1} parent=5 // pred_fallthru
        _
      %p3716 = scmp.le.s32.totalorder 2, %s32
      // Predicated region
      $region153: #{tpu_custom_call.1} parent=5 // pred_check
        %p3717 = pneg %p3716
      $region154: #{tpu_custom_call.1} parent=5 // pred_check_branch
        %3719 = sbr.rel (%p3717) target = $region156
      $region155: #{tpu_custom_call.1} parent=5 // pred_region
        %s3720 = ssub.s32 %s32, 2
        // Predicated region
        $region157: #{tpu_custom_call.1} parent=155 // pred_check
          %p3721 = pneg %p599
        $region158: #{tpu_custom_call.1} parent=155 // pred_check_branch
          %3723 = sbr.rel (%p3721) target = $region160
        $region159: #{tpu_custom_call.1} parent=155 // pred_region
          %s3724 = sand.u32 %s584, 1
          %s3725 = scalar_lea.sflag [#allocation7], %s3724
          %s3726 = sand.u32 %s584, 1
          %s3727 = smul.addr %s3726, 16
          %s3728 = scalar_lea.vmem [#allocation17], %s3727
          %3729 = dma.done %s3725, 256
        $region160: #{tpu_custom_call.1} parent=155 // pred_fallthru
          _
      $region156: #{tpu_custom_call.1} parent=5 // pred_fallthru
        _
    $region6: #{tpu_custom_call.1} parent=1 // loop_footer
      %s36 = sadd.s32 1, %s32
    $region7: #{tpu_custom_call.1} parent=1 // loop_footer_branch
      %31 = sbr.rel target = $region3
    $region8: #{tpu_custom_call.1} parent=1 // loop_exit
      _
    %3730 = vsyncpa [#allocation6], 1
    %s3731 = scalar_lea.sflag [#allocation6], 1
    %3732 = vsyncpa %s3731, 1
    %3733 = vsyncpa [#allocation9], 1
    %3734 = vsyncpa [#allocation7], 1
    %s3735 = scalar_lea.sflag [#allocation7], 1
    %3736 = vsyncpa %s3735, 1

</llo_original>
